<compile_context>
chip_gen: v7x
topology: tpu7x:2x2x1
jax: 0.10.0
libtpu: 0.0.40
codegen_flags: <defaults>
</compile_context>

<pallas_src>
import functools

import jax
import jax.numpy as jnp
from jax import lax
from jax.experimental import pallas as pl
from jax.experimental.pallas import tpu as pltpu


_PAD = 128  # per-gate lane width after zero-padding (one full vreg lane span)


# ----------------------------------------------------------------------------
# Pallas kernel: fused 2-layer LSTM recurrence.
# Gate layout everywhere: [i | f | o | g], each gate padded to 128 lanes.
# ----------------------------------------------------------------------------
def _encoder_lstm_kernel(x_ref,      # (seq, n_features)               f32
                         wih1_ref,   # (n_features, 4*P)               f32
                         whh1_ref,   # (P, 4*P)                        bf16
                         b1_ref,     # (1, 4*P)                        f32
                         wih2_ref,   # (P, 4*P)   layer-2 input  wts   bf16
                         whh2_ref,   # (P, 4*P)   layer-2 recur. wts   bf16
                         b2_ref,     # (1, 4*P)                        f32
                         out_ref,    # (1, P)  final hidden of layer 2 (padded)
                         xp1_ref):   # VMEM scratch (seq, 4*P) f32
    seq, nf = x_ref.shape
    P = whh1_ref.shape[1] // 4

    # ---- layer-1 input projection for every timestep, computed up front ----
    if nf == 1:
        # K=1 matmul is an outer product: do it on the VPU (broadcast multiply),
        # skipping an MXU push at kernel start.
        xp1_ref[...] = x_ref[...] * wih1_ref[...] + b1_ref[...]
    else:
        xp1_ref[...] = (
            jnp.dot(x_ref[...].astype(jnp.bfloat16),
                    wih1_ref[...].astype(jnp.bfloat16),
                    preferred_element_type=jnp.float32)
            + b1_ref[...]
        )

    def lstm_gates(pre, c_prev):
        # pre: (1, 4*P) pre-activations, blocks [i|f|o|g], all 128-lane aligned.
        s = jax.nn.sigmoid(pre[:, : 3 * P])   # i|f|o in one EUP slab
        g = jnp.tanh(pre[:, 3 * P:])          # candidate
        c = s[:, P:2 * P] * c_prev + s[:, :P] * g
        h = s[:, 2 * P:3 * P] * jnp.tanh(c)
        return h, c

    def step(t, carry):
        h1, c1, h2, c2 = carry

        # ----- layer 1: one K=128 bf16 matmul (weights read from VMEM here,
        # not hoisted into vregs -> no pinning across the unrolled loop) -----
        pre1 = xp1_ref[pl.ds(t, 1), :] + jnp.dot(
            h1.astype(jnp.bfloat16), whh1_ref[...],
            preferred_element_type=jnp.float32)
        h1, c1 = lstm_gates(pre1, c1)

        # ----- layer 2: two K=128 bf16 matmuls accumulating into one
        # pre-activation (no per-step lane concatenation of [h1|h2]) -----
        pre2 = (jnp.dot(h1.astype(jnp.bfloat16), wih2_ref[...],
                        preferred_element_type=jnp.float32)
                + jnp.dot(h2.astype(jnp.bfloat16), whh2_ref[...],
                          preferred_element_type=jnp.float32)
                + b2_ref[...])
        h2, c2 = lstm_gates(pre2, c2)

        return (h1, c1, h2, c2)

    init = (
        jnp.zeros((1, P), jnp.float32),
        jnp.zeros((1, P), jnp.float32),
        jnp.zeros((1, P), jnp.float32),
        jnp.zeros((1, P), jnp.float32),
    )
    # Full unroll only while seq is small; partial unroll afterwards to keep
    # instruction memory / live ranges bounded.
    unroll = True if seq <= 32 else 8
    _, _, h2_final, _ = lax.fori_loop(0, seq, step, init, unroll=unroll)

    out_ref[...] = h2_final


# ----------------------------------------------------------------------------
# Wrapper: parameter packing (transpose, gate reorder, lane-pad) + pallas_call.
# ----------------------------------------------------------------------------
def _pack_gates_padded(w, h_sz, pad=_PAD):
    """w: (K, 4*h_sz) with PyTorch gate order [i|f|g|o] on the last axis.
    Returns (K, 4*pad) with gate order [i|f|o|g], each gate zero-padded to
    `pad` lanes so all gate slabs are 128-lane aligned."""
    i, f, g, o = jnp.split(w, 4, axis=-1)
    zp = lambda b: jnp.pad(b, ((0, 0), (0, pad - h_sz)))
    return jnp.concatenate([zp(i), zp(f), zp(o), zp(g)], axis=-1)


def _pad_rows(w, k, ):
    return jnp.pad(w, ((0, k - w.shape[0]), (0, 0)))


def encoder_with_lstm(x, params, *, seq_len, n_features, embedding_dim,
                      return_padded=False):
    hidden_dim = 2 * embedding_dim
    P = _PAD
    # Same constraint as the PyTorch module: hidden_n (1, emb) can only be
    # reshaped to (n_features, emb) when n_features == 1.
    assert n_features == 1, "Encoder_withLSTM's final reshape requires n_features == 1"
    assert hidden_dim <= P and embedding_dim <= P, "padded layout assumes H <= 128"

    x2d = x.reshape(seq_len, n_features).astype(jnp.float32)

    # Layer 1 (rnn1): input projection stays f32 (VPU path for nf==1);
    # recurrent weights go bf16 for the MXU.
    wih1 = _pack_gates_padded(params["w_ih1"].T, hidden_dim)                     # (nf, 4P) f32
    whh1 = _pad_rows(_pack_gates_padded(params["w_hh1"].T, hidden_dim), P
                     ).astype(jnp.bfloat16)                                      # (P, 4P) bf16
    b1 = _pack_gates_padded((params["b_ih1"] + params["b_hh1"]).reshape(1, -1),
                            hidden_dim)                                          # (1, 4P) f32

    # Layer 2 (rnn2): split (not concatenated) input / recurrent weights, bf16.
    wih2 = _pad_rows(_pack_gates_padded(params["w_ih2"].T, embedding_dim), P
                     ).astype(jnp.bfloat16)                                      # (P, 4P) bf16
    whh2 = _pad_rows(_pack_gates_padded(params["w_hh2"].T, embedding_dim), P
                     ).astype(jnp.bfloat16)                                      # (P, 4P) bf16
    b2 = _pack_gates_padded((params["b_ih2"] + params["b_hh2"]).reshape(1, -1),
                            embedding_dim)                                       # (1, 4P) f32

    # VMEM budget derived from the actual resident footprint (weights + input
    # projection scratch + output), with generous headroom for tile rounding
    # and compiler-internal scratch.  Far below the 64 MiB v7x VMEM.
    resident_bytes = sum(int(a.size) * a.dtype.itemsize
                         for a in (x2d, wih1, whh1, b1, wih2, whh2, b2))
    resident_bytes += seq_len * 4 * P * 4 + P * 4        # xp1 scratch + output
    vmem_limit = max(4 * 1024 * 1024, 4 * resident_bytes)

    vmem = pl.BlockSpec(memory_space=pltpu.MemorySpace.VMEM)

    out = pl.pallas_call(
        _encoder_lstm_kernel,
        out_shape=jax.ShapeDtypeStruct((1, P), jnp.float32),
        in_specs=[vmem] * 7,
        out_specs=vmem,
        scratch_shapes=[
            pltpu.VMEM((seq_len, 4 * P), jnp.float32),
        ],
        compiler_params=pltpu.CompilerParams(vmem_limit_bytes=vmem_limit),
    )(x2d, wih1, whh1, b1, wih2, whh2, b2)

    if return_padded:
        return out                                       # (1, P); pad lanes == 0
    # hidden_n.reshape((n_features, embedding_dim)) in the PyTorch module.
    return out[:, :embedding_dim].reshape(n_features, embedding_dim)


# ----------------------------------------------------------------------------
# Deterministic parameter init (mirrors nn.LSTM's uniform(-1/sqrt(H), 1/sqrt(H))).
# ----------------------------------------------------------------------------
def init_params(key, n_features, embedding_dim):
    hidden_dim = 2 * embedding_dim
    k1 = 1.0 / jnp.sqrt(hidden_dim)
    k2 = 1.0 / jnp.sqrt(embedding_dim)
    keys = jax.random.split(key, 8)

    def u(k, shape, bound):
        return jax.random.uniform(k, shape, jnp.float32, -bound, bound)

    return {
        # layer 1 (rnn1): input n_features -> hidden_dim
        "w_ih1": u(keys[0], (4 * hidden_dim, n_features), k1),
        "w_hh1": u(keys[1], (4 * hidden_dim, hidden_dim), k1),
        "b_ih1": u(keys[2], (4 * hidden_dim,), k1),
        "b_hh1": u(keys[3], (4 * hidden_dim,), k1),
        # layer 2 (rnn2): hidden_dim -> embedding_dim
        "w_ih2": u(keys[4], (4 * embedding_dim, hidden_dim), k2),
        "w_hh2": u(keys[5], (4 * embedding_dim, embedding_dim), k2),
        "b_ih2": u(keys[6], (4 * embedding_dim,), k2),
        "b_hh2": u(keys[7], (4 * embedding_dim,), k2),
    }


# ----------------------------------------------------------------------------
# Pure-JAX f32 reference (same semantics as torch.nn.LSTM, batch_first, batch=1).
# ----------------------------------------------------------------------------
def _lstm_ref(xs, w_ih, w_hh, b_ih, b_hh):
    H = w_hh.shape[1]

    def cell(carry, x_t):
        h, c = carry
        gates = x_t @ w_ih.T + b_ih + h @ w_hh.T + b_hh
        i, f, g, o = jnp.split(gates, 4)
        i, f, o = jax.nn.sigmoid(i), jax.nn.sigmoid(f), jax.nn.sigmoid(o)
        g = jnp.tanh(g)
        c = f * c + i * g
        h = o * jnp.tanh(c)
        return (h, c), h

    (h_n, _), hs = lax.scan(cell, (jnp.zeros(H), jnp.zeros(H)), xs)
    return hs, h_n


def encoder_ref(x, params, *, seq_len, n_features, embedding_dim):
    xs = x.reshape(seq_len, n_features)
    hs1, _ = _lstm_ref(xs, params["w_ih1"], params["w_hh1"],
                       params["b_ih1"], params["b_hh1"])
    _, h_n = _lstm_ref(hs1, params["w_ih2"], params["w_hh2"],
                       params["b_ih2"], params["b_hh2"])
    return h_n.reshape(n_features, embedding_dim)


if __name__ == "__main__":
    # Small shapes consistent with the module's forward.  n_features must be 1
    # for hidden_n.reshape((n_features, embedding_dim)) to be valid (as in PyTorch).
    seq_len, n_features, embedding_dim = 8, 1, 32

    key = jax.random.PRNGKey(0)
    kx, kp = jax.random.split(key)
    x = jax.random.normal(kx, (seq_len, n_features), jnp.float32)
    params = init_params(kp, n_features, embedding_dim)

    run = functools.partial(encoder_with_lstm, seq_len=seq_len,
                            n_features=n_features, embedding_dim=embedding_dim)

    out_padded = jax.block_until_ready(run(x, params, return_padded=True))
    # Padded lanes of the carried hidden state must stay exactly zero
    # (self-consistency of the lane-padding scheme).
    assert bool(jnp.all(out_padded[:, embedding_dim:] == 0.0))

    out = out_padded[:, :embedding_dim].reshape(n_features, embedding_dim)
    ref = encoder_ref(x, params, seq_len=seq_len, n_features=n_features,
                      embedding_dim=embedding_dim)
    assert out.shape == (n_features, embedding_dim)
    # bf16 MXU operands (f32 accumulation): tolerance loosened vs the f32 run.
    assert jnp.allclose(out, ref, atol=2e-2, rtol=2e-2)

    print("KERNEL_OK")
</pallas_src>

<mosaic_0001>
module attributes {stable_mosaic.version = 11 : i64} {
  func.func @_encoder_lstm_kernel(%arg0: memref<8x1xf32, #tpu.memory_space<vmem>>, %arg1: memref<1x512xf32, #tpu.memory_space<vmem>>, %arg2: memref<128x512xbf16, #tpu.memory_space<vmem>>, %arg3: memref<1x512xf32, #tpu.memory_space<vmem>>, %arg4: memref<128x512xbf16, #tpu.memory_space<vmem>>, %arg5: memref<128x512xbf16, #tpu.memory_space<vmem>>, %arg6: memref<1x512xf32, #tpu.memory_space<vmem>>, %arg7: memref<1x128xf32, #tpu.memory_space<vmem>>, %arg8: memref<8x512xf32, #tpu.memory_space<vmem>>) attributes {dimension_semantics = [], scalar_prefetch = 0 : i64, scratch_operands = 1 : i64, tpu.core_type = #tpu.core_type<tc>} {
    %c0 = arith.constant 0 : index
    %c0_0 = arith.constant 0 : index
    %0 = vector.load %arg0[%c0, %c0_0] : memref<8x1xf32, #tpu.memory_space<vmem>>, vector<8x1xf32>
    %c0_1 = arith.constant 0 : index
    %c0_2 = arith.constant 0 : index
    %1 = vector.load %arg1[%c0_1, %c0_2] : memref<1x512xf32, #tpu.memory_space<vmem>>, vector<1x512xf32>
    %2 = vector.broadcast %0 : vector<8x1xf32> to vector<8x512xf32>
    %3 = vector.broadcast %1 : vector<1x512xf32> to vector<8x512xf32>
    %4 = arith.mulf %2, %3 : vector<8x512xf32>
    %c0_3 = arith.constant 0 : index
    %c0_4 = arith.constant 0 : index
    %5 = vector.load %arg3[%c0_3, %c0_4] : memref<1x512xf32, #tpu.memory_space<vmem>>, vector<1x512xf32>
    %6 = vector.broadcast %5 : vector<1x512xf32> to vector<8x512xf32>
    %7 = arith.addf %4, %6 : vector<8x512xf32>
    %c0_5 = arith.constant 0 : index
    %c0_6 = arith.constant 0 : index
    %8 = vector.load %arg8[%c0_5, %c0_6] : memref<8x512xf32, #tpu.memory_space<vmem>>, vector<8x512xf32>
    tpu.vector_store %arg8[%c0_5, %c0_6], %7 {strides = array<i32>} : memref<8x512xf32, #tpu.memory_space<vmem>>, vector<8x512xf32>,
    %cst = arith.constant 0.000000e+00 : f32
    %9 = vector.broadcast %cst : f32 to vector<1x128xf32>
    %cst_7 = arith.constant 0.000000e+00 : f32
    %10 = vector.broadcast %cst_7 : f32 to vector<1x128xf32>
    %cst_8 = arith.constant 0.000000e+00 : f32
    %11 = vector.broadcast %cst_8 : f32 to vector<1x128xf32>
    %cst_9 = arith.constant 0.000000e+00 : f32
    %12 = vector.broadcast %cst_9 : f32 to vector<1x128xf32>
    %c0_i32 = arith.constant 0 : i32
    %13 = arith.index_cast %c0_i32 : i32 to index
    %c0_10 = arith.constant 0 : index
    %14 = vector.load %arg8[%13, %c0_10] : memref<8x512xf32, #tpu.memory_space<vmem>>, vector<1x512xf32>
    %15 = arith.truncf %9 : vector<1x128xf32> to vector<1x128xbf16>
    %c0_11 = arith.constant 0 : index
    %c0_12 = arith.constant 0 : index
    %16 = vector.load %arg2[%c0_11, %c0_12] : memref<128x512xbf16, #tpu.memory_space<vmem>>, vector<128x512xbf16>
    %cst_13 = arith.constant dense<0.000000e+00> : vector<1x512xf32>
    %17 = tpu.matmul %15, %16, %cst_13 {dimension_numbers = #tpu.dot_dimension_numbers<[1], [0], [0], [1], [0, 0, 1, 1], [], []>} : vector<1x128xbf16>, vector<128x512xbf16>, vector<1x512xf32> -> vector<1x512xf32>
    %18 = arith.addf %14, %17 : vector<1x512xf32>
    %19 = vector.extract_strided_slice %18 {offsets = [0, 0], sizes = [1, 384], strides = [1, 1]} : vector<1x512xf32> to vector<1x384xf32>
    %20 = arith.negf %19 : vector<1x384xf32>
    %21 = math.exp %20 : vector<1x384xf32>
    %cst_14 = arith.constant 1.000000e+00 : f32
    %22 = vector.broadcast %cst_14 : f32 to vector<1x384xf32>
    %23 = arith.addf %22, %21 : vector<1x384xf32>
    %24 = arith.divf %22, %23 : vector<1x384xf32>
    %25 = vector.extract_strided_slice %18 {offsets = [0, 384], sizes = [1, 128], strides = [1, 1]} : vector<1x512xf32> to vector<1x128xf32>
    %26 = math.tanh %25 : vector<1x128xf32>
    %27 = vector.extract_strided_slice %24 {offsets = [0, 128], sizes = [1, 128], strides = [1, 1]} : vector<1x384xf32> to vector<1x128xf32>
    %28 = arith.mulf %27, %10 : vector<1x128xf32>
    %29 = vector.extract_strided_slice %24 {offsets = [0, 0], sizes = [1, 128], strides = [1, 1]} : vector<1x384xf32> to vector<1x128xf32>
    %30 = arith.mulf %29, %26 : vector<1x128xf32>
    %31 = arith.addf %28, %30 : vector<1x128xf32>
    %32 = vector.extract_strided_slice %24 {offsets = [0, 256], sizes = [1, 128], strides = [1, 1]} : vector<1x384xf32> to vector<1x128xf32>
    %33 = math.tanh %31 : vector<1x128xf32>
    %34 = arith.mulf %32, %33 : vector<1x128xf32>
    %35 = arith.truncf %34 : vector<1x128xf32> to vector<1x128xbf16>
    %c0_15 = arith.constant 0 : index
    %c0_16 = arith.constant 0 : index
    %36 = vector.load %arg4[%c0_15, %c0_16] : memref<128x512xbf16, #tpu.memory_space<vmem>>, vector<128x512xbf16>
    %cst_17 = arith.constant dense<0.000000e+00> : vector<1x512xf32>
    %37 = tpu.matmul %35, %36, %cst_17 {dimension_numbers = #tpu.dot_dimension_numbers<[1], [0], [0], [1], [0, 0, 1, 1], [], []>} : vector<1x128xbf16>, vector<128x512xbf16>, vector<1x512xf32> -> vector<1x512xf32>
    %38 = arith.truncf %11 : vector<1x128xf32> to vector<1x128xbf16>
    %c0_18 = arith.constant 0 : index
    %c0_19 = arith.constant 0 : index
    %39 = vector.load %arg5[%c0_18, %c0_19] : memref<128x512xbf16, #tpu.memory_space<vmem>>, vector<128x512xbf16>
    %cst_20 = arith.constant dense<0.000000e+00> : vector<1x512xf32>
    %40 = tpu.matmul %38, %39, %cst_20 {dimension_numbers = #tpu.dot_dimension_numbers<[1], [0], [0], [1], [0, 0, 1, 1], [], []>} : vector<1x128xbf16>, vector<128x512xbf16>, vector<1x512xf32> -> vector<1x512xf32>
    %41 = arith.addf %37, %40 : vector<1x512xf32>
    %c0_21 = arith.constant 0 : index
    %c0_22 = arith.constant 0 : index
    %42 = vector.load %arg6[%c0_21, %c0_22] : memref<1x512xf32, #tpu.memory_space<vmem>>, vector<1x512xf32>
    %43 = arith.addf %41, %42 : vector<1x512xf32>
    %44 = vector.extract_strided_slice %43 {offsets = [0, 0], sizes = [1, 384], strides = [1, 1]} : vector<1x512xf32> to vector<1x384xf32>
    %45 = arith.negf %44 : vector<1x384xf32>
    %46 = math.exp %45 : vector<1x384xf32>
    %cst_23 = arith.constant 1.000000e+00 : f32
    %47 = vector.broadcast %cst_23 : f32 to vector<1x384xf32>
    %48 = arith.addf %47, %46 : vector<1x384xf32>
    %49 = arith.divf %47, %48 : vector<1x384xf32>
    %50 = vector.extract_strided_slice %43 {offsets = [0, 384], sizes = [1, 128], strides = [1, 1]} : vector<1x512xf32> to vector<1x128xf32>
    %51 = math.tanh %50 : vector<1x128xf32>
    %52 = vector.extract_strided_slice %49 {offsets = [0, 128], sizes = [1, 128], strides = [1, 1]} : vector<1x384xf32> to vector<1x128xf32>
    %53 = arith.mulf %52, %12 : vector<1x128xf32>
    %54 = vector.extract_strided_slice %49 {offsets = [0, 0], sizes = [1, 128], strides = [1, 1]} : vector<1x384xf32> to vector<1x128xf32>
    %55 = arith.mulf %54, %51 : vector<1x128xf32>
    %56 = arith.addf %53, %55 : vector<1x128xf32>
    %57 = vector.extract_strided_slice %49 {offsets = [0, 256], sizes = [1, 128], strides = [1, 1]} : vector<1x384xf32> to vector<1x128xf32>
    %58 = math.tanh %56 : vector<1x128xf32>
    %59 = arith.mulf %57, %58 : vector<1x128xf32>
    %c1_i32 = arith.constant 1 : i32
    %60 = arith.index_cast %c1_i32 : i32 to index
    %c0_24 = arith.constant 0 : index
    %61 = vector.load %arg8[%60, %c0_24] : memref<8x512xf32, #tpu.memory_space<vmem>>, vector<1x512xf32>
    %62 = arith.truncf %34 : vector<1x128xf32> to vector<1x128xbf16>
    %c0_25 = arith.constant 0 : index
    %c0_26 = arith.constant 0 : index
    %63 = vector.load %arg2[%c0_25, %c0_26] : memref<128x512xbf16, #tpu.memory_space<vmem>>, vector<128x512xbf16>
    %cst_27 = arith.constant dense<0.000000e+00> : vector<1x512xf32>
    %64 = tpu.matmul %62, %63, %cst_27 {dimension_numbers = #tpu.dot_dimension_numbers<[1], [0], [0], [1], [0, 0, 1, 1], [], []>} : vector<1x128xbf16>, vector<128x512xbf16>, vector<1x512xf32> -> vector<1x512xf32>
    %65 = arith.addf %61, %64 : vector<1x512xf32>
    %66 = vector.extract_strided_slice %65 {offsets = [0, 0], sizes = [1, 384], strides = [1, 1]} : vector<1x512xf32> to vector<1x384xf32>
    %67 = arith.negf %66 : vector<1x384xf32>
    %68 = math.exp %67 : vector<1x384xf32>
    %cst_28 = arith.constant 1.000000e+00 : f32
    %69 = vector.broadcast %cst_28 : f32 to vector<1x384xf32>
    %70 = arith.addf %69, %68 : vector<1x384xf32>
    %71 = arith.divf %69, %70 : vector<1x384xf32>
    %72 = vector.extract_strided_slice %65 {offsets = [0, 384], sizes = [1, 128], strides = [1, 1]} : vector<1x512xf32> to vector<1x128xf32>
    %73 = math.tanh %72 : vector<1x128xf32>
    %74 = vector.extract_strided_slice %71 {offsets = [0, 128], sizes = [1, 128], strides = [1, 1]} : vector<1x384xf32> to vector<1x128xf32>
    %75 = arith.mulf %74, %31 : vector<1x128xf32>
    %76 = vector.extract_strided_slice %71 {offsets = [0, 0], sizes = [1, 128], strides = [1, 1]} : vector<1x384xf32> to vector<1x128xf32>
    %77 = arith.mulf %76, %73 : vector<1x128xf32>
    %78 = arith.addf %75, %77 : vector<1x128xf32>
    %79 = vector.extract_strided_slice %71 {offsets = [0, 256], sizes = [1, 128], strides = [1, 1]} : vector<1x384xf32> to vector<1x128xf32>
    %80 = math.tanh %78 : vector<1x128xf32>
    %81 = arith.mulf %79, %80 : vector<1x128xf32>
    %82 = arith.truncf %81 : vector<1x128xf32> to vector<1x128xbf16>
    %c0_29 = arith.constant 0 : index
    %c0_30 = arith.constant 0 : index
    %83 = vector.load %arg4[%c0_29, %c0_30] : memref<128x512xbf16, #tpu.memory_space<vmem>>, vector<128x512xbf16>
    %cst_31 = arith.constant dense<0.000000e+00> : vector<1x512xf32>
    %84 = tpu.matmul %82, %83, %cst_31 {dimension_numbers = #tpu.dot_dimension_numbers<[1], [0], [0], [1], [0, 0, 1, 1], [], []>} : vector<1x128xbf16>, vector<128x512xbf16>, vector<1x512xf32> -> vector<1x512xf32>
    %85 = arith.truncf %59 : vector<1x128xf32> to vector<1x128xbf16>
    %c0_32 = arith.constant 0 : index
    %c0_33 = arith.constant 0 : index
    %86 = vector.load %arg5[%c0_32, %c0_33] : memref<128x512xbf16, #tpu.memory_space<vmem>>, vector<128x512xbf16>
    %cst_34 = arith.constant dense<0.000000e+00> : vector<1x512xf32>
    %87 = tpu.matmul %85, %86, %cst_34 {dimension_numbers = #tpu.dot_dimension_numbers<[1], [0], [0], [1], [0, 0, 1, 1], [], []>} : vector<1x128xbf16>, vector<128x512xbf16>, vector<1x512xf32> -> vector<1x512xf32>
    %88 = arith.addf %84, %87 : vector<1x512xf32>
    %c0_35 = arith.constant 0 : index
    %c0_36 = arith.constant 0 : index
    %89 = vector.load %arg6[%c0_35, %c0_36] : memref<1x512xf32, #tpu.memory_space<vmem>>, vector<1x512xf32>
    %90 = arith.addf %88, %89 : vector<1x512xf32>
    %91 = vector.extract_strided_slice %90 {offsets = [0, 0], sizes = [1, 384], strides = [1, 1]} : vector<1x512xf32> to vector<1x384xf32>
    %92 = arith.negf %91 : vector<1x384xf32>
    %93 = math.exp %92 : vector<1x384xf32>
    %cst_37 = arith.constant 1.000000e+00 : f32
    %94 = vector.broadcast %cst_37 : f32 to vector<1x384xf32>
    %95 = arith.addf %94, %93 : vector<1x384xf32>
    %96 = arith.divf %94, %95 : vector<1x384xf32>
    %97 = vector.extract_strided_slice %90 {offsets = [0, 384], sizes = [1, 128], strides = [1, 1]} : vector<1x512xf32> to vector<1x128xf32>
    %98 = math.tanh %97 : vector<1x128xf32>
    %99 = vector.extract_strided_slice %96 {offsets = [0, 128], sizes = [1, 128], strides = [1, 1]} : vector<1x384xf32> to vector<1x128xf32>
    %100 = arith.mulf %99, %56 : vector<1x128xf32>
    %101 = vector.extract_strided_slice %96 {offsets = [0, 0], sizes = [1, 128], strides = [1, 1]} : vector<1x384xf32> to vector<1x128xf32>
    %102 = arith.mulf %101, %98 : vector<1x128xf32>
    %103 = arith.addf %100, %102 : vector<1x128xf32>
    %104 = vector.extract_strided_slice %96 {offsets = [0, 256], sizes = [1, 128], strides = [1, 1]} : vector<1x384xf32> to vector<1x128xf32>
    %105 = math.tanh %103 : vector<1x128xf32>
    %106 = arith.mulf %104, %105 : vector<1x128xf32>
    %c2_i32 = arith.constant 2 : i32
    %107 = arith.index_cast %c2_i32 : i32 to index
    %c0_38 = arith.constant 0 : index
    %108 = vector.load %arg8[%107, %c0_38] : memref<8x512xf32, #tpu.memory_space<vmem>>, vector<1x512xf32>
    %109 = arith.truncf %81 : vector<1x128xf32> to vector<1x128xbf16>
    %c0_39 = arith.constant 0 : index
    %c0_40 = arith.constant 0 : index
    %110 = vector.load %arg2[%c0_39, %c0_40] : memref<128x512xbf16, #tpu.memory_space<vmem>>, vector<128x512xbf16>
    %cst_41 = arith.constant dense<0.000000e+00> : vector<1x512xf32>
    %111 = tpu.matmul %109, %110, %cst_41 {dimension_numbers = #tpu.dot_dimension_numbers<[1], [0], [0], [1], [0, 0, 1, 1], [], []>} : vector<1x128xbf16>, vector<128x512xbf16>, vector<1x512xf32> -> vector<1x512xf32>
    %112 = arith.addf %108, %111 : vector<1x512xf32>
    %113 = vector.extract_strided_slice %112 {offsets = [0, 0], sizes = [1, 384], strides = [1, 1]} : vector<1x512xf32> to vector<1x384xf32>
    %114 = arith.negf %113 : vector<1x384xf32>
    %115 = math.exp %114 : vector<1x384xf32>
    %cst_42 = arith.constant 1.000000e+00 : f32
    %116 = vector.broadcast %cst_42 : f32 to vector<1x384xf32>
    %117 = arith.addf %116, %115 : vector<1x384xf32>
    %118 = arith.divf %116, %117 : vector<1x384xf32>
    %119 = vector.extract_strided_slice %112 {offsets = [0, 384], sizes = [1, 128], strides = [1, 1]} : vector<1x512xf32> to vector<1x128xf32>
    %120 = math.tanh %119 : vector<1x128xf32>
    %121 = vector.extract_strided_slice %118 {offsets = [0, 128], sizes = [1, 128], strides = [1, 1]} : vector<1x384xf32> to vector<1x128xf32>
    %122 = arith.mulf %121, %78 : vector<1x128xf32>
    %123 = vector.extract_strided_slice %118 {offsets = [0, 0], sizes = [1, 128], strides = [1, 1]} : vector<1x384xf32> to vector<1x128xf32>
    %124 = arith.mulf %123, %120 : vector<1x128xf32>
    %125 = arith.addf %122, %124 : vector<1x128xf32>
    %126 = vector.extract_strided_slice %118 {offsets = [0, 256], sizes = [1, 128], strides = [1, 1]} : vector<1x384xf32> to vector<1x128xf32>
    %127 = math.tanh %125 : vector<1x128xf32>
    %128 = arith.mulf %126, %127 : vector<1x128xf32>
    %129 = arith.truncf %128 : vector<1x128xf32> to vector<1x128xbf16>
    %c0_43 = arith.constant 0 : index
    %c0_44 = arith.constant 0 : index
    %130 = vector.load %arg4[%c0_43, %c0_44] : memref<128x512xbf16, #tpu.memory_space<vmem>>, vector<128x512xbf16>
    %cst_45 = arith.constant dense<0.000000e+00> : vector<1x512xf32>
    %131 = tpu.matmul %129, %130, %cst_45 {dimension_numbers = #tpu.dot_dimension_numbers<[1], [0], [0], [1], [0, 0, 1, 1], [], []>} : vector<1x128xbf16>, vector<128x512xbf16>, vector<1x512xf32> -> vector<1x512xf32>
    %132 = arith.truncf %106 : vector<1x128xf32> to vector<1x128xbf16>
    %c0_46 = arith.constant 0 : index
    %c0_47 = arith.constant 0 : index
    %133 = vector.load %arg5[%c0_46, %c0_47] : memref<128x512xbf16, #tpu.memory_space<vmem>>, vector<128x512xbf16>
    %cst_48 = arith.constant dense<0.000000e+00> : vector<1x512xf32>
    %134 = tpu.matmul %132, %133, %cst_48 {dimension_numbers = #tpu.dot_dimension_numbers<[1], [0], [0], [1], [0, 0, 1, 1], [], []>} : vector<1x128xbf16>, vector<128x512xbf16>, vector<1x512xf32> -> vector<1x512xf32>
    %135 = arith.addf %131, %134 : vector<1x512xf32>
    %c0_49 = arith.constant 0 : index
    %c0_50 = arith.constant 0 : index
    %136 = vector.load %arg6[%c0_49, %c0_50] : memref<1x512xf32, #tpu.memory_space<vmem>>, vector<1x512xf32>
    %137 = arith.addf %135, %136 : vector<1x512xf32>
    %138 = vector.extract_strided_slice %137 {offsets = [0, 0], sizes = [1, 384], strides = [1, 1]} : vector<1x512xf32> to vector<1x384xf32>
    %139 = arith.negf %138 : vector<1x384xf32>
    %140 = math.exp %139 : vector<1x384xf32>
    %cst_51 = arith.constant 1.000000e+00 : f32
    %141 = vector.broadcast %cst_51 : f32 to vector<1x384xf32>
    %142 = arith.addf %141, %140 : vector<1x384xf32>
    %143 = arith.divf %141, %142 : vector<1x384xf32>
    %144 = vector.extract_strided_slice %137 {offsets = [0, 384], sizes = [1, 128], strides = [1, 1]} : vector<1x512xf32> to vector<1x128xf32>
    %145 = math.tanh %144 : vector<1x128xf32>
    %146 = vector.extract_strided_slice %143 {offsets = [0, 128], sizes = [1, 128], strides = [1, 1]} : vector<1x384xf32> to vector<1x128xf32>
    %147 = arith.mulf %146, %103 : vector<1x128xf32>
    %148 = vector.extract_strided_slice %143 {offsets = [0, 0], sizes = [1, 128], strides = [1, 1]} : vector<1x384xf32> to vector<1x128xf32>
    %149 = arith.mulf %148, %145 : vector<1x128xf32>
    %150 = arith.addf %147, %149 : vector<1x128xf32>
    %151 = vector.extract_strided_slice %143 {offsets = [0, 256], sizes = [1, 128], strides = [1, 1]} : vector<1x384xf32> to vector<1x128xf32>
    %152 = math.tanh %150 : vector<1x128xf32>
    %153 = arith.mulf %151, %152 : vector<1x128xf32>
    %c3_i32 = arith.constant 3 : i32
    %154 = arith.index_cast %c3_i32 : i32 to index
    %c0_52 = arith.constant 0 : index
    %155 = vector.load %arg8[%154, %c0_52] : memref<8x512xf32, #tpu.memory_space<vmem>>, vector<1x512xf32>
    %156 = arith.truncf %128 : vector<1x128xf32> to vector<1x128xbf16>
    %c0_53 = arith.constant 0 : index
    %c0_54 = arith.constant 0 : index
    %157 = vector.load %arg2[%c0_53, %c0_54] : memref<128x512xbf16, #tpu.memory_space<vmem>>, vector<128x512xbf16>
    %cst_55 = arith.constant dense<0.000000e+00> : vector<1x512xf32>
    %158 = tpu.matmul %156, %157, %cst_55 {dimension_numbers = #tpu.dot_dimension_numbers<[1], [0], [0], [1], [0, 0, 1, 1], [], []>} : vector<1x128xbf16>, vector<128x512xbf16>, vector<1x512xf32> -> vector<1x512xf32>
    %159 = arith.addf %155, %158 : vector<1x512xf32>
    %160 = vector.extract_strided_slice %159 {offsets = [0, 0], sizes = [1, 384], strides = [1, 1]} : vector<1x512xf32> to vector<1x384xf32>
    %161 = arith.negf %160 : vector<1x384xf32>
    %162 = math.exp %161 : vector<1x384xf32>
    %cst_56 = arith.constant 1.000000e+00 : f32
    %163 = vector.broadcast %cst_56 : f32 to vector<1x384xf32>
    %164 = arith.addf %163, %162 : vector<1x384xf32>
    %165 = arith.divf %163, %164 : vector<1x384xf32>
    %166 = vector.extract_strided_slice %159 {offsets = [0, 384], sizes = [1, 128], strides = [1, 1]} : vector<1x512xf32> to vector<1x128xf32>
    %167 = math.tanh %166 : vector<1x128xf32>
    %168 = vector.extract_strided_slice %165 {offsets = [0, 128], sizes = [1, 128], strides = [1, 1]} : vector<1x384xf32> to vector<1x128xf32>
    %169 = arith.mulf %168, %125 : vector<1x128xf32>
    %170 = vector.extract_strided_slice %165 {offsets = [0, 0], sizes = [1, 128], strides = [1, 1]} : vector<1x384xf32> to vector<1x128xf32>
    %171 = arith.mulf %170, %167 : vector<1x128xf32>
    %172 = arith.addf %169, %171 : vector<1x128xf32>
    %173 = vector.extract_strided_slice %165 {offsets = [0, 256], sizes = [1, 128], strides = [1, 1]} : vector<1x384xf32> to vector<1x128xf32>
    %174 = math.tanh %172 : vector<1x128xf32>
    %175 = arith.mulf %173, %174 : vector<1x128xf32>
    %176 = arith.truncf %175 : vector<1x128xf32> to vector<1x128xbf16>
    %c0_57 = arith.constant 0 : index
    %c0_58 = arith.constant 0 : index
    %177 = vector.load %arg4[%c0_57, %c0_58] : memref<128x512xbf16, #tpu.memory_space<vmem>>, vector<128x512xbf16>
    %cst_59 = arith.constant dense<0.000000e+00> : vector<1x512xf32>
    %178 = tpu.matmul %176, %177, %cst_59 {dimension_numbers = #tpu.dot_dimension_numbers<[1], [0], [0], [1], [0, 0, 1, 1], [], []>} : vector<1x128xbf16>, vector<128x512xbf16>, vector<1x512xf32> -> vector<1x512xf32>
    %179 = arith.truncf %153 : vector<1x128xf32> to vector<1x128xbf16>
    %c0_60 = arith.constant 0 : index
    %c0_61 = arith.constant 0 : index
    %180 = vector.load %arg5[%c0_60, %c0_61] : memref<128x512xbf16, #tpu.memory_space<vmem>>, vector<128x512xbf16>
    %cst_62 = arith.constant dense<0.000000e+00> : vector<1x512xf32>
    %181 = tpu.matmul %179, %180, %cst_62 {dimension_numbers = #tpu.dot_dimension_numbers<[1], [0], [0], [1], [0, 0, 1, 1], [], []>} : vector<1x128xbf16>, vector<128x512xbf16>, vector<1x512xf32> -> vector<1x512xf32>
    %182 = arith.addf %178, %181 : vector<1x512xf32>
    %c0_63 = arith.constant 0 : index
    %c0_64 = arith.constant 0 : index
    %183 = vector.load %arg6[%c0_63, %c0_64] : memref<1x512xf32, #tpu.memory_space<vmem>>, vector<1x512xf32>
    %184 = arith.addf %182, %183 : vector<1x512xf32>
    %185 = vector.extract_strided_slice %184 {offsets = [0, 0], sizes = [1, 384], strides = [1, 1]} : vector<1x512xf32> to vector<1x384xf32>
    %186 = arith.negf %185 : vector<1x384xf32>
    %187 = math.exp %186 : vector<1x384xf32>
    %cst_65 = arith.constant 1.000000e+00 : f32
    %188 = vector.broadcast %cst_65 : f32 to vector<1x384xf32>
    %189 = arith.addf %188, %187 : vector<1x384xf32>
    %190 = arith.divf %188, %189 : vector<1x384xf32>
    %191 = vector.extract_strided_slice %184 {offsets = [0, 384], sizes = [1, 128], strides = [1, 1]} : vector<1x512xf32> to vector<1x128xf32>
    %192 = math.tanh %191 : vector<1x128xf32>
    %193 = vector.extract_strided_slice %190 {offsets = [0, 128], sizes = [1, 128], strides = [1, 1]} : vector<1x384xf32> to vector<1x128xf32>
    %194 = arith.mulf %193, %150 : vector<1x128xf32>
    %195 = vector.extract_strided_slice %190 {offsets = [0, 0], sizes = [1, 128], strides = [1, 1]} : vector<1x384xf32> to vector<1x128xf32>
    %196 = arith.mulf %195, %192 : vector<1x128xf32>
    %197 = arith.addf %194, %196 : vector<1x128xf32>
    %198 = vector.extract_strided_slice %190 {offsets = [0, 256], sizes = [1, 128], strides = [1, 1]} : vector<1x384xf32> to vector<1x128xf32>
    %199 = math.tanh %197 : vector<1x128xf32>
    %200 = arith.mulf %198, %199 : vector<1x128xf32>
    %c4_i32 = arith.constant 4 : i32
    %201 = arith.index_cast %c4_i32 : i32 to index
    %c0_66 = arith.constant 0 : index
    %202 = vector.load %arg8[%201, %c0_66] : memref<8x512xf32, #tpu.memory_space<vmem>>, vector<1x512xf32>
    %203 = arith.truncf %175 : vector<1x128xf32> to vector<1x128xbf16>
    %c0_67 = arith.constant 0 : index
    %c0_68 = arith.constant 0 : index
    %204 = vector.load %arg2[%c0_67, %c0_68] : memref<128x512xbf16, #tpu.memory_space<vmem>>, vector<128x512xbf16>
    %cst_69 = arith.constant dense<0.000000e+00> : vector<1x512xf32>
    %205 = tpu.matmul %203, %204, %cst_69 {dimension_numbers = #tpu.dot_dimension_numbers<[1], [0], [0], [1], [0, 0, 1, 1], [], []>} : vector<1x128xbf16>, vector<128x512xbf16>, vector<1x512xf32> -> vector<1x512xf32>
    %206 = arith.addf %202, %205 : vector<1x512xf32>
    %207 = vector.extract_strided_slice %206 {offsets = [0, 0], sizes = [1, 384], strides = [1, 1]} : vector<1x512xf32> to vector<1x384xf32>
    %208 = arith.negf %207 : vector<1x384xf32>
    %209 = math.exp %208 : vector<1x384xf32>
    %cst_70 = arith.constant 1.000000e+00 : f32
    %210 = vector.broadcast %cst_70 : f32 to vector<1x384xf32>
    %211 = arith.addf %210, %209 : vector<1x384xf32>
    %212 = arith.divf %210, %211 : vector<1x384xf32>
    %213 = vector.extract_strided_slice %206 {offsets = [0, 384], sizes = [1, 128], strides = [1, 1]} : vector<1x512xf32> to vector<1x128xf32>
    %214 = math.tanh %213 : vector<1x128xf32>
    %215 = vector.extract_strided_slice %212 {offsets = [0, 128], sizes = [1, 128], strides = [1, 1]} : vector<1x384xf32> to vector<1x128xf32>
    %216 = arith.mulf %215, %172 : vector<1x128xf32>
    %217 = vector.extract_strided_slice %212 {offsets = [0, 0], sizes = [1, 128], strides = [1, 1]} : vector<1x384xf32> to vector<1x128xf32>
    %218 = arith.mulf %217, %214 : vector<1x128xf32>
    %219 = arith.addf %216, %218 : vector<1x128xf32>
    %220 = vector.extract_strided_slice %212 {offsets = [0, 256], sizes = [1, 128], strides = [1, 1]} : vector<1x384xf32> to vector<1x128xf32>
    %221 = math.tanh %219 : vector<1x128xf32>
    %222 = arith.mulf %220, %221 : vector<1x128xf32>
    %223 = arith.truncf %222 : vector<1x128xf32> to vector<1x128xbf16>
    %c0_71 = arith.constant 0 : index
    %c0_72 = arith.constant 0 : index
    %224 = vector.load %arg4[%c0_71, %c0_72] : memref<128x512xbf16, #tpu.memory_space<vmem>>, vector<128x512xbf16>
    %cst_73 = arith.constant dense<0.000000e+00> : vector<1x512xf32>
    %225 = tpu.matmul %223, %224, %cst_73 {dimension_numbers = #tpu.dot_dimension_numbers<[1], [0], [0], [1], [0, 0, 1, 1], [], []>} : vector<1x128xbf16>, vector<128x512xbf16>, vector<1x512xf32> -> vector<1x512xf32>
    %226 = arith.truncf %200 : vector<1x128xf32> to vector<1x128xbf16>
    %c0_74 = arith.constant 0 : index
    %c0_75 = arith.constant 0 : index
    %227 = vector.load %arg5[%c0_74, %c0_75] : memref<128x512xbf16, #tpu.memory_space<vmem>>, vector<128x512xbf16>
    %cst_76 = arith.constant dense<0.000000e+00> : vector<1x512xf32>
    %228 = tpu.matmul %226, %227, %cst_76 {dimension_numbers = #tpu.dot_dimension_numbers<[1], [0], [0], [1], [0, 0, 1, 1], [], []>} : vector<1x128xbf16>, vector<128x512xbf16>, vector<1x512xf32> -> vector<1x512xf32>
    %229 = arith.addf %225, %228 : vector<1x512xf32>
    %c0_77 = arith.constant 0 : index
    %c0_78 = arith.constant 0 : index
    %230 = vector.load %arg6[%c0_77, %c0_78] : memref<1x512xf32, #tpu.memory_space<vmem>>, vector<1x512xf32>
    %231 = arith.addf %229, %230 : vector<1x512xf32>
    %232 = vector.extract_strided_slice %231 {offsets = [0, 0], sizes = [1, 384], strides = [1, 1]} : vector<1x512xf32> to vector<1x384xf32>
    %233 = arith.negf %232 : vector<1x384xf32>
    %234 = math.exp %233 : vector<1x384xf32>
    %cst_79 = arith.constant 1.000000e+00 : f32
    %235 = vector.broadcast %cst_79 : f32 to vector<1x384xf32>
    %236 = arith.addf %235, %234 : vector<1x384xf32>
    %237 = arith.divf %235, %236 : vector<1x384xf32>
    %238 = vector.extract_strided_slice %231 {offsets = [0, 384], sizes = [1, 128], strides = [1, 1]} : vector<1x512xf32> to vector<1x128xf32>
    %239 = math.tanh %238 : vector<1x128xf32>
    %240 = vector.extract_strided_slice %237 {offsets = [0, 128], sizes = [1, 128], strides = [1, 1]} : vector<1x384xf32> to vector<1x128xf32>
    %241 = arith.mulf %240, %197 : vector<1x128xf32>
    %242 = vector.extract_strided_slice %237 {offsets = [0, 0], sizes = [1, 128], strides = [1, 1]} : vector<1x384xf32> to vector<1x128xf32>
    %243 = arith.mulf %242, %239 : vector<1x128xf32>
    %244 = arith.addf %241, %243 : vector<1x128xf32>
    %245 = vector.extract_strided_slice %237 {offsets = [0, 256], sizes = [1, 128], strides = [1, 1]} : vector<1x384xf32> to vector<1x128xf32>
    %246 = math.tanh %244 : vector<1x128xf32>
    %247 = arith.mulf %245, %246 : vector<1x128xf32>
    %c5_i32 = arith.constant 5 : i32
    %248 = arith.index_cast %c5_i32 : i32 to index
    %c0_80 = arith.constant 0 : index
    %249 = vector.load %arg8[%248, %c0_80] : memref<8x512xf32, #tpu.memory_space<vmem>>, vector<1x512xf32>
    %250 = arith.truncf %222 : vector<1x128xf32> to vector<1x128xbf16>
    %c0_81 = arith.constant 0 : index
    %c0_82 = arith.constant 0 : index
    %251 = vector.load %arg2[%c0_81, %c0_82] : memref<128x512xbf16, #tpu.memory_space<vmem>>, vector<128x512xbf16>
    %cst_83 = arith.constant dense<0.000000e+00> : vector<1x512xf32>
    %252 = tpu.matmul %250, %251, %cst_83 {dimension_numbers = #tpu.dot_dimension_numbers<[1], [0], [0], [1], [0, 0, 1, 1], [], []>} : vector<1x128xbf16>, vector<128x512xbf16>, vector<1x512xf32> -> vector<1x512xf32>
    %253 = arith.addf %249, %252 : vector<1x512xf32>
    %254 = vector.extract_strided_slice %253 {offsets = [0, 0], sizes = [1, 384], strides = [1, 1]} : vector<1x512xf32> to vector<1x384xf32>
    %255 = arith.negf %254 : vector<1x384xf32>
    %256 = math.exp %255 : vector<1x384xf32>
    %cst_84 = arith.constant 1.000000e+00 : f32
    %257 = vector.broadcast %cst_84 : f32 to vector<1x384xf32>
    %258 = arith.addf %257, %256 : vector<1x384xf32>
    %259 = arith.divf %257, %258 : vector<1x384xf32>
    %260 = vector.extract_strided_slice %253 {offsets = [0, 384], sizes = [1, 128], strides = [1, 1]} : vector<1x512xf32> to vector<1x128xf32>
    %261 = math.tanh %260 : vector<1x128xf32>
    %262 = vector.extract_strided_slice %259 {offsets = [0, 128], sizes = [1, 128], strides = [1, 1]} : vector<1x384xf32> to vector<1x128xf32>
    %263 = arith.mulf %262, %219 : vector<1x128xf32>
    %264 = vector.extract_strided_slice %259 {offsets = [0, 0], sizes = [1, 128], strides = [1, 1]} : vector<1x384xf32> to vector<1x128xf32>
    %265 = arith.mulf %264, %261 : vector<1x128xf32>
    %266 = arith.addf %263, %265 : vector<1x128xf32>
    %267 = vector.extract_strided_slice %259 {offsets = [0, 256], sizes = [1, 128], strides = [1, 1]} : vector<1x384xf32> to vector<1x128xf32>
    %268 = math.tanh %266 : vector<1x128xf32>
    %269 = arith.mulf %267, %268 : vector<1x128xf32>
    %270 = arith.truncf %269 : vector<1x128xf32> to vector<1x128xbf16>
    %c0_85 = arith.constant 0 : index
    %c0_86 = arith.constant 0 : index
    %271 = vector.load %arg4[%c0_85, %c0_86] : memref<128x512xbf16, #tpu.memory_space<vmem>>, vector<128x512xbf16>
    %cst_87 = arith.constant dense<0.000000e+00> : vector<1x512xf32>
    %272 = tpu.matmul %270, %271, %cst_87 {dimension_numbers = #tpu.dot_dimension_numbers<[1], [0], [0], [1], [0, 0, 1, 1], [], []>} : vector<1x128xbf16>, vector<128x512xbf16>, vector<1x512xf32> -> vector<1x512xf32>
    %273 = arith.truncf %247 : vector<1x128xf32> to vector<1x128xbf16>
    %c0_88 = arith.constant 0 : index
    %c0_89 = arith.constant 0 : index
    %274 = vector.load %arg5[%c0_88, %c0_89] : memref<128x512xbf16, #tpu.memory_space<vmem>>, vector<128x512xbf16>
    %cst_90 = arith.constant dense<0.000000e+00> : vector<1x512xf32>
    %275 = tpu.matmul %273, %274, %cst_90 {dimension_numbers = #tpu.dot_dimension_numbers<[1], [0], [0], [1], [0, 0, 1, 1], [], []>} : vector<1x128xbf16>, vector<128x512xbf16>, vector<1x512xf32> -> vector<1x512xf32>
    %276 = arith.addf %272, %275 : vector<1x512xf32>
    %c0_91 = arith.constant 0 : index
    %c0_92 = arith.constant 0 : index
    %277 = vector.load %arg6[%c0_91, %c0_92] : memref<1x512xf32, #tpu.memory_space<vmem>>, vector<1x512xf32>
    %278 = arith.addf %276, %277 : vector<1x512xf32>
    %279 = vector.extract_strided_slice %278 {offsets = [0, 0], sizes = [1, 384], strides = [1, 1]} : vector<1x512xf32> to vector<1x384xf32>
    %280 = arith.negf %279 : vector<1x384xf32>
    %281 = math.exp %280 : vector<1x384xf32>
    %cst_93 = arith.constant 1.000000e+00 : f32
    %282 = vector.broadcast %cst_93 : f32 to vector<1x384xf32>
    %283 = arith.addf %282, %281 : vector<1x384xf32>
    %284 = arith.divf %282, %283 : vector<1x384xf32>
    %285 = vector.extract_strided_slice %278 {offsets = [0, 384], sizes = [1, 128], strides = [1, 1]} : vector<1x512xf32> to vector<1x128xf32>
    %286 = math.tanh %285 : vector<1x128xf32>
    %287 = vector.extract_strided_slice %284 {offsets = [0, 128], sizes = [1, 128], strides = [1, 1]} : vector<1x384xf32> to vector<1x128xf32>
    %288 = arith.mulf %287, %244 : vector<1x128xf32>
    %289 = vector.extract_strided_slice %284 {offsets = [0, 0], sizes = [1, 128], strides = [1, 1]} : vector<1x384xf32> to vector<1x128xf32>
    %290 = arith.mulf %289, %286 : vector<1x128xf32>
    %291 = arith.addf %288, %290 : vector<1x128xf32>
    %292 = vector.extract_strided_slice %284 {offsets = [0, 256], sizes = [1, 128], strides = [1, 1]} : vector<1x384xf32> to vector<1x128xf32>
    %293 = math.tanh %291 : vector<1x128xf32>
    %294 = arith.mulf %292, %293 : vector<1x128xf32>
    %c6_i32 = arith.constant 6 : i32
    %295 = arith.index_cast %c6_i32 : i32 to index
    %c0_94 = arith.constant 0 : index
    %296 = vector.load %arg8[%295, %c0_94] : memref<8x512xf32, #tpu.memory_space<vmem>>, vector<1x512xf32>
    %297 = arith.truncf %269 : vector<1x128xf32> to vector<1x128xbf16>
    %c0_95 = arith.constant 0 : index
    %c0_96 = arith.constant 0 : index
    %298 = vector.load %arg2[%c0_95, %c0_96] : memref<128x512xbf16, #tpu.memory_space<vmem>>, vector<128x512xbf16>
    %cst_97 = arith.constant dense<0.000000e+00> : vector<1x512xf32>
    %299 = tpu.matmul %297, %298, %cst_97 {dimension_numbers = #tpu.dot_dimension_numbers<[1], [0], [0], [1], [0, 0, 1, 1], [], []>} : vector<1x128xbf16>, vector<128x512xbf16>, vector<1x512xf32> -> vector<1x512xf32>
    %300 = arith.addf %296, %299 : vector<1x512xf32>
    %301 = vector.extract_strided_slice %300 {offsets = [0, 0], sizes = [1, 384], strides = [1, 1]} : vector<1x512xf32> to vector<1x384xf32>
    %302 = arith.negf %301 : vector<1x384xf32>
    %303 = math.exp %302 : vector<1x384xf32>
    %cst_98 = arith.constant 1.000000e+00 : f32
    %304 = vector.broadcast %cst_98 : f32 to vector<1x384xf32>
    %305 = arith.addf %304, %303 : vector<1x384xf32>
    %306 = arith.divf %304, %305 : vector<1x384xf32>
    %307 = vector.extract_strided_slice %300 {offsets = [0, 384], sizes = [1, 128], strides = [1, 1]} : vector<1x512xf32> to vector<1x128xf32>
    %308 = math.tanh %307 : vector<1x128xf32>
    %309 = vector.extract_strided_slice %306 {offsets = [0, 128], sizes = [1, 128], strides = [1, 1]} : vector<1x384xf32> to vector<1x128xf32>
    %310 = arith.mulf %309, %266 : vector<1x128xf32>
    %311 = vector.extract_strided_slice %306 {offsets = [0, 0], sizes = [1, 128], strides = [1, 1]} : vector<1x384xf32> to vector<1x128xf32>
    %312 = arith.mulf %311, %308 : vector<1x128xf32>
    %313 = arith.addf %310, %312 : vector<1x128xf32>
    %314 = vector.extract_strided_slice %306 {offsets = [0, 256], sizes = [1, 128], strides = [1, 1]} : vector<1x384xf32> to vector<1x128xf32>
    %315 = math.tanh %313 : vector<1x128xf32>
    %316 = arith.mulf %314, %315 : vector<1x128xf32>
    %317 = arith.truncf %316 : vector<1x128xf32> to vector<1x128xbf16>
    %c0_99 = arith.constant 0 : index
    %c0_100 = arith.constant 0 : index
    %318 = vector.load %arg4[%c0_99, %c0_100] : memref<128x512xbf16, #tpu.memory_space<vmem>>, vector<128x512xbf16>
    %cst_101 = arith.constant dense<0.000000e+00> : vector<1x512xf32>
    %319 = tpu.matmul %317, %318, %cst_101 {dimension_numbers = #tpu.dot_dimension_numbers<[1], [0], [0], [1], [0, 0, 1, 1], [], []>} : vector<1x128xbf16>, vector<128x512xbf16>, vector<1x512xf32> -> vector<1x512xf32>
    %320 = arith.truncf %294 : vector<1x128xf32> to vector<1x128xbf16>
    %c0_102 = arith.constant 0 : index
    %c0_103 = arith.constant 0 : index
    %321 = vector.load %arg5[%c0_102, %c0_103] : memref<128x512xbf16, #tpu.memory_space<vmem>>, vector<128x512xbf16>
    %cst_104 = arith.constant dense<0.000000e+00> : vector<1x512xf32>
    %322 = tpu.matmul %320, %321, %cst_104 {dimension_numbers = #tpu.dot_dimension_numbers<[1], [0], [0], [1], [0, 0, 1, 1], [], []>} : vector<1x128xbf16>, vector<128x512xbf16>, vector<1x512xf32> -> vector<1x512xf32>
    %323 = arith.addf %319, %322 : vector<1x512xf32>
    %c0_105 = arith.constant 0 : index
    %c0_106 = arith.constant 0 : index
    %324 = vector.load %arg6[%c0_105, %c0_106] : memref<1x512xf32, #tpu.memory_space<vmem>>, vector<1x512xf32>
    %325 = arith.addf %323, %324 : vector<1x512xf32>
    %326 = vector.extract_strided_slice %325 {offsets = [0, 0], sizes = [1, 384], strides = [1, 1]} : vector<1x512xf32> to vector<1x384xf32>
    %327 = arith.negf %326 : vector<1x384xf32>
    %328 = math.exp %327 : vector<1x384xf32>
    %cst_107 = arith.constant 1.000000e+00 : f32
    %329 = vector.broadcast %cst_107 : f32 to vector<1x384xf32>
    %330 = arith.addf %329, %328 : vector<1x384xf32>
    %331 = arith.divf %329, %330 : vector<1x384xf32>
    %332 = vector.extract_strided_slice %325 {offsets = [0, 384], sizes = [1, 128], strides = [1, 1]} : vector<1x512xf32> to vector<1x128xf32>
    %333 = math.tanh %332 : vector<1x128xf32>
    %334 = vector.extract_strided_slice %331 {offsets = [0, 128], sizes = [1, 128], strides = [1, 1]} : vector<1x384xf32> to vector<1x128xf32>
    %335 = arith.mulf %334, %291 : vector<1x128xf32>
    %336 = vector.extract_strided_slice %331 {offsets = [0, 0], sizes = [1, 128], strides = [1, 1]} : vector<1x384xf32> to vector<1x128xf32>
    %337 = arith.mulf %336, %333 : vector<1x128xf32>
    %338 = arith.addf %335, %337 : vector<1x128xf32>
    %339 = vector.extract_strided_slice %331 {offsets = [0, 256], sizes = [1, 128], strides = [1, 1]} : vector<1x384xf32> to vector<1x128xf32>
    %340 = math.tanh %338 : vector<1x128xf32>
    %341 = arith.mulf %339, %340 : vector<1x128xf32>
    %c7_i32 = arith.constant 7 : i32
    %342 = arith.index_cast %c7_i32 : i32 to index
    %c0_108 = arith.constant 0 : index
    %343 = vector.load %arg8[%342, %c0_108] : memref<8x512xf32, #tpu.memory_space<vmem>>, vector<1x512xf32>
    %344 = arith.truncf %316 : vector<1x128xf32> to vector<1x128xbf16>
    %c0_109 = arith.constant 0 : index
    %c0_110 = arith.constant 0 : index
    %345 = vector.load %arg2[%c0_109, %c0_110] : memref<128x512xbf16, #tpu.memory_space<vmem>>, vector<128x512xbf16>
    %cst_111 = arith.constant dense<0.000000e+00> : vector<1x512xf32>
    %346 = tpu.matmul %344, %345, %cst_111 {dimension_numbers = #tpu.dot_dimension_numbers<[1], [0], [0], [1], [0, 0, 1, 1], [], []>} : vector<1x128xbf16>, vector<128x512xbf16>, vector<1x512xf32> -> vector<1x512xf32>
    %347 = arith.addf %343, %346 : vector<1x512xf32>
    %348 = vector.extract_strided_slice %347 {offsets = [0, 0], sizes = [1, 384], strides = [1, 1]} : vector<1x512xf32> to vector<1x384xf32>
    %349 = arith.negf %348 : vector<1x384xf32>
    %350 = math.exp %349 : vector<1x384xf32>
    %cst_112 = arith.constant 1.000000e+00 : f32
    %351 = vector.broadcast %cst_112 : f32 to vector<1x384xf32>
    %352 = arith.addf %351, %350 : vector<1x384xf32>
    %353 = arith.divf %351, %352 : vector<1x384xf32>
    %354 = vector.extract_strided_slice %347 {offsets = [0, 384], sizes = [1, 128], strides = [1, 1]} : vector<1x512xf32> to vector<1x128xf32>
    %355 = math.tanh %354 : vector<1x128xf32>
    %356 = vector.extract_strided_slice %353 {offsets = [0, 128], sizes = [1, 128], strides = [1, 1]} : vector<1x384xf32> to vector<1x128xf32>
    %357 = arith.mulf %356, %313 : vector<1x128xf32>
    %358 = vector.extract_strided_slice %353 {offsets = [0, 0], sizes = [1, 128], strides = [1, 1]} : vector<1x384xf32> to vector<1x128xf32>
    %359 = arith.mulf %358, %355 : vector<1x128xf32>
    %360 = arith.addf %357, %359 : vector<1x128xf32>
    %361 = vector.extract_strided_slice %353 {offsets = [0, 256], sizes = [1, 128], strides = [1, 1]} : vector<1x384xf32> to vector<1x128xf32>
    %362 = math.tanh %360 : vector<1x128xf32>
    %363 = arith.mulf %361, %362 : vector<1x128xf32>
    %364 = arith.truncf %363 : vector<1x128xf32> to vector<1x128xbf16>
    %c0_113 = arith.constant 0 : index
    %c0_114 = arith.constant 0 : index
    %365 = vector.load %arg4[%c0_113, %c0_114] : memref<128x512xbf16, #tpu.memory_space<vmem>>, vector<128x512xbf16>
    %cst_115 = arith.constant dense<0.000000e+00> : vector<1x512xf32>
    %366 = tpu.matmul %364, %365, %cst_115 {dimension_numbers = #tpu.dot_dimension_numbers<[1], [0], [0], [1], [0, 0, 1, 1], [], []>} : vector<1x128xbf16>, vector<128x512xbf16>, vector<1x512xf32> -> vector<1x512xf32>
    %367 = arith.truncf %341 : vector<1x128xf32> to vector<1x128xbf16>
    %c0_116 = arith.constant 0 : index
    %c0_117 = arith.constant 0 : index
    %368 = vector.load %arg5[%c0_116, %c0_117] : memref<128x512xbf16, #tpu.memory_space<vmem>>, vector<128x512xbf16>
    %cst_118 = arith.constant dense<0.000000e+00> : vector<1x512xf32>
    %369 = tpu.matmul %367, %368, %cst_118 {dimension_numbers = #tpu.dot_dimension_numbers<[1], [0], [0], [1], [0, 0, 1, 1], [], []>} : vector<1x128xbf16>, vector<128x512xbf16>, vector<1x512xf32> -> vector<1x512xf32>
    %370 = arith.addf %366, %369 : vector<1x512xf32>
    %c0_119 = arith.constant 0 : index
    %c0_120 = arith.constant 0 : index
    %371 = vector.load %arg6[%c0_119, %c0_120] : memref<1x512xf32, #tpu.memory_space<vmem>>, vector<1x512xf32>
    %372 = arith.addf %370, %371 : vector<1x512xf32>
    %373 = vector.extract_strided_slice %372 {offsets = [0, 0], sizes = [1, 384], strides = [1, 1]} : vector<1x512xf32> to vector<1x384xf32>
    %374 = arith.negf %373 : vector<1x384xf32>
    %375 = math.exp %374 : vector<1x384xf32>
    %cst_121 = arith.constant 1.000000e+00 : f32
    %376 = vector.broadcast %cst_121 : f32 to vector<1x384xf32>
    %377 = arith.addf %376, %375 : vector<1x384xf32>
    %378 = arith.divf %376, %377 : vector<1x384xf32>
    %379 = vector.extract_strided_slice %372 {offsets = [0, 384], sizes = [1, 128], strides = [1, 1]} : vector<1x512xf32> to vector<1x128xf32>
    %380 = math.tanh %379 : vector<1x128xf32>
    %381 = vector.extract_strided_slice %378 {offsets = [0, 128], sizes = [1, 128], strides = [1, 1]} : vector<1x384xf32> to vector<1x128xf32>
    %382 = arith.mulf %381, %338 : vector<1x128xf32>
    %383 = vector.extract_strided_slice %378 {offsets = [0, 0], sizes = [1, 128], strides = [1, 1]} : vector<1x384xf32> to vector<1x128xf32>
    %384 = arith.mulf %383, %380 : vector<1x128xf32>
    %385 = arith.addf %382, %384 : vector<1x128xf32>
    %386 = vector.extract_strided_slice %378 {offsets = [0, 256], sizes = [1, 128], strides = [1, 1]} : vector<1x384xf32> to vector<1x128xf32>
    %387 = math.tanh %385 : vector<1x128xf32>
    %388 = arith.mulf %386, %387 : vector<1x128xf32>
    %c8_i32 = arith.constant 8 : i32
    %c0_122 = arith.constant 0 : index
    %c0_123 = arith.constant 0 : index
    %389 = vector.load %arg7[%c0_122, %c0_123] : memref<1x128xf32, #tpu.memory_space<vmem>>, vector<1x128xf32>
    tpu.vector_store %arg7[%c0_122, %c0_123], %388 {strides = array<i32>} : memref<1x128xf32, #tpu.memory_space<vmem>>, vector<1x128xf32>,
    return
  }
}

</mosaic_0001>

<llo_original>
// kernel: tpu_custom_call.1
$region0: #{tpu_custom_call.1}
  #allocation0 [shape = 'u32[]', space=smem, size = 0x4, offset = 0x4, fixed_abs, tag = 'smem constant byte address 0x4 - core index']
  #allocation1 [shape = 'u32[144,128]{1,0:T(1,128)}', space=vmem, size = 0x12000, scoped, tag = 'internal scratch']
  #allocation2 [shape = 'f32[8,512]{1,0:T(8,128)}', space=vmem, size = 0x4000, scoped, tag = 'scratch operand']
  %s0 = inlined_call_operand.vmem [shape: f32[8,1], index: 0, kind: input, shape index: {}]
  %s1 = inlined_call_operand.vmem [shape: f32[1,512], index: 1, kind: input, shape index: {}]
  %s2 = inlined_call_operand.hbm [shape: bf16[128,512], index: 2, kind: input, shape index: {}]
  %s3 = inlined_call_operand.vmem [shape: f32[1,512], index: 3, kind: input, shape index: {}]
  %s4 = inlined_call_operand.hbm [shape: bf16[128,512], index: 4, kind: input, shape index: {}]
  %s5 = inlined_call_operand.hbm [shape: bf16[128,512], index: 5, kind: input, shape index: {}]
  %s6 = inlined_call_operand.vmem [shape: f32[1,512], index: 6, kind: input, shape index: {}]
  %s7 = inlined_call_operand.hbm [shape: f32[1,128], index: 7, kind: output, shape index: {}]
  %s8 = sld [smem:[#allocation0]]
  $region50: #{tpu_custom_call.1} parent=0
    _
  %s10 = ssub.s32 1, %s8
  %s11 = scalar_select 0, %s10, %s8
  $region1: #{tpu_custom_call.1} parent=0
    #allocation3 [shape = 'u8[131072]{0}', space=vmem, size = 0x20000, scoped, tag = 'input window, operand 2, single buffered']
    #allocation4 [shape = 's32[1]{0}', space=sflag, size = 0x4, scoped, tag = 'scoped memory for tpu_custom_call.1']
    #allocation5 [shape = 's32[1]{0}', space=sflag, size = 0x4, scoped, tag = 'scoped memory for tpu_custom_call.1']
    #allocation6 [shape = 'u8[131072]{0}', space=vmem, size = 0x20000, scoped, tag = 'input window, operand 4, single buffered']
    #allocation7 [shape = 's32[1]{0}', space=sflag, size = 0x4, scoped, tag = 'scoped memory for tpu_custom_call.1']
    #allocation8 [shape = 'u8[131072]{0}', space=vmem, size = 0x20000, scoped, tag = 'input window, operand 5, single buffered']
    #allocation9 [shape = 'u8[512]{0}', space=vmem, size = 0x400, scoped, tag = 'output window, operand 0, single buffered']
    %12 = vsyncpa [#allocation4], 0
    %13 = vsyncpa [#allocation7], 0
    %14 = vsyncpa [#allocation5], 0
    // Predicated region
    $region2: #{tpu_custom_call.1} parent=1 // pred_check
      _
    $region3: #{tpu_custom_call.1} parent=1 // pred_check_branch
      %16 = sbr.rel (0) target = $region5
    $region4: #{tpu_custom_call.1} parent=1 // pred_region
      _
    $region5: #{tpu_custom_call.1} parent=1 // pred_fallthru
      _
    // Predicated region
    $region6: #{tpu_custom_call.1} parent=1 // pred_check
      _
    $region7: #{tpu_custom_call.1} parent=1 // pred_check_branch
      %18 = sbr.rel (0) target = $region9
    $region8: #{tpu_custom_call.1} parent=1 // pred_region
      _
    $region9: #{tpu_custom_call.1} parent=1 // pred_fallthru
      _
    // Predicated region
    $region10: #{tpu_custom_call.1} parent=1 // pred_check
      _
    $region11: #{tpu_custom_call.1} parent=1 // pred_check_branch
      %20 = sbr.rel (0) target = $region13
    $region12: #{tpu_custom_call.1} parent=1 // pred_region
      %s22 = ssub.s32 4096, 4096
      %23 = vsyncadd [#allocation4], %s22
      %s24 = sshll.u32 [#allocation3], 4
      %s25 = int_to_ptr.vmem [resolvable:$true] %s24
      %30 = dma.hbm_to_vmem [thread:$0]  %s2, 4096, %s25, [#allocation4], 256, 256, 16
    $region13: #{tpu_custom_call.1} parent=1 // pred_fallthru
      _
    // Predicated region
    $region14: #{tpu_custom_call.1} parent=1 // pred_check
      _
    $region15: #{tpu_custom_call.1} parent=1 // pred_check_branch
      %32 = sbr.rel (0) target = $region17
    $region16: #{tpu_custom_call.1} parent=1 // pred_region
      _
    $region17: #{tpu_custom_call.1} parent=1 // pred_fallthru
      _
    // Predicated region
    $region18: #{tpu_custom_call.1} parent=1 // pred_check
      _
    $region19: #{tpu_custom_call.1} parent=1 // pred_check_branch
      %34 = sbr.rel (0) target = $region21
    $region20: #{tpu_custom_call.1} parent=1 // pred_region
      %s36 = ssub.s32 4096, 4096
      %37 = vsyncadd [#allocation7], %s36
      %s38 = sshll.u32 [#allocation6], 4
      %s39 = int_to_ptr.vmem [resolvable:$true] %s38
      %44 = dma.hbm_to_vmem [thread:$0]  %s4, 4096, %s39, [#allocation7], 256, 256, 16
    $region21: #{tpu_custom_call.1} parent=1 // pred_fallthru
      _
    // Predicated region
    $region22: #{tpu_custom_call.1} parent=1 // pred_check
      _
    $region23: #{tpu_custom_call.1} parent=1 // pred_check_branch
      %46 = sbr.rel (0) target = $region25
    $region24: #{tpu_custom_call.1} parent=1 // pred_region
      %s48 = ssub.s32 4096, 4096
      %49 = vsyncadd [#allocation7], %s48
      %s50 = sshll.u32 [#allocation8], 4
      %s51 = int_to_ptr.vmem [resolvable:$true] %s50
      %56 = dma.hbm_to_vmem [thread:$0]  %s5, 4096, %s51, [#allocation7], 256, 256, 16
    $region25: #{tpu_custom_call.1} parent=1 // pred_fallthru
      _
    // Predicated region
    $region26: #{tpu_custom_call.1} parent=1 // pred_check
      _
    $region27: #{tpu_custom_call.1} parent=1 // pred_check_branch
      %58 = sbr.rel (0) target = $region29
    $region28: #{tpu_custom_call.1} parent=1 // pred_region
      _
    $region29: #{tpu_custom_call.1} parent=1 // pred_fallthru
      _
    // Predicated region
    $region30: #{tpu_custom_call.1} parent=1 // pred_check
      _
    $region31: #{tpu_custom_call.1} parent=1 // pred_check_branch
      %60 = sbr.rel (0) target = $region33
    $region32: #{tpu_custom_call.1} parent=1 // pred_region
      %61 = dma.done [#allocation4], 4096
    $region33: #{tpu_custom_call.1} parent=1 // pred_fallthru
      _
    // Predicated region
    $region34: #{tpu_custom_call.1} parent=1 // pred_check
      _
    $region35: #{tpu_custom_call.1} parent=1 // pred_check_branch
      %63 = sbr.rel (0) target = $region37
    $region36: #{tpu_custom_call.1} parent=1 // pred_region
      %64 = dma.done [#allocation7], 4096
    $region37: #{tpu_custom_call.1} parent=1 // pred_fallthru
      _
    // Predicated region
    $region38: #{tpu_custom_call.1} parent=1 // pred_check
      _
    $region39: #{tpu_custom_call.1} parent=1 // pred_check_branch
      %66 = sbr.rel (0) target = $region41
    $region40: #{tpu_custom_call.1} parent=1 // pred_region
      %67 = dma.done [#allocation7], 4096
    $region41: #{tpu_custom_call.1} parent=1 // pred_fallthru
      _
    %v69 = vld [vmem:[%s0] sm:$0xff]
    %v70 = vld [vmem:[%s1] sm:$0xf]
    %72 = vset.pattern.permute.xlu0 0
    %73 = vperm.xlu0 %72, %v69
    %v74 = vpop.permute.xlu0 %73
    %v77 = vlaneseq
    %v78 = vshrl.u32 %v77, 7
    %v79 = vsub.s32 0, %v78
    %v80 = vrot.slane %v70, %v79
    %v81 = vlaneseq
    %v82 = vshrl.u32 %v81, 7
    %v83 = vsub.s32 1, %v82
    %v84 = vrot.slane %v70, %v83
    %v85 = vlaneseq
    %v86 = vshrl.u32 %v85, 7
    %v87 = vsub.s32 2, %v86
    %v88 = vrot.slane %v70, %v87
    %v89 = vlaneseq
    %v90 = vshrl.u32 %v89, 7
    %v91 = vsub.s32 3, %v90
    %v92 = vrot.slane %v70, %v91
    %v97 = vmul.f32 %v74, %v80
    %v98 = vmul.f32 %v74, %v84
    %v99 = vmul.f32 %v74, %v88
    %v100 = vmul.f32 %v74, %v92
    %v101 = vld [vmem:[%s3] sm:$0xf]
    %v103 = vlaneseq
    %v104 = vshrl.u32 %v103, 7
    %v105 = vsub.s32 0, %v104
    %v106 = vrot.slane %v101, %v105
    %v107 = vlaneseq
    %v108 = vshrl.u32 %v107, 7
    %v109 = vsub.s32 1, %v108
    %v110 = vrot.slane %v101, %v109
    %v111 = vlaneseq
    %v112 = vshrl.u32 %v111, 7
    %v113 = vsub.s32 2, %v112
    %v114 = vrot.slane %v101, %v113
    %v115 = vlaneseq
    %v116 = vshrl.u32 %v115, 7
    %v117 = vsub.s32 3, %v116
    %v118 = vrot.slane %v101, %v117
    %v123 = vadd.f32 %v97, %v106
    %v124 = vadd.f32 %v98, %v110
    %v125 = vadd.f32 %v99, %v114
    %v126 = vadd.f32 %v100, %v118
    %127 = vst [vmem:[#allocation2] sm:$0xff] %v123
    %128 = vst [vmem:[#allocation2 + $0x8] sm:$0xff] %v124
    %129 = vst [vmem:[#allocation2 + $0x10] sm:$0xff] %v125
    %130 = vst [vmem:[#allocation2 + $0x18] sm:$0xff] %v126
    %v131 = vld [vmem:[#allocation2] ss:$8 sm:$0xf]
    %v132 = vld [vmem:[#allocation3] sm:$0xff]
    %v133 = vld [vmem:[#allocation3 + $0x8] sm:$0xff]
    %v134 = vld [vmem:[#allocation3 + $0x10] sm:$0xff]
    %v135 = vld [vmem:[#allocation3 + $0x18] sm:$0xff]
    %v136 = vld [vmem:[#allocation3 + $0x20] sm:$0xff]
    %v137 = vld [vmem:[#allocation3 + $0x28] sm:$0xff]
    %v138 = vld [vmem:[#allocation3 + $0x30] sm:$0xff]
    %v139 = vld [vmem:[#allocation3 + $0x38] sm:$0xff]
    %v140 = vld [vmem:[#allocation3 + $0x40] sm:$0xff]
    %v141 = vld [vmem:[#allocation3 + $0x48] sm:$0xff]
    %v142 = vld [vmem:[#allocation3 + $0x50] sm:$0xff]
    %v143 = vld [vmem:[#allocation3 + $0x58] sm:$0xff]
    %v144 = vld [vmem:[#allocation3 + $0x60] sm:$0xff]
    %v145 = vld [vmem:[#allocation3 + $0x68] sm:$0xff]
    %v146 = vld [vmem:[#allocation3 + $0x70] sm:$0xff]
    %v147 = vld [vmem:[#allocation3 + $0x78] sm:$0xff]
    %v148 = vld [vmem:[#allocation3 + $0x80] sm:$0xff]
    %v149 = vld [vmem:[#allocation3 + $0x88] sm:$0xff]
    %v150 = vld [vmem:[#allocation3 + $0x90] sm:$0xff]
    %v151 = vld [vmem:[#allocation3 + $0x98] sm:$0xff]
    %v152 = vld [vmem:[#allocation3 + $0xa0] sm:$0xff]
    %v153 = vld [vmem:[#allocation3 + $0xa8] sm:$0xff]
    %v154 = vld [vmem:[#allocation3 + $0xb0] sm:$0xff]
    %v155 = vld [vmem:[#allocation3 + $0xb8] sm:$0xff]
    %v156 = vld [vmem:[#allocation3 + $0xc0] sm:$0xff]
    %v157 = vld [vmem:[#allocation3 + $0xc8] sm:$0xff]
    %v158 = vld [vmem:[#allocation3 + $0xd0] sm:$0xff]
    %v159 = vld [vmem:[#allocation3 + $0xd8] sm:$0xff]
    %v160 = vld [vmem:[#allocation3 + $0xe0] sm:$0xff]
    %v161 = vld [vmem:[#allocation3 + $0xe8] sm:$0xff]
    %v162 = vld [vmem:[#allocation3 + $0xf0] sm:$0xff]
    %v163 = vld [vmem:[#allocation3 + $0xf8] sm:$0xff]
    %v196 = vunpack.c.l.b16 %v132
    %v197 = vunpack.c.h.b16 %v132
    %v198 = vunpack.c.l.b16 %v133
    %v199 = vunpack.c.h.b16 %v133
    %v200 = vunpack.c.l.b16 %v134
    %v201 = vunpack.c.h.b16 %v134
    %v202 = vunpack.c.l.b16 %v135
    %v203 = vunpack.c.h.b16 %v135
    %v204 = vunpack.c.l.b16 %v136
    %v205 = vunpack.c.h.b16 %v136
    %v206 = vunpack.c.l.b16 %v137
    %v207 = vunpack.c.h.b16 %v137
    %v208 = vunpack.c.l.b16 %v138
    %v209 = vunpack.c.h.b16 %v138
    %v210 = vunpack.c.l.b16 %v139
    %v211 = vunpack.c.h.b16 %v139
    %v212 = vunpack.c.l.b16 %v140
    %v213 = vunpack.c.h.b16 %v140
    %v214 = vunpack.c.l.b16 %v141
    %v215 = vunpack.c.h.b16 %v141
    %v216 = vunpack.c.l.b16 %v142
    %v217 = vunpack.c.h.b16 %v142
    %v218 = vunpack.c.l.b16 %v143
    %v219 = vunpack.c.h.b16 %v143
    %v220 = vunpack.c.l.b16 %v144
    %v221 = vunpack.c.h.b16 %v144
    %v222 = vunpack.c.l.b16 %v145
    %v223 = vunpack.c.h.b16 %v145
    %v224 = vunpack.c.l.b16 %v146
    %v225 = vunpack.c.h.b16 %v146
    %v226 = vunpack.c.l.b16 %v147
    %v227 = vunpack.c.h.b16 %v147
    %v228 = vunpack.c.l.b16 %v148
    %v229 = vunpack.c.h.b16 %v148
    %v230 = vunpack.c.l.b16 %v149
    %v231 = vunpack.c.h.b16 %v149
    %v232 = vunpack.c.l.b16 %v150
    %v233 = vunpack.c.h.b16 %v150
    %v234 = vunpack.c.l.b16 %v151
    %v235 = vunpack.c.h.b16 %v151
    %v236 = vunpack.c.l.b16 %v152
    %v237 = vunpack.c.h.b16 %v152
    %v238 = vunpack.c.l.b16 %v153
    %v239 = vunpack.c.h.b16 %v153
    %v240 = vunpack.c.l.b16 %v154
    %v241 = vunpack.c.h.b16 %v154
    %v242 = vunpack.c.l.b16 %v155
    %v243 = vunpack.c.h.b16 %v155
    %v244 = vunpack.c.l.b16 %v156
    %v245 = vunpack.c.h.b16 %v156
    %v246 = vunpack.c.l.b16 %v157
    %v247 = vunpack.c.h.b16 %v157
    %v248 = vunpack.c.l.b16 %v158
    %v249 = vunpack.c.h.b16 %v158
    %v250 = vunpack.c.l.b16 %v159
    %v251 = vunpack.c.h.b16 %v159
    %v252 = vunpack.c.l.b16 %v160
    %v253 = vunpack.c.h.b16 %v160
    %v254 = vunpack.c.l.b16 %v161
    %v255 = vunpack.c.h.b16 %v161
    %v256 = vunpack.c.l.b16 %v162
    %v257 = vunpack.c.h.b16 %v162
    %v258 = vunpack.c.l.b16 %v163
    %v259 = vunpack.c.h.b16 %v163
    %v260 = vpack.c.b16 %v200, %v196
    %v261 = vpack.c.b16 %v201, %v197
    %v262 = vpack.c.b16 %v202, %v198
    %v263 = vpack.c.b16 %v203, %v199
    %v264 = vpack.c.b16 %v208, %v204
    %v265 = vpack.c.b16 %v209, %v205
    %v266 = vpack.c.b16 %v210, %v206
    %v267 = vpack.c.b16 %v211, %v207
    %v268 = vpack.c.b16 %v216, %v212
    %v269 = vpack.c.b16 %v217, %v213
    %v270 = vpack.c.b16 %v218, %v214
    %v271 = vpack.c.b16 %v219, %v215
    %v272 = vpack.c.b16 %v224, %v220
    %v273 = vpack.c.b16 %v225, %v221
    %v274 = vpack.c.b16 %v226, %v222
    %v275 = vpack.c.b16 %v227, %v223
    %v276 = vpack.c.b16 %v232, %v228
    %v277 = vpack.c.b16 %v233, %v229
    %v278 = vpack.c.b16 %v234, %v230
    %v279 = vpack.c.b16 %v235, %v231
    %v280 = vpack.c.b16 %v240, %v236
    %v281 = vpack.c.b16 %v241, %v237
    %v282 = vpack.c.b16 %v242, %v238
    %v283 = vpack.c.b16 %v243, %v239
    %v284 = vpack.c.b16 %v248, %v244
    %v285 = vpack.c.b16 %v249, %v245
    %v286 = vpack.c.b16 %v250, %v246
    %v287 = vpack.c.b16 %v251, %v247
    %v288 = vpack.c.b16 %v256, %v252
    %v289 = vpack.c.b16 %v257, %v253
    %v290 = vpack.c.b16 %v258, %v254
    %v291 = vpack.c.b16 %v259, %v255
    %324 = vmatprep.subr.bf16.mxu0 %v261
    %325 = vmatpush1.bf16.msra.mxu0 %v260
    %326 = vmatprep.subr.bf16.mxu0 %v265
    %327 = vmatpush1.bf16.msra.mxu0 %v264
    %328 = vmatprep.subr.bf16.mxu0 %v269
    %329 = vmatpush1.bf16.msra.mxu0 %v268
    %330 = vmatprep.subr.bf16.mxu0 %v273
    %331 = vmatpush1.bf16.msra.mxu0 %v272
    %332 = vmatprep.subr.bf16.mxu0 %v277
    %333 = vmatpush1.bf16.msra.mxu0 %v276
    %334 = vmatprep.subr.bf16.mxu0 %v281
    %335 = vmatpush1.bf16.msra.mxu0 %v280
    %336 = vmatprep.subr.bf16.mxu0 %v285
    %337 = vmatpush1.bf16.msra.mxu0 %v284
    %338 = vmatprep.subr.bf16.mxu0 %v289
    %339 = vmatpush1.bf16.msra.mxu0 %v288
    %340 = vmatprep.subr.bf16.mxu0 0
    %341 = vmatpush1.bf16.msra.mxu0 0
    %342 = vmatprep.subr.bf16.mxu0 0
    %343 = vmatpush1.bf16.msra.mxu0 0
    %344 = vmatprep.subr.bf16.mxu0 0
    %345 = vmatpush1.bf16.msra.mxu0 0
    %346 = vmatprep.subr.bf16.mxu0 0
    %347 = vmatpush1.bf16.msra.mxu0 0
    %348 = vmatprep.subr.bf16.mxu0 0
    %349 = vmatpush1.bf16.msra.mxu0 0
    %350 = vmatprep.subr.bf16.mxu0 0
    %351 = vmatpush1.bf16.msra.mxu0 0
    %352 = vmatprep.subr.bf16.mxu0 0
    %353 = vmatpush1.bf16.msra.mxu0 0
    %354 = vmatprep.subr.bf16.mxu0 0
    %355 = vmatpush1.bf16.msra.mxu0 0
    %356 = vmatprep.mubr.bf16.mxu0 0
    %357 = vmatmul.mubr.bf16.gmra.mrb[0].mxu0 0
    %v358 = vpop.f32.mrb[0].mxu0
    %v359 = vadd.f32 0.0, %v358
    %v360 = vpop.f32.mrb[0].mxu0
    %v361 = vadd.f32 0.0, %v360
    %v362 = vpop.f32.mrb[0].mxu0
    %v363 = vpop.f32.mrb[0].mxu0
    %364 = vdwg.mxu0
    %365 = vmatprep.subr.bf16.mxu0 %v263
    %366 = vmatpush1.bf16.msra.mxu0 %v262
    %367 = vmatprep.subr.bf16.mxu0 %v267
    %368 = vmatpush1.bf16.msra.mxu0 %v266
    %369 = vmatprep.subr.bf16.mxu0 %v271
    %370 = vmatpush1.bf16.msra.mxu0 %v270
    %371 = vmatprep.subr.bf16.mxu0 %v275
    %372 = vmatpush1.bf16.msra.mxu0 %v274
    %373 = vmatprep.subr.bf16.mxu0 %v279
    %374 = vmatpush1.bf16.msra.mxu0 %v278
    %375 = vmatprep.subr.bf16.mxu0 %v283
    %376 = vmatpush1.bf16.msra.mxu0 %v282
    %377 = vmatprep.subr.bf16.mxu0 %v287
    %378 = vmatpush1.bf16.msra.mxu0 %v286
    %379 = vmatprep.subr.bf16.mxu0 %v291
    %380 = vmatpush1.bf16.msra.mxu0 %v290
    %381 = vmatprep.subr.bf16.mxu0 0
    %382 = vmatpush1.bf16.msra.mxu0 0
    %383 = vmatprep.subr.bf16.mxu0 0
    %384 = vmatpush1.bf16.msra.mxu0 0
    %385 = vmatprep.subr.bf16.mxu0 0
    %386 = vmatpush1.bf16.msra.mxu0 0
    %387 = vmatprep.subr.bf16.mxu0 0
    %388 = vmatpush1.bf16.msra.mxu0 0
    %389 = vmatprep.subr.bf16.mxu0 0
    %390 = vmatpush1.bf16.msra.mxu0 0
    %391 = vmatprep.subr.bf16.mxu0 0
    %392 = vmatpush1.bf16.msra.mxu0 0
    %393 = vmatprep.subr.bf16.mxu0 0
    %394 = vmatpush1.bf16.msra.mxu0 0
    %395 = vmatprep.subr.bf16.mxu0 0
    %396 = vmatpush1.bf16.msra.mxu0 0
    %397 = vmatprep.mubr.bf16.mxu0 0
    %398 = vmatmul.mubr.bf16.gmra.mrb[0].mxu0 0
    %v399 = vpop.f32.mrb[0].mxu0
    %v400 = vadd.f32 0.0, %v399
    %v401 = vpop.f32.mrb[0].mxu0
    %v402 = vadd.f32 0.0, %v401
    %v403 = vpop.f32.mrb[0].mxu0
    %v404 = vpop.f32.mrb[0].mxu0
    %405 = vdwg.mxu0
    %v410 = vcombine.low %v359, %v361
    %v411 = vcombine.low %v400, %v402
    %v413 = vunpack.c.l.s4 1966171168
    %v414 = vunpack.c.0.s8 %v413
    %v415 = vlaneseq
    %v416 = vshrl.u32 %v415, 7
    %v417 = vsub.s32 %v414, %v416
    %v418 = vrot.slane %v410, %v417
    %v420 = vunpack.c.l.s4 1966171168
    %v421 = vunpack.c.0.s8 %v420
    %v422 = vlaneseq
    %v423 = vshrl.u32 %v422, 7
    %v424 = vsub.s32 %v421, %v423
    %v425 = vrot.slane %v411, %v424
    %v426 = vcombine.low %v418, %v425
    %v428 = vunpack.c.l.s4 1966171168
    %v429 = vunpack.c.0.s8 %v428
    %v430 = vlaneseq
    %v431 = vshrl.u32 %v430, 7
    %v432 = vsub.s32 %v429, %v431
    %v433 = vrot.slane %v426, %v432
    %v435 = vadd.f32 %v131, %v433
    %v436 = vxor.u32 %v435, 2147483648
    %v437 = vmul.f32 %v436, 1.442695
    %v438 = vpow.pop %v437
    %v439 = vadd.f32 %v438, 1.0
    %v440 = vrcp.pop %v439
    %v441 = vmul.f32 1.0, %v440
    %v443 = vrot.slane %v435, 3
    %v445 = vtanh.pop %v443
    %v447 = vrot.slane %v441, 1
    %v449 = vmul.f32 %v447, 0.0
    %v450 = vmul.f32 %v441, %v445
    %v451 = vadd.f32 %v449, %v450
    %v452 = vtanh.pop %v451
    %v453 = vrot.slane %v441, 2
    %v455 = vmul.f32 %v453, %v452
    %v456 = vpack.c.bf16 %v455, %v455
    %v457 = vld [vmem:[#allocation6] sm:$0xff]
    %v458 = vld [vmem:[#allocation6 + $0x8] sm:$0xff]
    %v459 = vld [vmem:[#allocation6 + $0x10] sm:$0xff]
    %v460 = vld [vmem:[#allocation6 + $0x18] sm:$0xff]
    %v461 = vld [vmem:[#allocation6 + $0x20] sm:$0xff]
    %v462 = vld [vmem:[#allocation6 + $0x28] sm:$0xff]
    %v463 = vld [vmem:[#allocation6 + $0x30] sm:$0xff]
    %v464 = vld [vmem:[#allocation6 + $0x38] sm:$0xff]
    %v465 = vld [vmem:[#allocation6 + $0x40] sm:$0xff]
    %v466 = vld [vmem:[#allocation6 + $0x48] sm:$0xff]
    %v467 = vld [vmem:[#allocation6 + $0x50] sm:$0xff]
    %v468 = vld [vmem:[#allocation6 + $0x58] sm:$0xff]
    %v469 = vld [vmem:[#allocation6 + $0x60] sm:$0xff]
    %v470 = vld [vmem:[#allocation6 + $0x68] sm:$0xff]
    %v471 = vld [vmem:[#allocation6 + $0x70] sm:$0xff]
    %v472 = vld [vmem:[#allocation6 + $0x78] sm:$0xff]
    %v473 = vld [vmem:[#allocation6 + $0x80] sm:$0xff]
    %v474 = vld [vmem:[#allocation6 + $0x88] sm:$0xff]
    %v475 = vld [vmem:[#allocation6 + $0x90] sm:$0xff]
    %v476 = vld [vmem:[#allocation6 + $0x98] sm:$0xff]
    %v477 = vld [vmem:[#allocation6 + $0xa0] sm:$0xff]
    %v478 = vld [vmem:[#allocation6 + $0xa8] sm:$0xff]
    %v479 = vld [vmem:[#allocation6 + $0xb0] sm:$0xff]
    %v480 = vld [vmem:[#allocation6 + $0xb8] sm:$0xff]
    %v481 = vld [vmem:[#allocation6 + $0xc0] sm:$0xff]
    %v482 = vld [vmem:[#allocation6 + $0xc8] sm:$0xff]
    %v483 = vld [vmem:[#allocation6 + $0xd0] sm:$0xff]
    %v484 = vld [vmem:[#allocation6 + $0xd8] sm:$0xff]
    %v485 = vld [vmem:[#allocation6 + $0xe0] sm:$0xff]
    %v486 = vld [vmem:[#allocation6 + $0xe8] sm:$0xff]
    %v487 = vld [vmem:[#allocation6 + $0xf0] sm:$0xff]
    %v488 = vld [vmem:[#allocation6 + $0xf8] sm:$0xff]
    %v489 = vld [vmem:[#allocation8] sm:$0xff]
    %v490 = vld [vmem:[#allocation8 + $0x8] sm:$0xff]
    %v491 = vld [vmem:[#allocation8 + $0x10] sm:$0xff]
    %v492 = vld [vmem:[#allocation8 + $0x18] sm:$0xff]
    %v493 = vld [vmem:[#allocation8 + $0x20] sm:$0xff]
    %v494 = vld [vmem:[#allocation8 + $0x28] sm:$0xff]
    %v495 = vld [vmem:[#allocation8 + $0x30] sm:$0xff]
    %v496 = vld [vmem:[#allocation8 + $0x38] sm:$0xff]
    %v497 = vld [vmem:[#allocation8 + $0x40] sm:$0xff]
    %v498 = vld [vmem:[#allocation8 + $0x48] sm:$0xff]
    %v499 = vld [vmem:[#allocation8 + $0x50] sm:$0xff]
    %v500 = vld [vmem:[#allocation8 + $0x58] sm:$0xff]
    %v501 = vld [vmem:[#allocation8 + $0x60] sm:$0xff]
    %v502 = vld [vmem:[#allocation8 + $0x68] sm:$0xff]
    %v503 = vld [vmem:[#allocation8 + $0x70] sm:$0xff]
    %v504 = vld [vmem:[#allocation8 + $0x78] sm:$0xff]
    %v505 = vld [vmem:[#allocation8 + $0x80] sm:$0xff]
    %v506 = vld [vmem:[#allocation8 + $0x88] sm:$0xff]
    %v507 = vld [vmem:[#allocation8 + $0x90] sm:$0xff]
    %v508 = vld [vmem:[#allocation8 + $0x98] sm:$0xff]
    %v509 = vld [vmem:[#allocation8 + $0xa0] sm:$0xff]
    %v510 = vld [vmem:[#allocation8 + $0xa8] sm:$0xff]
    %v511 = vld [vmem:[#allocation8 + $0xb0] sm:$0xff]
    %v512 = vld [vmem:[#allocation8 + $0xb8] sm:$0xff]
    %v513 = vld [vmem:[#allocation8 + $0xc0] sm:$0xff]
    %v514 = vld [vmem:[#allocation8 + $0xc8] sm:$0xff]
    %v515 = vld [vmem:[#allocation8 + $0xd0] sm:$0xff]
    %v516 = vld [vmem:[#allocation8 + $0xd8] sm:$0xff]
    %v517 = vld [vmem:[#allocation8 + $0xe0] sm:$0xff]
    %v518 = vld [vmem:[#allocation8 + $0xe8] sm:$0xff]
    %v519 = vld [vmem:[#allocation8 + $0xf0] sm:$0xff]
    %v520 = vld [vmem:[#allocation8 + $0xf8] sm:$0xff]
    %v553 = vunpack.c.l.b16 %v489
    %v554 = vunpack.c.h.b16 %v489
    %v555 = vunpack.c.l.b16 %v490
    %v556 = vunpack.c.h.b16 %v490
    %v557 = vunpack.c.l.b16 %v491
    %v558 = vunpack.c.h.b16 %v491
    %v559 = vunpack.c.l.b16 %v492
    %v560 = vunpack.c.h.b16 %v492
    %v561 = vunpack.c.l.b16 %v493
    %v562 = vunpack.c.h.b16 %v493
    %v563 = vunpack.c.l.b16 %v494
    %v564 = vunpack.c.h.b16 %v494
    %v565 = vunpack.c.l.b16 %v495
    %v566 = vunpack.c.h.b16 %v495
    %v567 = vunpack.c.l.b16 %v496
    %v568 = vunpack.c.h.b16 %v496
    %v569 = vunpack.c.l.b16 %v497
    %v570 = vunpack.c.h.b16 %v497
    %v571 = vunpack.c.l.b16 %v498
    %v572 = vunpack.c.h.b16 %v498
    %v573 = vunpack.c.l.b16 %v499
    %v574 = vunpack.c.h.b16 %v499
    %v575 = vunpack.c.l.b16 %v500
    %v576 = vunpack.c.h.b16 %v500
    %v577 = vunpack.c.l.b16 %v501
    %v578 = vunpack.c.h.b16 %v501
    %v579 = vunpack.c.l.b16 %v502
    %v580 = vunpack.c.h.b16 %v502
    %v581 = vunpack.c.l.b16 %v503
    %v582 = vunpack.c.h.b16 %v503
    %v583 = vunpack.c.l.b16 %v504
    %v584 = vunpack.c.h.b16 %v504
    %v585 = vunpack.c.l.b16 %v505
    %v586 = vunpack.c.h.b16 %v505
    %v587 = vunpack.c.l.b16 %v506
    %v588 = vunpack.c.h.b16 %v506
    %v589 = vunpack.c.l.b16 %v507
    %v590 = vunpack.c.h.b16 %v507
    %v591 = vunpack.c.l.b16 %v508
    %v592 = vunpack.c.h.b16 %v508
    %v593 = vunpack.c.l.b16 %v509
    %v594 = vunpack.c.h.b16 %v509
    %v595 = vunpack.c.l.b16 %v510
    %v596 = vunpack.c.h.b16 %v510
    %v597 = vunpack.c.l.b16 %v511
    %v598 = vunpack.c.h.b16 %v511
    %v599 = vunpack.c.l.b16 %v512
    %v600 = vunpack.c.h.b16 %v512
    %v601 = vunpack.c.l.b16 %v513
    %v602 = vunpack.c.h.b16 %v513
    %v603 = vunpack.c.l.b16 %v514
    %v604 = vunpack.c.h.b16 %v514
    %v605 = vunpack.c.l.b16 %v515
    %v606 = vunpack.c.h.b16 %v515
    %v607 = vunpack.c.l.b16 %v516
    %v608 = vunpack.c.h.b16 %v516
    %v609 = vunpack.c.l.b16 %v517
    %v610 = vunpack.c.h.b16 %v517
    %v611 = vunpack.c.l.b16 %v518
    %v612 = vunpack.c.h.b16 %v518
    %v613 = vunpack.c.l.b16 %v519
    %v614 = vunpack.c.h.b16 %v519
    %v615 = vunpack.c.l.b16 %v520
    %v616 = vunpack.c.h.b16 %v520
    %v617 = vpack.c.b16 %v557, %v553
    %v618 = vpack.c.b16 %v558, %v554
    %v619 = vpack.c.b16 %v559, %v555
    %v620 = vpack.c.b16 %v560, %v556
    %v621 = vpack.c.b16 %v565, %v561
    %v622 = vpack.c.b16 %v566, %v562
    %v623 = vpack.c.b16 %v567, %v563
    %v624 = vpack.c.b16 %v568, %v564
    %v625 = vpack.c.b16 %v573, %v569
    %v626 = vpack.c.b16 %v574, %v570
    %v627 = vpack.c.b16 %v575, %v571
    %v628 = vpack.c.b16 %v576, %v572
    %v629 = vpack.c.b16 %v581, %v577
    %v630 = vpack.c.b16 %v582, %v578
    %v631 = vpack.c.b16 %v583, %v579
    %v632 = vpack.c.b16 %v584, %v580
    %v633 = vpack.c.b16 %v589, %v585
    %v634 = vpack.c.b16 %v590, %v586
    %v635 = vpack.c.b16 %v591, %v587
    %v636 = vpack.c.b16 %v592, %v588
    %v637 = vpack.c.b16 %v597, %v593
    %v638 = vpack.c.b16 %v598, %v594
    %v639 = vpack.c.b16 %v599, %v595
    %v640 = vpack.c.b16 %v600, %v596
    %v641 = vpack.c.b16 %v605, %v601
    %v642 = vpack.c.b16 %v606, %v602
    %v643 = vpack.c.b16 %v607, %v603
    %v644 = vpack.c.b16 %v608, %v604
    %v645 = vpack.c.b16 %v613, %v609
    %v646 = vpack.c.b16 %v614, %v610
    %v647 = vpack.c.b16 %v615, %v611
    %v648 = vpack.c.b16 %v616, %v612
    %681 = vmatprep.subr.bf16.mxu0 %v618
    %682 = vmatpush1.bf16.msra.mxu0 %v617
    %683 = vmatprep.subr.bf16.mxu0 %v622
    %684 = vmatpush1.bf16.msra.mxu0 %v621
    %685 = vmatprep.subr.bf16.mxu0 %v626
    %686 = vmatpush1.bf16.msra.mxu0 %v625
    %687 = vmatprep.subr.bf16.mxu0 %v630
    %688 = vmatpush1.bf16.msra.mxu0 %v629
    %689 = vmatprep.subr.bf16.mxu0 %v634
    %690 = vmatpush1.bf16.msra.mxu0 %v633
    %691 = vmatprep.subr.bf16.mxu0 %v638
    %692 = vmatpush1.bf16.msra.mxu0 %v637
    %693 = vmatprep.subr.bf16.mxu0 %v642
    %694 = vmatpush1.bf16.msra.mxu0 %v641
    %695 = vmatprep.subr.bf16.mxu0 %v646
    %696 = vmatpush1.bf16.msra.mxu0 %v645
    %697 = vmatprep.subr.bf16.mxu0 0
    %698 = vmatpush1.bf16.msra.mxu0 0
    %699 = vmatprep.subr.bf16.mxu0 0
    %700 = vmatpush1.bf16.msra.mxu0 0
    %701 = vmatprep.subr.bf16.mxu0 0
    %702 = vmatpush1.bf16.msra.mxu0 0
    %703 = vmatprep.subr.bf16.mxu0 0
    %704 = vmatpush1.bf16.msra.mxu0 0
    %705 = vmatprep.subr.bf16.mxu0 0
    %706 = vmatpush1.bf16.msra.mxu0 0
    %707 = vmatprep.subr.bf16.mxu0 0
    %708 = vmatpush1.bf16.msra.mxu0 0
    %709 = vmatprep.subr.bf16.mxu0 0
    %710 = vmatpush1.bf16.msra.mxu0 0
    %711 = vmatprep.subr.bf16.mxu0 0
    %712 = vmatpush1.bf16.msra.mxu0 0
    %713 = vmatprep.mubr.bf16.mxu0 0
    %714 = vmatmul.mubr.bf16.gmra.mrb[0].mxu0 0
    %v715 = vpop.f32.mrb[0].mxu0
    %v716 = vadd.f32 0.0, %v715
    %v717 = vpop.f32.mrb[0].mxu0
    %v718 = vadd.f32 0.0, %v717
    %v719 = vpop.f32.mrb[0].mxu0
    %v720 = vpop.f32.mrb[0].mxu0
    %721 = vdwg.mxu0
    %722 = vmatprep.subr.bf16.mxu0 %v620
    %723 = vmatpush1.bf16.msra.mxu0 %v619
    %724 = vmatprep.subr.bf16.mxu0 %v624
    %725 = vmatpush1.bf16.msra.mxu0 %v623
    %726 = vmatprep.subr.bf16.mxu0 %v628
    %727 = vmatpush1.bf16.msra.mxu0 %v627
    %728 = vmatprep.subr.bf16.mxu0 %v632
    %729 = vmatpush1.bf16.msra.mxu0 %v631
    %730 = vmatprep.subr.bf16.mxu0 %v636
    %731 = vmatpush1.bf16.msra.mxu0 %v635
    %732 = vmatprep.subr.bf16.mxu0 %v640
    %733 = vmatpush1.bf16.msra.mxu0 %v639
    %734 = vmatprep.subr.bf16.mxu0 %v644
    %735 = vmatpush1.bf16.msra.mxu0 %v643
    %736 = vmatprep.subr.bf16.mxu0 %v648
    %737 = vmatpush1.bf16.msra.mxu0 %v647
    %738 = vmatprep.subr.bf16.mxu0 0
    %739 = vmatpush1.bf16.msra.mxu0 0
    %740 = vmatprep.subr.bf16.mxu0 0
    %741 = vmatpush1.bf16.msra.mxu0 0
    %742 = vmatprep.subr.bf16.mxu0 0
    %743 = vmatpush1.bf16.msra.mxu0 0
    %744 = vmatprep.subr.bf16.mxu0 0
    %745 = vmatpush1.bf16.msra.mxu0 0
    %746 = vmatprep.subr.bf16.mxu0 0
    %747 = vmatpush1.bf16.msra.mxu0 0
    %748 = vmatprep.subr.bf16.mxu0 0
    %749 = vmatpush1.bf16.msra.mxu0 0
    %750 = vmatprep.subr.bf16.mxu0 0
    %751 = vmatpush1.bf16.msra.mxu0 0
    %752 = vmatprep.subr.bf16.mxu0 0
    %753 = vmatpush1.bf16.msra.mxu0 0
    %754 = vmatprep.mubr.bf16.mxu0 0
    %755 = vmatmul.mubr.bf16.gmra.mrb[0].mxu0 0
    %v756 = vpop.f32.mrb[0].mxu0
    %v757 = vadd.f32 0.0, %v756
    %v758 = vpop.f32.mrb[0].mxu0
    %v759 = vadd.f32 0.0, %v758
    %v760 = vpop.f32.mrb[0].mxu0
    %v761 = vpop.f32.mrb[0].mxu0
    %762 = vdwg.mxu0
    %v795 = vunpack.c.l.b16 %v457
    %v796 = vunpack.c.h.b16 %v457
    %v797 = vunpack.c.l.b16 %v458
    %v798 = vunpack.c.h.b16 %v458
    %v799 = vunpack.c.l.b16 %v459
    %v800 = vunpack.c.h.b16 %v459
    %v801 = vunpack.c.l.b16 %v460
    %v802 = vunpack.c.h.b16 %v460
    %v803 = vunpack.c.l.b16 %v461
    %v804 = vunpack.c.h.b16 %v461
    %v805 = vunpack.c.l.b16 %v462
    %v806 = vunpack.c.h.b16 %v462
    %v807 = vunpack.c.l.b16 %v463
    %v808 = vunpack.c.h.b16 %v463
    %v809 = vunpack.c.l.b16 %v464
    %v810 = vunpack.c.h.b16 %v464
    %v811 = vunpack.c.l.b16 %v465
    %v812 = vunpack.c.h.b16 %v465
    %v813 = vunpack.c.l.b16 %v466
    %v814 = vunpack.c.h.b16 %v466
    %v815 = vunpack.c.l.b16 %v467
    %v816 = vunpack.c.h.b16 %v467
    %v817 = vunpack.c.l.b16 %v468
    %v818 = vunpack.c.h.b16 %v468
    %v819 = vunpack.c.l.b16 %v469
    %v820 = vunpack.c.h.b16 %v469
    %v821 = vunpack.c.l.b16 %v470
    %v822 = vunpack.c.h.b16 %v470
    %v823 = vunpack.c.l.b16 %v471
    %v824 = vunpack.c.h.b16 %v471
    %v825 = vunpack.c.l.b16 %v472
    %v826 = vunpack.c.h.b16 %v472
    %v827 = vunpack.c.l.b16 %v473
    %v828 = vunpack.c.h.b16 %v473
    %v829 = vunpack.c.l.b16 %v474
    %v830 = vunpack.c.h.b16 %v474
    %v831 = vunpack.c.l.b16 %v475
    %v832 = vunpack.c.h.b16 %v475
    %v833 = vunpack.c.l.b16 %v476
    %v834 = vunpack.c.h.b16 %v476
    %v835 = vunpack.c.l.b16 %v477
    %v836 = vunpack.c.h.b16 %v477
    %v837 = vunpack.c.l.b16 %v478
    %v838 = vunpack.c.h.b16 %v478
    %v839 = vunpack.c.l.b16 %v479
    %v840 = vunpack.c.h.b16 %v479
    %v841 = vunpack.c.l.b16 %v480
    %v842 = vunpack.c.h.b16 %v480
    %v843 = vunpack.c.l.b16 %v481
    %v844 = vunpack.c.h.b16 %v481
    %v845 = vunpack.c.l.b16 %v482
    %v846 = vunpack.c.h.b16 %v482
    %v847 = vunpack.c.l.b16 %v483
    %v848 = vunpack.c.h.b16 %v483
    %v849 = vunpack.c.l.b16 %v484
    %v850 = vunpack.c.h.b16 %v484
    %v851 = vunpack.c.l.b16 %v485
    %v852 = vunpack.c.h.b16 %v485
    %v853 = vunpack.c.l.b16 %v486
    %v854 = vunpack.c.h.b16 %v486
    %v855 = vunpack.c.l.b16 %v487
    %v856 = vunpack.c.h.b16 %v487
    %v857 = vunpack.c.l.b16 %v488
    %v858 = vunpack.c.h.b16 %v488
    %v859 = vpack.c.b16 %v799, %v795
    %v860 = vpack.c.b16 %v800, %v796
    %v861 = vpack.c.b16 %v801, %v797
    %v862 = vpack.c.b16 %v802, %v798
    %v863 = vpack.c.b16 %v807, %v803
    %v864 = vpack.c.b16 %v808, %v804
    %v865 = vpack.c.b16 %v809, %v805
    %v866 = vpack.c.b16 %v810, %v806
    %v867 = vpack.c.b16 %v815, %v811
    %v868 = vpack.c.b16 %v816, %v812
    %v869 = vpack.c.b16 %v817, %v813
    %v870 = vpack.c.b16 %v818, %v814
    %v871 = vpack.c.b16 %v823, %v819
    %v872 = vpack.c.b16 %v824, %v820
    %v873 = vpack.c.b16 %v825, %v821
    %v874 = vpack.c.b16 %v826, %v822
    %v875 = vpack.c.b16 %v831, %v827
    %v876 = vpack.c.b16 %v832, %v828
    %v877 = vpack.c.b16 %v833, %v829
    %v878 = vpack.c.b16 %v834, %v830
    %v879 = vpack.c.b16 %v839, %v835
    %v880 = vpack.c.b16 %v840, %v836
    %v881 = vpack.c.b16 %v841, %v837
    %v882 = vpack.c.b16 %v842, %v838
    %v883 = vpack.c.b16 %v847, %v843
    %v884 = vpack.c.b16 %v848, %v844
    %v885 = vpack.c.b16 %v849, %v845
    %v886 = vpack.c.b16 %v850, %v846
    %v887 = vpack.c.b16 %v855, %v851
    %v888 = vpack.c.b16 %v856, %v852
    %v889 = vpack.c.b16 %v857, %v853
    %v890 = vpack.c.b16 %v858, %v854
    %923 = vmatprep.subr.bf16.mxu0 %v860
    %924 = vmatpush1.bf16.msra.mxu0 %v859
    %925 = vmatprep.subr.bf16.mxu0 %v864
    %926 = vmatpush1.bf16.msra.mxu0 %v863
    %927 = vmatprep.subr.bf16.mxu0 %v868
    %928 = vmatpush1.bf16.msra.mxu0 %v867
    %929 = vmatprep.subr.bf16.mxu0 %v872
    %930 = vmatpush1.bf16.msra.mxu0 %v871
    %931 = vmatprep.subr.bf16.mxu0 %v876
    %932 = vmatpush1.bf16.msra.mxu0 %v875
    %933 = vmatprep.subr.bf16.mxu0 %v880
    %934 = vmatpush1.bf16.msra.mxu0 %v879
    %935 = vmatprep.subr.bf16.mxu0 %v884
    %936 = vmatpush1.bf16.msra.mxu0 %v883
    %937 = vmatprep.subr.bf16.mxu0 %v888
    %938 = vmatpush1.bf16.msra.mxu0 %v887
    %939 = vmatprep.subr.bf16.mxu0 0
    %940 = vmatpush1.bf16.msra.mxu0 0
    %941 = vmatprep.subr.bf16.mxu0 0
    %942 = vmatpush1.bf16.msra.mxu0 0
    %943 = vmatprep.subr.bf16.mxu0 0
    %944 = vmatpush1.bf16.msra.mxu0 0
    %945 = vmatprep.subr.bf16.mxu0 0
    %946 = vmatpush1.bf16.msra.mxu0 0
    %947 = vmatprep.subr.bf16.mxu0 0
    %948 = vmatpush1.bf16.msra.mxu0 0
    %949 = vmatprep.subr.bf16.mxu0 0
    %950 = vmatpush1.bf16.msra.mxu0 0
    %951 = vmatprep.subr.bf16.mxu0 0
    %952 = vmatpush1.bf16.msra.mxu0 0
    %953 = vmatprep.subr.bf16.mxu0 0
    %954 = vmatpush1.bf16.msra.mxu0 0
    %955 = vmatprep.mubr.bf16.mxu0 0
    %956 = vmatmul.mubr.bf16.gmra.mrb[0].mxu0 %v456
    %v957 = vpop.f32.mrb[0].mxu0
    %v958 = vadd.f32 %v716, %v957
    %v959 = vpop.f32.mrb[0].mxu0
    %v960 = vadd.f32 %v718, %v959
    %v961 = vpop.f32.mrb[0].mxu0
    %v962 = vpop.f32.mrb[0].mxu0
    %963 = vdwg.mxu0
    %964 = vmatprep.subr.bf16.mxu0 %v862
    %965 = vmatpush1.bf16.msra.mxu0 %v861
    %966 = vmatprep.subr.bf16.mxu0 %v866
    %967 = vmatpush1.bf16.msra.mxu0 %v865
    %968 = vmatprep.subr.bf16.mxu0 %v870
    %969 = vmatpush1.bf16.msra.mxu0 %v869
    %970 = vmatprep.subr.bf16.mxu0 %v874
    %971 = vmatpush1.bf16.msra.mxu0 %v873
    %972 = vmatprep.subr.bf16.mxu0 %v878
    %973 = vmatpush1.bf16.msra.mxu0 %v877
    %974 = vmatprep.subr.bf16.mxu0 %v882
    %975 = vmatpush1.bf16.msra.mxu0 %v881
    %976 = vmatprep.subr.bf16.mxu0 %v886
    %977 = vmatpush1.bf16.msra.mxu0 %v885
    %978 = vmatprep.subr.bf16.mxu0 %v890
    %979 = vmatpush1.bf16.msra.mxu0 %v889
    %980 = vmatprep.subr.bf16.mxu0 0
    %981 = vmatpush1.bf16.msra.mxu0 0
    %982 = vmatprep.subr.bf16.mxu0 0
    %983 = vmatpush1.bf16.msra.mxu0 0
    %984 = vmatprep.subr.bf16.mxu0 0
    %985 = vmatpush1.bf16.msra.mxu0 0
    %986 = vmatprep.subr.bf16.mxu0 0
    %987 = vmatpush1.bf16.msra.mxu0 0
    %988 = vmatprep.subr.bf16.mxu0 0
    %989 = vmatpush1.bf16.msra.mxu0 0
    %990 = vmatprep.subr.bf16.mxu0 0
    %991 = vmatpush1.bf16.msra.mxu0 0
    %992 = vmatprep.subr.bf16.mxu0 0
    %993 = vmatpush1.bf16.msra.mxu0 0
    %994 = vmatprep.subr.bf16.mxu0 0
    %995 = vmatpush1.bf16.msra.mxu0 0
    %996 = vmatprep.mubr.bf16.mxu0 0
    %997 = vmatmul.mubr.bf16.gmra.mrb[0].mxu0 %v456
    %v998 = vpop.f32.mrb[0].mxu0
    %v999 = vadd.f32 %v757, %v998
    %v1000 = vpop.f32.mrb[0].mxu0
    %v1001 = vadd.f32 %v759, %v1000
    %v1002 = vpop.f32.mrb[0].mxu0
    %v1003 = vpop.f32.mrb[0].mxu0
    %1004 = vdwg.mxu0
    %v1005 = vld [vmem:[%s6] sm:$0xf]
    %v1007 = vlaneseq
    %v1008 = vshrl.u32 %v1007, 7
    %v1009 = vsub.s32 0, %v1008
    %v1010 = vrot.slane %v1005, %v1009
    %v1011 = vlaneseq
    %v1012 = vshrl.u32 %v1011, 7
    %v1013 = vsub.s32 1, %v1012
    %v1014 = vrot.slane %v1005, %v1013
    %v1015 = vlaneseq
    %v1016 = vshrl.u32 %v1015, 7
    %v1017 = vsub.s32 2, %v1016
    %v1018 = vrot.slane %v1005, %v1017
    %v1019 = vlaneseq
    %v1020 = vshrl.u32 %v1019, 7
    %v1021 = vsub.s32 3, %v1020
    %v1022 = vrot.slane %v1005, %v1021
    %v1027 = vadd.f32 %v958, %v1010
    %v1028 = vadd.f32 %v960, %v1014
    %v1029 = vadd.f32 %v999, %v1018
    %v1030 = vadd.f32 %v1001, %v1022
    %v1031 = vxor.u32 %v1027, 2147483648
    %v1032 = vxor.u32 %v1028, 2147483648
    %v1033 = vxor.u32 %v1029, 2147483648
    %v1034 = vmul.f32 %v1031, 1.442695
    %v1035 = vpow.pop %v1034
    %v1036 = vmul.f32 %v1032, 1.442695
    %v1037 = vpow.pop %v1036
    %v1038 = vmul.f32 %v1033, 1.442695
    %v1039 = vpow.pop %v1038
    %v1040 = vadd.f32 %v1035, 1.0
    %v1041 = vadd.f32 %v1037, 1.0
    %v1042 = vadd.f32 %v1039, 1.0
    %v1043 = vrcp.pop %v1040
    %v1044 = vmul.f32 1.0, %v1043
    %v1045 = vrcp.pop %v1041
    %v1046 = vmul.f32 1.0, %v1045
    %v1047 = vrcp.pop %v1042
    %v1048 = vmul.f32 1.0, %v1047
    %v1049 = vtanh.pop %v1030
    %v1050 = vmul.f32 %v1046, 0.0
    %v1051 = vmul.f32 %v1044, %v1049
    %v1052 = vadd.f32 %v1050, %v1051
    %v1053 = vtanh.pop %v1052
    %v1054 = vmul.f32 %v1048, %v1053
    %s1055 = scalar_lea.vmem [#allocation2], 1
    %v1056 = vld [vmem:[%s1055] ss:$8 sm:$0xf]
    %1057 = vmatprep.subr.bf16.mxu0 %v261
    %1058 = vmatpush1.bf16.msra.mxu0 %v260
    %1059 = vmatprep.subr.bf16.mxu0 %v265
    %1060 = vmatpush1.bf16.msra.mxu0 %v264
    %1061 = vmatprep.subr.bf16.mxu0 %v269
    %1062 = vmatpush1.bf16.msra.mxu0 %v268
    %1063 = vmatprep.subr.bf16.mxu0 %v273
    %1064 = vmatpush1.bf16.msra.mxu0 %v272
    %1065 = vmatprep.subr.bf16.mxu0 %v277
    %1066 = vmatpush1.bf16.msra.mxu0 %v276
    %1067 = vmatprep.subr.bf16.mxu0 %v281
    %1068 = vmatpush1.bf16.msra.mxu0 %v280
    %1069 = vmatprep.subr.bf16.mxu0 %v285
    %1070 = vmatpush1.bf16.msra.mxu0 %v284
    %1071 = vmatprep.subr.bf16.mxu0 %v289
    %1072 = vmatpush1.bf16.msra.mxu0 %v288
    %1073 = vmatprep.subr.bf16.mxu0 0
    %1074 = vmatpush1.bf16.msra.mxu0 0
    %1075 = vmatprep.subr.bf16.mxu0 0
    %1076 = vmatpush1.bf16.msra.mxu0 0
    %1077 = vmatprep.subr.bf16.mxu0 0
    %1078 = vmatpush1.bf16.msra.mxu0 0
    %1079 = vmatprep.subr.bf16.mxu0 0
    %1080 = vmatpush1.bf16.msra.mxu0 0
    %1081 = vmatprep.subr.bf16.mxu0 0
    %1082 = vmatpush1.bf16.msra.mxu0 0
    %1083 = vmatprep.subr.bf16.mxu0 0
    %1084 = vmatpush1.bf16.msra.mxu0 0
    %1085 = vmatprep.subr.bf16.mxu0 0
    %1086 = vmatpush1.bf16.msra.mxu0 0
    %1087 = vmatprep.subr.bf16.mxu0 0
    %1088 = vmatpush1.bf16.msra.mxu0 0
    %1089 = vmatprep.mubr.bf16.mxu0 0
    %1090 = vmatmul.mubr.bf16.gmra.mrb[0].mxu0 %v456
    %v1091 = vpop.f32.mrb[0].mxu0
    %v1092 = vadd.f32 0.0, %v1091
    %v1093 = vpop.f32.mrb[0].mxu0
    %v1094 = vadd.f32 0.0, %v1093
    %v1095 = vpop.f32.mrb[0].mxu0
    %v1096 = vpop.f32.mrb[0].mxu0
    %1097 = vdwg.mxu0
    %1098 = vmatprep.subr.bf16.mxu0 %v263
    %1099 = vmatpush1.bf16.msra.mxu0 %v262
    %1100 = vmatprep.subr.bf16.mxu0 %v267
    %1101 = vmatpush1.bf16.msra.mxu0 %v266
    %1102 = vmatprep.subr.bf16.mxu0 %v271
    %1103 = vmatpush1.bf16.msra.mxu0 %v270
    %1104 = vmatprep.subr.bf16.mxu0 %v275
    %1105 = vmatpush1.bf16.msra.mxu0 %v274
    %1106 = vmatprep.subr.bf16.mxu0 %v279
    %1107 = vmatpush1.bf16.msra.mxu0 %v278
    %1108 = vmatprep.subr.bf16.mxu0 %v283
    %1109 = vmatpush1.bf16.msra.mxu0 %v282
    %1110 = vmatprep.subr.bf16.mxu0 %v287
    %1111 = vmatpush1.bf16.msra.mxu0 %v286
    %1112 = vmatprep.subr.bf16.mxu0 %v291
    %1113 = vmatpush1.bf16.msra.mxu0 %v290
    %1114 = vmatprep.subr.bf16.mxu0 0
    %1115 = vmatpush1.bf16.msra.mxu0 0
    %1116 = vmatprep.subr.bf16.mxu0 0
    %1117 = vmatpush1.bf16.msra.mxu0 0
    %1118 = vmatprep.subr.bf16.mxu0 0
    %1119 = vmatpush1.bf16.msra.mxu0 0
    %1120 = vmatprep.subr.bf16.mxu0 0
    %1121 = vmatpush1.bf16.msra.mxu0 0
    %1122 = vmatprep.subr.bf16.mxu0 0
    %1123 = vmatpush1.bf16.msra.mxu0 0
    %1124 = vmatprep.subr.bf16.mxu0 0
    %1125 = vmatpush1.bf16.msra.mxu0 0
    %1126 = vmatprep.subr.bf16.mxu0 0
    %1127 = vmatpush1.bf16.msra.mxu0 0
    %1128 = vmatprep.subr.bf16.mxu0 0
    %1129 = vmatpush1.bf16.msra.mxu0 0
    %1130 = vmatprep.mubr.bf16.mxu0 0
    %1131 = vmatmul.mubr.bf16.gmra.mrb[0].mxu0 %v456
    %v1132 = vpop.f32.mrb[0].mxu0
    %v1133 = vadd.f32 0.0, %v1132
    %v1134 = vpop.f32.mrb[0].mxu0
    %v1135 = vadd.f32 0.0, %v1134
    %v1136 = vpop.f32.mrb[0].mxu0
    %v1137 = vpop.f32.mrb[0].mxu0
    %1138 = vdwg.mxu0
    %v1143 = vcombine.low %v1092, %v1094
    %v1144 = vcombine.low %v1133, %v1135
    %v1146 = vunpack.c.l.s4 1966171168
    %v1147 = vunpack.c.0.s8 %v1146
    %v1148 = vlaneseq
    %v1149 = vshrl.u32 %v1148, 7
    %v1150 = vsub.s32 %v1147, %v1149
    %v1151 = vrot.slane %v1143, %v1150
    %v1153 = vunpack.c.l.s4 1966171168
    %v1154 = vunpack.c.0.s8 %v1153
    %v1155 = vlaneseq
    %v1156 = vshrl.u32 %v1155, 7
    %v1157 = vsub.s32 %v1154, %v1156
    %v1158 = vrot.slane %v1144, %v1157
    %v1159 = vcombine.low %v1151, %v1158
    %v1161 = vunpack.c.l.s4 1966171168
    %v1162 = vunpack.c.0.s8 %v1161
    %v1163 = vlaneseq
    %v1164 = vshrl.u32 %v1163, 7
    %v1165 = vsub.s32 %v1162, %v1164
    %v1166 = vrot.slane %v1159, %v1165
    %v1168 = vadd.f32 %v1056, %v1166
    %v1169 = vxor.u32 %v1168, 2147483648
    %v1170 = vmul.f32 %v1169, 1.442695
    %v1171 = vpow.pop %v1170
    %v1172 = vadd.f32 %v1171, 1.0
    %v1173 = vrcp.pop %v1172
    %v1174 = vmul.f32 1.0, %v1173
    %v1176 = vrot.slane %v1168, 3
    %v1178 = vtanh.pop %v1176
    %v1180 = vrot.slane %v1174, 1
    %v1182 = vmul.f32 %v1180, %v451
    %v1183 = vmul.f32 %v1174, %v1178
    %v1184 = vadd.f32 %v1182, %v1183
    %v1185 = vtanh.pop %v1184
    %v1186 = vrot.slane %v1174, 2
    %v1188 = vmul.f32 %v1186, %v1185
    %v1189 = vpack.c.bf16 %v1188, %v1188
    %v1190 = vpack.c.bf16 %v1054, %v1054
    %1191 = vmatprep.subr.bf16.mxu0 %v618
    %1192 = vmatpush1.bf16.msra.mxu0 %v617
    %1193 = vmatprep.subr.bf16.mxu0 %v622
    %1194 = vmatpush1.bf16.msra.mxu0 %v621
    %1195 = vmatprep.subr.bf16.mxu0 %v626
    %1196 = vmatpush1.bf16.msra.mxu0 %v625
    %1197 = vmatprep.subr.bf16.mxu0 %v630
    %1198 = vmatpush1.bf16.msra.mxu0 %v629
    %1199 = vmatprep.subr.bf16.mxu0 %v634
    %1200 = vmatpush1.bf16.msra.mxu0 %v633
    %1201 = vmatprep.subr.bf16.mxu0 %v638
    %1202 = vmatpush1.bf16.msra.mxu0 %v637
    %1203 = vmatprep.subr.bf16.mxu0 %v642
    %1204 = vmatpush1.bf16.msra.mxu0 %v641
    %1205 = vmatprep.subr.bf16.mxu0 %v646
    %1206 = vmatpush1.bf16.msra.mxu0 %v645
    %1207 = vmatprep.subr.bf16.mxu0 0
    %1208 = vmatpush1.bf16.msra.mxu0 0
    %1209 = vmatprep.subr.bf16.mxu0 0
    %1210 = vmatpush1.bf16.msra.mxu0 0
    %1211 = vmatprep.subr.bf16.mxu0 0
    %1212 = vmatpush1.bf16.msra.mxu0 0
    %1213 = vmatprep.subr.bf16.mxu0 0
    %1214 = vmatpush1.bf16.msra.mxu0 0
    %1215 = vmatprep.subr.bf16.mxu0 0
    %1216 = vmatpush1.bf16.msra.mxu0 0
    %1217 = vmatprep.subr.bf16.mxu0 0
    %1218 = vmatpush1.bf16.msra.mxu0 0
    %1219 = vmatprep.subr.bf16.mxu0 0
    %1220 = vmatpush1.bf16.msra.mxu0 0
    %1221 = vmatprep.subr.bf16.mxu0 0
    %1222 = vmatpush1.bf16.msra.mxu0 0
    %1223 = vmatprep.mubr.bf16.mxu0 0
    %1224 = vmatmul.mubr.bf16.gmra.mrb[0].mxu0 %v1190
    %v1225 = vpop.f32.mrb[0].mxu0
    %v1226 = vadd.f32 0.0, %v1225
    %v1227 = vpop.f32.mrb[0].mxu0
    %v1228 = vadd.f32 0.0, %v1227
    %v1229 = vpop.f32.mrb[0].mxu0
    %v1230 = vpop.f32.mrb[0].mxu0
    %1231 = vdwg.mxu0
    %1232 = vmatprep.subr.bf16.mxu0 %v620
    %1233 = vmatpush1.bf16.msra.mxu0 %v619
    %1234 = vmatprep.subr.bf16.mxu0 %v624
    %1235 = vmatpush1.bf16.msra.mxu0 %v623
    %1236 = vmatprep.subr.bf16.mxu0 %v628
    %1237 = vmatpush1.bf16.msra.mxu0 %v627
    %1238 = vmatprep.subr.bf16.mxu0 %v632
    %1239 = vmatpush1.bf16.msra.mxu0 %v631
    %1240 = vmatprep.subr.bf16.mxu0 %v636
    %1241 = vmatpush1.bf16.msra.mxu0 %v635
    %1242 = vmatprep.subr.bf16.mxu0 %v640
    %1243 = vmatpush1.bf16.msra.mxu0 %v639
    %1244 = vmatprep.subr.bf16.mxu0 %v644
    %1245 = vmatpush1.bf16.msra.mxu0 %v643
    %1246 = vmatprep.subr.bf16.mxu0 %v648
    %1247 = vmatpush1.bf16.msra.mxu0 %v647
    %1248 = vmatprep.subr.bf16.mxu0 0
    %1249 = vmatpush1.bf16.msra.mxu0 0
    %1250 = vmatprep.subr.bf16.mxu0 0
    %1251 = vmatpush1.bf16.msra.mxu0 0
    %1252 = vmatprep.subr.bf16.mxu0 0
    %1253 = vmatpush1.bf16.msra.mxu0 0
    %1254 = vmatprep.subr.bf16.mxu0 0
    %1255 = vmatpush1.bf16.msra.mxu0 0
    %1256 = vmatprep.subr.bf16.mxu0 0
    %1257 = vmatpush1.bf16.msra.mxu0 0
    %1258 = vmatprep.subr.bf16.mxu0 0
    %1259 = vmatpush1.bf16.msra.mxu0 0
    %1260 = vmatprep.subr.bf16.mxu0 0
    %1261 = vmatpush1.bf16.msra.mxu0 0
    %1262 = vmatprep.subr.bf16.mxu0 0
    %1263 = vmatpush1.bf16.msra.mxu0 0
    %1264 = vmatprep.mubr.bf16.mxu0 0
    %1265 = vmatmul.mubr.bf16.gmra.mrb[0].mxu0 %v1190
    %v1266 = vpop.f32.mrb[0].mxu0
    %v1267 = vadd.f32 0.0, %v1266
    %v1268 = vpop.f32.mrb[0].mxu0
    %v1269 = vadd.f32 0.0, %v1268
    %v1270 = vpop.f32.mrb[0].mxu0
    %v1271 = vpop.f32.mrb[0].mxu0
    %1272 = vdwg.mxu0
    %1273 = vmatprep.subr.bf16.mxu0 %v860
    %1274 = vmatpush1.bf16.msra.mxu0 %v859
    %1275 = vmatprep.subr.bf16.mxu0 %v864
    %1276 = vmatpush1.bf16.msra.mxu0 %v863
    %1277 = vmatprep.subr.bf16.mxu0 %v868
    %1278 = vmatpush1.bf16.msra.mxu0 %v867
    %1279 = vmatprep.subr.bf16.mxu0 %v872
    %1280 = vmatpush1.bf16.msra.mxu0 %v871
    %1281 = vmatprep.subr.bf16.mxu0 %v876
    %1282 = vmatpush1.bf16.msra.mxu0 %v875
    %1283 = vmatprep.subr.bf16.mxu0 %v880
    %1284 = vmatpush1.bf16.msra.mxu0 %v879
    %1285 = vmatprep.subr.bf16.mxu0 %v884
    %1286 = vmatpush1.bf16.msra.mxu0 %v883
    %1287 = vmatprep.subr.bf16.mxu0 %v888
    %1288 = vmatpush1.bf16.msra.mxu0 %v887
    %1289 = vmatprep.subr.bf16.mxu0 0
    %1290 = vmatpush1.bf16.msra.mxu0 0
    %1291 = vmatprep.subr.bf16.mxu0 0
    %1292 = vmatpush1.bf16.msra.mxu0 0
    %1293 = vmatprep.subr.bf16.mxu0 0
    %1294 = vmatpush1.bf16.msra.mxu0 0
    %1295 = vmatprep.subr.bf16.mxu0 0
    %1296 = vmatpush1.bf16.msra.mxu0 0
    %1297 = vmatprep.subr.bf16.mxu0 0
    %1298 = vmatpush1.bf16.msra.mxu0 0
    %1299 = vmatprep.subr.bf16.mxu0 0
    %1300 = vmatpush1.bf16.msra.mxu0 0
    %1301 = vmatprep.subr.bf16.mxu0 0
    %1302 = vmatpush1.bf16.msra.mxu0 0
    %1303 = vmatprep.subr.bf16.mxu0 0
    %1304 = vmatpush1.bf16.msra.mxu0 0
    %1305 = vmatprep.mubr.bf16.mxu0 0
    %1306 = vmatmul.mubr.bf16.gmra.mrb[0].mxu0 %v1189
    %v1307 = vpop.f32.mrb[0].mxu0
    %v1308 = vadd.f32 %v1226, %v1307
    %v1309 = vpop.f32.mrb[0].mxu0
    %v1310 = vadd.f32 %v1228, %v1309
    %v1311 = vpop.f32.mrb[0].mxu0
    %v1312 = vpop.f32.mrb[0].mxu0
    %1313 = vdwg.mxu0
    %1314 = vmatprep.subr.bf16.mxu0 %v862
    %1315 = vmatpush1.bf16.msra.mxu0 %v861
    %1316 = vmatprep.subr.bf16.mxu0 %v866
    %1317 = vmatpush1.bf16.msra.mxu0 %v865
    %1318 = vmatprep.subr.bf16.mxu0 %v870
    %1319 = vmatpush1.bf16.msra.mxu0 %v869
    %1320 = vmatprep.subr.bf16.mxu0 %v874
    %1321 = vmatpush1.bf16.msra.mxu0 %v873
    %1322 = vmatprep.subr.bf16.mxu0 %v878
    %1323 = vmatpush1.bf16.msra.mxu0 %v877
    %1324 = vmatprep.subr.bf16.mxu0 %v882
    %1325 = vmatpush1.bf16.msra.mxu0 %v881
    %1326 = vmatprep.subr.bf16.mxu0 %v886
    %1327 = vmatpush1.bf16.msra.mxu0 %v885
    %1328 = vmatprep.subr.bf16.mxu0 %v890
    %1329 = vmatpush1.bf16.msra.mxu0 %v889
    %1330 = vmatprep.subr.bf16.mxu0 0
    %1331 = vmatpush1.bf16.msra.mxu0 0
    %1332 = vmatprep.subr.bf16.mxu0 0
    %1333 = vmatpush1.bf16.msra.mxu0 0
    %1334 = vmatprep.subr.bf16.mxu0 0
    %1335 = vmatpush1.bf16.msra.mxu0 0
    %1336 = vmatprep.subr.bf16.mxu0 0
    %1337 = vmatpush1.bf16.msra.mxu0 0
    %1338 = vmatprep.subr.bf16.mxu0 0
    %1339 = vmatpush1.bf16.msra.mxu0 0
    %1340 = vmatprep.subr.bf16.mxu0 0
    %1341 = vmatpush1.bf16.msra.mxu0 0
    %1342 = vmatprep.subr.bf16.mxu0 0
    %1343 = vmatpush1.bf16.msra.mxu0 0
    %1344 = vmatprep.subr.bf16.mxu0 0
    %1345 = vmatpush1.bf16.msra.mxu0 0
    %1346 = vmatprep.mubr.bf16.mxu0 0
    %1347 = vmatmul.mubr.bf16.gmra.mrb[0].mxu0 %v1189
    %v1348 = vpop.f32.mrb[0].mxu0
    %v1349 = vadd.f32 %v1267, %v1348
    %v1350 = vpop.f32.mrb[0].mxu0
    %v1351 = vadd.f32 %v1269, %v1350
    %v1352 = vpop.f32.mrb[0].mxu0
    %v1353 = vpop.f32.mrb[0].mxu0
    %1354 = vdwg.mxu0
    %v1355 = vadd.f32 %v1308, %v1010
    %v1356 = vadd.f32 %v1310, %v1014
    %v1357 = vadd.f32 %v1349, %v1018
    %v1358 = vadd.f32 %v1351, %v1022
    %v1359 = vxor.u32 %v1355, 2147483648
    %v1360 = vxor.u32 %v1356, 2147483648
    %v1361 = vxor.u32 %v1357, 2147483648
    %v1362 = vmul.f32 %v1359, 1.442695
    %v1363 = vpow.pop %v1362
    %v1364 = vmul.f32 %v1360, 1.442695
    %v1365 = vpow.pop %v1364
    %v1366 = vmul.f32 %v1361, 1.442695
    %v1367 = vpow.pop %v1366
    %v1368 = vadd.f32 %v1363, 1.0
    %v1369 = vadd.f32 %v1365, 1.0
    %v1370 = vadd.f32 %v1367, 1.0
    %v1371 = vrcp.pop %v1368
    %v1372 = vmul.f32 1.0, %v1371
    %v1373 = vrcp.pop %v1369
    %v1374 = vmul.f32 1.0, %v1373
    %v1375 = vrcp.pop %v1370
    %v1376 = vmul.f32 1.0, %v1375
    %v1377 = vtanh.pop %v1358
    %v1378 = vmul.f32 %v1374, %v1052
    %v1379 = vmul.f32 %v1372, %v1377
    %v1380 = vadd.f32 %v1378, %v1379
    %v1381 = vtanh.pop %v1380
    %v1382 = vmul.f32 %v1376, %v1381
    %s1383 = scalar_lea.vmem [#allocation2], 2
    %v1384 = vld [vmem:[%s1383] ss:$8 sm:$0xf]
    %1385 = vmatprep.subr.bf16.mxu0 %v261
    %1386 = vmatpush1.bf16.msra.mxu0 %v260
    %1387 = vmatprep.subr.bf16.mxu0 %v265
    %1388 = vmatpush1.bf16.msra.mxu0 %v264
    %1389 = vmatprep.subr.bf16.mxu0 %v269
    %1390 = vmatpush1.bf16.msra.mxu0 %v268
    %1391 = vmatprep.subr.bf16.mxu0 %v273
    %1392 = vmatpush1.bf16.msra.mxu0 %v272
    %1393 = vmatprep.subr.bf16.mxu0 %v277
    %1394 = vmatpush1.bf16.msra.mxu0 %v276
    %1395 = vmatprep.subr.bf16.mxu0 %v281
    %1396 = vmatpush1.bf16.msra.mxu0 %v280
    %1397 = vmatprep.subr.bf16.mxu0 %v285
    %1398 = vmatpush1.bf16.msra.mxu0 %v284
    %1399 = vmatprep.subr.bf16.mxu0 %v289
    %1400 = vmatpush1.bf16.msra.mxu0 %v288
    %1401 = vmatprep.subr.bf16.mxu0 0
    %1402 = vmatpush1.bf16.msra.mxu0 0
    %1403 = vmatprep.subr.bf16.mxu0 0
    %1404 = vmatpush1.bf16.msra.mxu0 0
    %1405 = vmatprep.subr.bf16.mxu0 0
    %1406 = vmatpush1.bf16.msra.mxu0 0
    %1407 = vmatprep.subr.bf16.mxu0 0
    %1408 = vmatpush1.bf16.msra.mxu0 0
    %1409 = vmatprep.subr.bf16.mxu0 0
    %1410 = vmatpush1.bf16.msra.mxu0 0
    %1411 = vmatprep.subr.bf16.mxu0 0
    %1412 = vmatpush1.bf16.msra.mxu0 0
    %1413 = vmatprep.subr.bf16.mxu0 0
    %1414 = vmatpush1.bf16.msra.mxu0 0
    %1415 = vmatprep.subr.bf16.mxu0 0
    %1416 = vmatpush1.bf16.msra.mxu0 0
    %1417 = vmatprep.mubr.bf16.mxu0 0
    %1418 = vmatmul.mubr.bf16.gmra.mrb[0].mxu0 %v1189
    %v1419 = vpop.f32.mrb[0].mxu0
    %v1420 = vadd.f32 0.0, %v1419
    %v1421 = vpop.f32.mrb[0].mxu0
    %v1422 = vadd.f32 0.0, %v1421
    %v1423 = vpop.f32.mrb[0].mxu0
    %v1424 = vpop.f32.mrb[0].mxu0
    %1425 = vdwg.mxu0
    %1426 = vmatprep.subr.bf16.mxu0 %v263
    %1427 = vmatpush1.bf16.msra.mxu0 %v262
    %1428 = vmatprep.subr.bf16.mxu0 %v267
    %1429 = vmatpush1.bf16.msra.mxu0 %v266
    %1430 = vmatprep.subr.bf16.mxu0 %v271
    %1431 = vmatpush1.bf16.msra.mxu0 %v270
    %1432 = vmatprep.subr.bf16.mxu0 %v275
    %1433 = vmatpush1.bf16.msra.mxu0 %v274
    %1434 = vmatprep.subr.bf16.mxu0 %v279
    %1435 = vmatpush1.bf16.msra.mxu0 %v278
    %1436 = vmatprep.subr.bf16.mxu0 %v283
    %1437 = vmatpush1.bf16.msra.mxu0 %v282
    %1438 = vmatprep.subr.bf16.mxu0 %v287
    %1439 = vmatpush1.bf16.msra.mxu0 %v286
    %1440 = vmatprep.subr.bf16.mxu0 %v291
    %1441 = vmatpush1.bf16.msra.mxu0 %v290
    %1442 = vmatprep.subr.bf16.mxu0 0
    %1443 = vmatpush1.bf16.msra.mxu0 0
    %1444 = vmatprep.subr.bf16.mxu0 0
    %1445 = vmatpush1.bf16.msra.mxu0 0
    %1446 = vmatprep.subr.bf16.mxu0 0
    %1447 = vmatpush1.bf16.msra.mxu0 0
    %1448 = vmatprep.subr.bf16.mxu0 0
    %1449 = vmatpush1.bf16.msra.mxu0 0
    %1450 = vmatprep.subr.bf16.mxu0 0
    %1451 = vmatpush1.bf16.msra.mxu0 0
    %1452 = vmatprep.subr.bf16.mxu0 0
    %1453 = vmatpush1.bf16.msra.mxu0 0
    %1454 = vmatprep.subr.bf16.mxu0 0
    %1455 = vmatpush1.bf16.msra.mxu0 0
    %1456 = vmatprep.subr.bf16.mxu0 0
    %1457 = vmatpush1.bf16.msra.mxu0 0
    %1458 = vmatprep.mubr.bf16.mxu0 0
    %1459 = vmatmul.mubr.bf16.gmra.mrb[0].mxu0 %v1189
    %v1460 = vpop.f32.mrb[0].mxu0
    %v1461 = vadd.f32 0.0, %v1460
    %v1462 = vpop.f32.mrb[0].mxu0
    %v1463 = vadd.f32 0.0, %v1462
    %v1464 = vpop.f32.mrb[0].mxu0
    %v1465 = vpop.f32.mrb[0].mxu0
    %1466 = vdwg.mxu0
    %v1471 = vcombine.low %v1420, %v1422
    %v1472 = vcombine.low %v1461, %v1463
    %v1474 = vunpack.c.l.s4 1966171168
    %v1475 = vunpack.c.0.s8 %v1474
    %v1476 = vlaneseq
    %v1477 = vshrl.u32 %v1476, 7
    %v1478 = vsub.s32 %v1475, %v1477
    %v1479 = vrot.slane %v1471, %v1478
    %v1481 = vunpack.c.l.s4 1966171168
    %v1482 = vunpack.c.0.s8 %v1481
    %v1483 = vlaneseq
    %v1484 = vshrl.u32 %v1483, 7
    %v1485 = vsub.s32 %v1482, %v1484
    %v1486 = vrot.slane %v1472, %v1485
    %v1487 = vcombine.low %v1479, %v1486
    %v1489 = vunpack.c.l.s4 1966171168
    %v1490 = vunpack.c.0.s8 %v1489
    %v1491 = vlaneseq
    %v1492 = vshrl.u32 %v1491, 7
    %v1493 = vsub.s32 %v1490, %v1492
    %v1494 = vrot.slane %v1487, %v1493
    %v1496 = vadd.f32 %v1384, %v1494
    %v1497 = vxor.u32 %v1496, 2147483648
    %v1498 = vmul.f32 %v1497, 1.442695
    %v1499 = vpow.pop %v1498
    %v1500 = vadd.f32 %v1499, 1.0
    %v1501 = vrcp.pop %v1500
    %v1502 = vmul.f32 1.0, %v1501
    %v1504 = vrot.slane %v1496, 3
    %v1506 = vtanh.pop %v1504
    %v1508 = vrot.slane %v1502, 1
    %v1510 = vmul.f32 %v1508, %v1184
    %v1511 = vmul.f32 %v1502, %v1506
    %v1512 = vadd.f32 %v1510, %v1511
    %v1513 = vtanh.pop %v1512
    %v1514 = vrot.slane %v1502, 2
    %v1516 = vmul.f32 %v1514, %v1513
    %v1517 = vpack.c.bf16 %v1516, %v1516
    %v1518 = vpack.c.bf16 %v1382, %v1382
    %1519 = vmatprep.subr.bf16.mxu0 %v618
    %1520 = vmatpush1.bf16.msra.mxu0 %v617
    %1521 = vmatprep.subr.bf16.mxu0 %v622
    %1522 = vmatpush1.bf16.msra.mxu0 %v621
    %1523 = vmatprep.subr.bf16.mxu0 %v626
    %1524 = vmatpush1.bf16.msra.mxu0 %v625
    %1525 = vmatprep.subr.bf16.mxu0 %v630
    %1526 = vmatpush1.bf16.msra.mxu0 %v629
    %1527 = vmatprep.subr.bf16.mxu0 %v634
    %1528 = vmatpush1.bf16.msra.mxu0 %v633
    %1529 = vmatprep.subr.bf16.mxu0 %v638
    %1530 = vmatpush1.bf16.msra.mxu0 %v637
    %1531 = vmatprep.subr.bf16.mxu0 %v642
    %1532 = vmatpush1.bf16.msra.mxu0 %v641
    %1533 = vmatprep.subr.bf16.mxu0 %v646
    %1534 = vmatpush1.bf16.msra.mxu0 %v645
    %1535 = vmatprep.subr.bf16.mxu0 0
    %1536 = vmatpush1.bf16.msra.mxu0 0
    %1537 = vmatprep.subr.bf16.mxu0 0
    %1538 = vmatpush1.bf16.msra.mxu0 0
    %1539 = vmatprep.subr.bf16.mxu0 0
    %1540 = vmatpush1.bf16.msra.mxu0 0
    %1541 = vmatprep.subr.bf16.mxu0 0
    %1542 = vmatpush1.bf16.msra.mxu0 0
    %1543 = vmatprep.subr.bf16.mxu0 0
    %1544 = vmatpush1.bf16.msra.mxu0 0
    %1545 = vmatprep.subr.bf16.mxu0 0
    %1546 = vmatpush1.bf16.msra.mxu0 0
    %1547 = vmatprep.subr.bf16.mxu0 0
    %1548 = vmatpush1.bf16.msra.mxu0 0
    %1549 = vmatprep.subr.bf16.mxu0 0
    %1550 = vmatpush1.bf16.msra.mxu0 0
    %1551 = vmatprep.mubr.bf16.mxu0 0
    %1552 = vmatmul.mubr.bf16.gmra.mrb[0].mxu0 %v1518
    %v1553 = vpop.f32.mrb[0].mxu0
    %v1554 = vadd.f32 0.0, %v1553
    %v1555 = vpop.f32.mrb[0].mxu0
    %v1556 = vadd.f32 0.0, %v1555
    %v1557 = vpop.f32.mrb[0].mxu0
    %v1558 = vpop.f32.mrb[0].mxu0
    %1559 = vdwg.mxu0
    %1560 = vmatprep.subr.bf16.mxu0 %v620
    %1561 = vmatpush1.bf16.msra.mxu0 %v619
    %1562 = vmatprep.subr.bf16.mxu0 %v624
    %1563 = vmatpush1.bf16.msra.mxu0 %v623
    %1564 = vmatprep.subr.bf16.mxu0 %v628
    %1565 = vmatpush1.bf16.msra.mxu0 %v627
    %1566 = vmatprep.subr.bf16.mxu0 %v632
    %1567 = vmatpush1.bf16.msra.mxu0 %v631
    %1568 = vmatprep.subr.bf16.mxu0 %v636
    %1569 = vmatpush1.bf16.msra.mxu0 %v635
    %1570 = vmatprep.subr.bf16.mxu0 %v640
    %1571 = vmatpush1.bf16.msra.mxu0 %v639
    %1572 = vmatprep.subr.bf16.mxu0 %v644
    %1573 = vmatpush1.bf16.msra.mxu0 %v643
    %1574 = vmatprep.subr.bf16.mxu0 %v648
    %1575 = vmatpush1.bf16.msra.mxu0 %v647
    %1576 = vmatprep.subr.bf16.mxu0 0
    %1577 = vmatpush1.bf16.msra.mxu0 0
    %1578 = vmatprep.subr.bf16.mxu0 0
    %1579 = vmatpush1.bf16.msra.mxu0 0
    %1580 = vmatprep.subr.bf16.mxu0 0
    %1581 = vmatpush1.bf16.msra.mxu0 0
    %1582 = vmatprep.subr.bf16.mxu0 0
    %1583 = vmatpush1.bf16.msra.mxu0 0
    %1584 = vmatprep.subr.bf16.mxu0 0
    %1585 = vmatpush1.bf16.msra.mxu0 0
    %1586 = vmatprep.subr.bf16.mxu0 0
    %1587 = vmatpush1.bf16.msra.mxu0 0
    %1588 = vmatprep.subr.bf16.mxu0 0
    %1589 = vmatpush1.bf16.msra.mxu0 0
    %1590 = vmatprep.subr.bf16.mxu0 0
    %1591 = vmatpush1.bf16.msra.mxu0 0
    %1592 = vmatprep.mubr.bf16.mxu0 0
    %1593 = vmatmul.mubr.bf16.gmra.mrb[0].mxu0 %v1518
    %v1594 = vpop.f32.mrb[0].mxu0
    %v1595 = vadd.f32 0.0, %v1594
    %v1596 = vpop.f32.mrb[0].mxu0
    %v1597 = vadd.f32 0.0, %v1596
    %v1598 = vpop.f32.mrb[0].mxu0
    %v1599 = vpop.f32.mrb[0].mxu0
    %1600 = vdwg.mxu0
    %1601 = vmatprep.subr.bf16.mxu0 %v860
    %1602 = vmatpush1.bf16.msra.mxu0 %v859
    %1603 = vmatprep.subr.bf16.mxu0 %v864
    %1604 = vmatpush1.bf16.msra.mxu0 %v863
    %1605 = vmatprep.subr.bf16.mxu0 %v868
    %1606 = vmatpush1.bf16.msra.mxu0 %v867
    %1607 = vmatprep.subr.bf16.mxu0 %v872
    %1608 = vmatpush1.bf16.msra.mxu0 %v871
    %1609 = vmatprep.subr.bf16.mxu0 %v876
    %1610 = vmatpush1.bf16.msra.mxu0 %v875
    %1611 = vmatprep.subr.bf16.mxu0 %v880
    %1612 = vmatpush1.bf16.msra.mxu0 %v879
    %1613 = vmatprep.subr.bf16.mxu0 %v884
    %1614 = vmatpush1.bf16.msra.mxu0 %v883
    %1615 = vmatprep.subr.bf16.mxu0 %v888
    %1616 = vmatpush1.bf16.msra.mxu0 %v887
    %1617 = vmatprep.subr.bf16.mxu0 0
    %1618 = vmatpush1.bf16.msra.mxu0 0
    %1619 = vmatprep.subr.bf16.mxu0 0
    %1620 = vmatpush1.bf16.msra.mxu0 0
    %1621 = vmatprep.subr.bf16.mxu0 0
    %1622 = vmatpush1.bf16.msra.mxu0 0
    %1623 = vmatprep.subr.bf16.mxu0 0
    %1624 = vmatpush1.bf16.msra.mxu0 0
    %1625 = vmatprep.subr.bf16.mxu0 0
    %1626 = vmatpush1.bf16.msra.mxu0 0
    %1627 = vmatprep.subr.bf16.mxu0 0
    %1628 = vmatpush1.bf16.msra.mxu0 0
    %1629 = vmatprep.subr.bf16.mxu0 0
    %1630 = vmatpush1.bf16.msra.mxu0 0
    %1631 = vmatprep.subr.bf16.mxu0 0
    %1632 = vmatpush1.bf16.msra.mxu0 0
    %1633 = vmatprep.mubr.bf16.mxu0 0
    %1634 = vmatmul.mubr.bf16.gmra.mrb[0].mxu0 %v1517
    %v1635 = vpop.f32.mrb[0].mxu0
    %v1636 = vadd.f32 %v1554, %v1635
    %v1637 = vpop.f32.mrb[0].mxu0
    %v1638 = vadd.f32 %v1556, %v1637
    %v1639 = vpop.f32.mrb[0].mxu0
    %v1640 = vpop.f32.mrb[0].mxu0
    %1641 = vdwg.mxu0
    %1642 = vmatprep.subr.bf16.mxu0 %v862
    %1643 = vmatpush1.bf16.msra.mxu0 %v861
    %1644 = vmatprep.subr.bf16.mxu0 %v866
    %1645 = vmatpush1.bf16.msra.mxu0 %v865
    %1646 = vmatprep.subr.bf16.mxu0 %v870
    %1647 = vmatpush1.bf16.msra.mxu0 %v869
    %1648 = vmatprep.subr.bf16.mxu0 %v874
    %1649 = vmatpush1.bf16.msra.mxu0 %v873
    %1650 = vmatprep.subr.bf16.mxu0 %v878
    %1651 = vmatpush1.bf16.msra.mxu0 %v877
    %1652 = vmatprep.subr.bf16.mxu0 %v882
    %1653 = vmatpush1.bf16.msra.mxu0 %v881
    %1654 = vmatprep.subr.bf16.mxu0 %v886
    %1655 = vmatpush1.bf16.msra.mxu0 %v885
    %1656 = vmatprep.subr.bf16.mxu0 %v890
    %1657 = vmatpush1.bf16.msra.mxu0 %v889
    %1658 = vmatprep.subr.bf16.mxu0 0
    %1659 = vmatpush1.bf16.msra.mxu0 0
    %1660 = vmatprep.subr.bf16.mxu0 0
    %1661 = vmatpush1.bf16.msra.mxu0 0
    %1662 = vmatprep.subr.bf16.mxu0 0
    %1663 = vmatpush1.bf16.msra.mxu0 0
    %1664 = vmatprep.subr.bf16.mxu0 0
    %1665 = vmatpush1.bf16.msra.mxu0 0
    %1666 = vmatprep.subr.bf16.mxu0 0
    %1667 = vmatpush1.bf16.msra.mxu0 0
    %1668 = vmatprep.subr.bf16.mxu0 0
    %1669 = vmatpush1.bf16.msra.mxu0 0
    %1670 = vmatprep.subr.bf16.mxu0 0
    %1671 = vmatpush1.bf16.msra.mxu0 0
    %1672 = vmatprep.subr.bf16.mxu0 0
    %1673 = vmatpush1.bf16.msra.mxu0 0
    %1674 = vmatprep.mubr.bf16.mxu0 0
    %1675 = vmatmul.mubr.bf16.gmra.mrb[0].mxu0 %v1517
    %v1676 = vpop.f32.mrb[0].mxu0
    %v1677 = vadd.f32 %v1595, %v1676
    %v1678 = vpop.f32.mrb[0].mxu0
    %v1679 = vadd.f32 %v1597, %v1678
    %v1680 = vpop.f32.mrb[0].mxu0
    %v1681 = vpop.f32.mrb[0].mxu0
    %1682 = vdwg.mxu0
    %v1683 = vadd.f32 %v1636, %v1010
    %v1684 = vadd.f32 %v1638, %v1014
    %v1685 = vadd.f32 %v1677, %v1018
    %v1686 = vadd.f32 %v1679, %v1022
    %v1687 = vxor.u32 %v1683, 2147483648
    %v1688 = vxor.u32 %v1684, 2147483648
    %v1689 = vxor.u32 %v1685, 2147483648
    %v1690 = vmul.f32 %v1687, 1.442695
    %v1691 = vpow.pop %v1690
    %v1692 = vmul.f32 %v1688, 1.442695
    %v1693 = vpow.pop %v1692
    %v1694 = vmul.f32 %v1689, 1.442695
    %v1695 = vpow.pop %v1694
    %v1696 = vadd.f32 %v1691, 1.0
    %v1697 = vadd.f32 %v1693, 1.0
    %v1698 = vadd.f32 %v1695, 1.0
    %v1699 = vrcp.pop %v1696
    %v1700 = vmul.f32 1.0, %v1699
    %v1701 = vrcp.pop %v1697
    %v1702 = vmul.f32 1.0, %v1701
    %v1703 = vrcp.pop %v1698
    %v1704 = vmul.f32 1.0, %v1703
    %v1705 = vtanh.pop %v1686
    %v1706 = vmul.f32 %v1702, %v1380
    %v1707 = vmul.f32 %v1700, %v1705
    %v1708 = vadd.f32 %v1706, %v1707
    %v1709 = vtanh.pop %v1708
    %v1710 = vmul.f32 %v1704, %v1709
    %s1711 = scalar_lea.vmem [#allocation2], 3
    %v1712 = vld [vmem:[%s1711] ss:$8 sm:$0xf]
    %1713 = vmatprep.subr.bf16.mxu0 %v261
    %1714 = vmatpush1.bf16.msra.mxu0 %v260
    %1715 = vmatprep.subr.bf16.mxu0 %v265
    %1716 = vmatpush1.bf16.msra.mxu0 %v264
    %1717 = vmatprep.subr.bf16.mxu0 %v269
    %1718 = vmatpush1.bf16.msra.mxu0 %v268
    %1719 = vmatprep.subr.bf16.mxu0 %v273
    %1720 = vmatpush1.bf16.msra.mxu0 %v272
    %1721 = vmatprep.subr.bf16.mxu0 %v277
    %1722 = vmatpush1.bf16.msra.mxu0 %v276
    %1723 = vmatprep.subr.bf16.mxu0 %v281
    %1724 = vmatpush1.bf16.msra.mxu0 %v280
    %1725 = vmatprep.subr.bf16.mxu0 %v285
    %1726 = vmatpush1.bf16.msra.mxu0 %v284
    %1727 = vmatprep.subr.bf16.mxu0 %v289
    %1728 = vmatpush1.bf16.msra.mxu0 %v288
    %1729 = vmatprep.subr.bf16.mxu0 0
    %1730 = vmatpush1.bf16.msra.mxu0 0
    %1731 = vmatprep.subr.bf16.mxu0 0
    %1732 = vmatpush1.bf16.msra.mxu0 0
    %1733 = vmatprep.subr.bf16.mxu0 0
    %1734 = vmatpush1.bf16.msra.mxu0 0
    %1735 = vmatprep.subr.bf16.mxu0 0
    %1736 = vmatpush1.bf16.msra.mxu0 0
    %1737 = vmatprep.subr.bf16.mxu0 0
    %1738 = vmatpush1.bf16.msra.mxu0 0
    %1739 = vmatprep.subr.bf16.mxu0 0
    %1740 = vmatpush1.bf16.msra.mxu0 0
    %1741 = vmatprep.subr.bf16.mxu0 0
    %1742 = vmatpush1.bf16.msra.mxu0 0
    %1743 = vmatprep.subr.bf16.mxu0 0
    %1744 = vmatpush1.bf16.msra.mxu0 0
    %1745 = vmatprep.mubr.bf16.mxu0 0
    %1746 = vmatmul.mubr.bf16.gmra.mrb[0].mxu0 %v1517
    %v1747 = vpop.f32.mrb[0].mxu0
    %v1748 = vadd.f32 0.0, %v1747
    %v1749 = vpop.f32.mrb[0].mxu0
    %v1750 = vadd.f32 0.0, %v1749
    %v1751 = vpop.f32.mrb[0].mxu0
    %v1752 = vpop.f32.mrb[0].mxu0
    %1753 = vdwg.mxu0
    %1754 = vmatprep.subr.bf16.mxu0 %v263
    %1755 = vmatpush1.bf16.msra.mxu0 %v262
    %1756 = vmatprep.subr.bf16.mxu0 %v267
    %1757 = vmatpush1.bf16.msra.mxu0 %v266
    %1758 = vmatprep.subr.bf16.mxu0 %v271
    %1759 = vmatpush1.bf16.msra.mxu0 %v270
    %1760 = vmatprep.subr.bf16.mxu0 %v275
    %1761 = vmatpush1.bf16.msra.mxu0 %v274
    %1762 = vmatprep.subr.bf16.mxu0 %v279
    %1763 = vmatpush1.bf16.msra.mxu0 %v278
    %1764 = vmatprep.subr.bf16.mxu0 %v283
    %1765 = vmatpush1.bf16.msra.mxu0 %v282
    %1766 = vmatprep.subr.bf16.mxu0 %v287
    %1767 = vmatpush1.bf16.msra.mxu0 %v286
    %1768 = vmatprep.subr.bf16.mxu0 %v291
    %1769 = vmatpush1.bf16.msra.mxu0 %v290
    %1770 = vmatprep.subr.bf16.mxu0 0
    %1771 = vmatpush1.bf16.msra.mxu0 0
    %1772 = vmatprep.subr.bf16.mxu0 0
    %1773 = vmatpush1.bf16.msra.mxu0 0
    %1774 = vmatprep.subr.bf16.mxu0 0
    %1775 = vmatpush1.bf16.msra.mxu0 0
    %1776 = vmatprep.subr.bf16.mxu0 0
    %1777 = vmatpush1.bf16.msra.mxu0 0
    %1778 = vmatprep.subr.bf16.mxu0 0
    %1779 = vmatpush1.bf16.msra.mxu0 0
    %1780 = vmatprep.subr.bf16.mxu0 0
    %1781 = vmatpush1.bf16.msra.mxu0 0
    %1782 = vmatprep.subr.bf16.mxu0 0
    %1783 = vmatpush1.bf16.msra.mxu0 0
    %1784 = vmatprep.subr.bf16.mxu0 0
    %1785 = vmatpush1.bf16.msra.mxu0 0
    %1786 = vmatprep.mubr.bf16.mxu0 0
    %1787 = vmatmul.mubr.bf16.gmra.mrb[0].mxu0 %v1517
    %v1788 = vpop.f32.mrb[0].mxu0
    %v1789 = vadd.f32 0.0, %v1788
    %v1790 = vpop.f32.mrb[0].mxu0
    %v1791 = vadd.f32 0.0, %v1790
    %v1792 = vpop.f32.mrb[0].mxu0
    %v1793 = vpop.f32.mrb[0].mxu0
    %1794 = vdwg.mxu0
    %v1799 = vcombine.low %v1748, %v1750
    %v1800 = vcombine.low %v1789, %v1791
    %v1802 = vunpack.c.l.s4 1966171168
    %v1803 = vunpack.c.0.s8 %v1802
    %v1804 = vlaneseq
    %v1805 = vshrl.u32 %v1804, 7
    %v1806 = vsub.s32 %v1803, %v1805
    %v1807 = vrot.slane %v1799, %v1806
    %v1809 = vunpack.c.l.s4 1966171168
    %v1810 = vunpack.c.0.s8 %v1809
    %v1811 = vlaneseq
    %v1812 = vshrl.u32 %v1811, 7
    %v1813 = vsub.s32 %v1810, %v1812
    %v1814 = vrot.slane %v1800, %v1813
    %v1815 = vcombine.low %v1807, %v1814
    %v1817 = vunpack.c.l.s4 1966171168
    %v1818 = vunpack.c.0.s8 %v1817
    %v1819 = vlaneseq
    %v1820 = vshrl.u32 %v1819, 7
    %v1821 = vsub.s32 %v1818, %v1820
    %v1822 = vrot.slane %v1815, %v1821
    %v1824 = vadd.f32 %v1712, %v1822
    %v1825 = vxor.u32 %v1824, 2147483648
    %v1826 = vmul.f32 %v1825, 1.442695
    %v1827 = vpow.pop %v1826
    %v1828 = vadd.f32 %v1827, 1.0
    %v1829 = vrcp.pop %v1828
    %v1830 = vmul.f32 1.0, %v1829
    %v1832 = vrot.slane %v1824, 3
    %v1834 = vtanh.pop %v1832
    %v1836 = vrot.slane %v1830, 1
    %v1838 = vmul.f32 %v1836, %v1512
    %v1839 = vmul.f32 %v1830, %v1834
    %v1840 = vadd.f32 %v1838, %v1839
    %v1841 = vtanh.pop %v1840
    %v1842 = vrot.slane %v1830, 2
    %v1844 = vmul.f32 %v1842, %v1841
    %v1845 = vpack.c.bf16 %v1844, %v1844
    %v1846 = vpack.c.bf16 %v1710, %v1710
    %1847 = vmatprep.subr.bf16.mxu0 %v618
    %1848 = vmatpush1.bf16.msra.mxu0 %v617
    %1849 = vmatprep.subr.bf16.mxu0 %v622
    %1850 = vmatpush1.bf16.msra.mxu0 %v621
    %1851 = vmatprep.subr.bf16.mxu0 %v626
    %1852 = vmatpush1.bf16.msra.mxu0 %v625
    %1853 = vmatprep.subr.bf16.mxu0 %v630
    %1854 = vmatpush1.bf16.msra.mxu0 %v629
    %1855 = vmatprep.subr.bf16.mxu0 %v634
    %1856 = vmatpush1.bf16.msra.mxu0 %v633
    %1857 = vmatprep.subr.bf16.mxu0 %v638
    %1858 = vmatpush1.bf16.msra.mxu0 %v637
    %1859 = vmatprep.subr.bf16.mxu0 %v642
    %1860 = vmatpush1.bf16.msra.mxu0 %v641
    %1861 = vmatprep.subr.bf16.mxu0 %v646
    %1862 = vmatpush1.bf16.msra.mxu0 %v645
    %1863 = vmatprep.subr.bf16.mxu0 0
    %1864 = vmatpush1.bf16.msra.mxu0 0
    %1865 = vmatprep.subr.bf16.mxu0 0
    %1866 = vmatpush1.bf16.msra.mxu0 0
    %1867 = vmatprep.subr.bf16.mxu0 0
    %1868 = vmatpush1.bf16.msra.mxu0 0
    %1869 = vmatprep.subr.bf16.mxu0 0
    %1870 = vmatpush1.bf16.msra.mxu0 0
    %1871 = vmatprep.subr.bf16.mxu0 0
    %1872 = vmatpush1.bf16.msra.mxu0 0
    %1873 = vmatprep.subr.bf16.mxu0 0
    %1874 = vmatpush1.bf16.msra.mxu0 0
    %1875 = vmatprep.subr.bf16.mxu0 0
    %1876 = vmatpush1.bf16.msra.mxu0 0
    %1877 = vmatprep.subr.bf16.mxu0 0
    %1878 = vmatpush1.bf16.msra.mxu0 0
    %1879 = vmatprep.mubr.bf16.mxu0 0
    %1880 = vmatmul.mubr.bf16.gmra.mrb[0].mxu0 %v1846
    %v1881 = vpop.f32.mrb[0].mxu0
    %v1882 = vadd.f32 0.0, %v1881
    %v1883 = vpop.f32.mrb[0].mxu0
    %v1884 = vadd.f32 0.0, %v1883
    %v1885 = vpop.f32.mrb[0].mxu0
    %v1886 = vpop.f32.mrb[0].mxu0
    %1887 = vdwg.mxu0
    %1888 = vmatprep.subr.bf16.mxu0 %v620
    %1889 = vmatpush1.bf16.msra.mxu0 %v619
    %1890 = vmatprep.subr.bf16.mxu0 %v624
    %1891 = vmatpush1.bf16.msra.mxu0 %v623
    %1892 = vmatprep.subr.bf16.mxu0 %v628
    %1893 = vmatpush1.bf16.msra.mxu0 %v627
    %1894 = vmatprep.subr.bf16.mxu0 %v632
    %1895 = vmatpush1.bf16.msra.mxu0 %v631
    %1896 = vmatprep.subr.bf16.mxu0 %v636
    %1897 = vmatpush1.bf16.msra.mxu0 %v635
    %1898 = vmatprep.subr.bf16.mxu0 %v640
    %1899 = vmatpush1.bf16.msra.mxu0 %v639
    %1900 = vmatprep.subr.bf16.mxu0 %v644
    %1901 = vmatpush1.bf16.msra.mxu0 %v643
    %1902 = vmatprep.subr.bf16.mxu0 %v648
    %1903 = vmatpush1.bf16.msra.mxu0 %v647
    %1904 = vmatprep.subr.bf16.mxu0 0
    %1905 = vmatpush1.bf16.msra.mxu0 0
    %1906 = vmatprep.subr.bf16.mxu0 0
    %1907 = vmatpush1.bf16.msra.mxu0 0
    %1908 = vmatprep.subr.bf16.mxu0 0
    %1909 = vmatpush1.bf16.msra.mxu0 0
    %1910 = vmatprep.subr.bf16.mxu0 0
    %1911 = vmatpush1.bf16.msra.mxu0 0
    %1912 = vmatprep.subr.bf16.mxu0 0
    %1913 = vmatpush1.bf16.msra.mxu0 0
    %1914 = vmatprep.subr.bf16.mxu0 0
    %1915 = vmatpush1.bf16.msra.mxu0 0
    %1916 = vmatprep.subr.bf16.mxu0 0
    %1917 = vmatpush1.bf16.msra.mxu0 0
    %1918 = vmatprep.subr.bf16.mxu0 0
    %1919 = vmatpush1.bf16.msra.mxu0 0
    %1920 = vmatprep.mubr.bf16.mxu0 0
    %1921 = vmatmul.mubr.bf16.gmra.mrb[0].mxu0 %v1846
    %v1922 = vpop.f32.mrb[0].mxu0
    %v1923 = vadd.f32 0.0, %v1922
    %v1924 = vpop.f32.mrb[0].mxu0
    %v1925 = vadd.f32 0.0, %v1924
    %v1926 = vpop.f32.mrb[0].mxu0
    %v1927 = vpop.f32.mrb[0].mxu0
    %1928 = vdwg.mxu0
    %1929 = vmatprep.subr.bf16.mxu0 %v860
    %1930 = vmatpush1.bf16.msra.mxu0 %v859
    %1931 = vmatprep.subr.bf16.mxu0 %v864
    %1932 = vmatpush1.bf16.msra.mxu0 %v863
    %1933 = vmatprep.subr.bf16.mxu0 %v868
    %1934 = vmatpush1.bf16.msra.mxu0 %v867
    %1935 = vmatprep.subr.bf16.mxu0 %v872
    %1936 = vmatpush1.bf16.msra.mxu0 %v871
    %1937 = vmatprep.subr.bf16.mxu0 %v876
    %1938 = vmatpush1.bf16.msra.mxu0 %v875
    %1939 = vmatprep.subr.bf16.mxu0 %v880
    %1940 = vmatpush1.bf16.msra.mxu0 %v879
    %1941 = vmatprep.subr.bf16.mxu0 %v884
    %1942 = vmatpush1.bf16.msra.mxu0 %v883
    %1943 = vmatprep.subr.bf16.mxu0 %v888
    %1944 = vmatpush1.bf16.msra.mxu0 %v887
    %1945 = vmatprep.subr.bf16.mxu0 0
    %1946 = vmatpush1.bf16.msra.mxu0 0
    %1947 = vmatprep.subr.bf16.mxu0 0
    %1948 = vmatpush1.bf16.msra.mxu0 0
    %1949 = vmatprep.subr.bf16.mxu0 0
    %1950 = vmatpush1.bf16.msra.mxu0 0
    %1951 = vmatprep.subr.bf16.mxu0 0
    %1952 = vmatpush1.bf16.msra.mxu0 0
    %1953 = vmatprep.subr.bf16.mxu0 0
    %1954 = vmatpush1.bf16.msra.mxu0 0
    %1955 = vmatprep.subr.bf16.mxu0 0
    %1956 = vmatpush1.bf16.msra.mxu0 0
    %1957 = vmatprep.subr.bf16.mxu0 0
    %1958 = vmatpush1.bf16.msra.mxu0 0
    %1959 = vmatprep.subr.bf16.mxu0 0
    %1960 = vmatpush1.bf16.msra.mxu0 0
    %1961 = vmatprep.mubr.bf16.mxu0 0
    %1962 = vmatmul.mubr.bf16.gmra.mrb[0].mxu0 %v1845
    %v1963 = vpop.f32.mrb[0].mxu0
    %v1964 = vadd.f32 %v1882, %v1963
    %v1965 = vpop.f32.mrb[0].mxu0
    %v1966 = vadd.f32 %v1884, %v1965
    %v1967 = vpop.f32.mrb[0].mxu0
    %v1968 = vpop.f32.mrb[0].mxu0
    %1969 = vdwg.mxu0
    %1970 = vmatprep.subr.bf16.mxu0 %v862
    %1971 = vmatpush1.bf16.msra.mxu0 %v861
    %1972 = vmatprep.subr.bf16.mxu0 %v866
    %1973 = vmatpush1.bf16.msra.mxu0 %v865
    %1974 = vmatprep.subr.bf16.mxu0 %v870
    %1975 = vmatpush1.bf16.msra.mxu0 %v869
    %1976 = vmatprep.subr.bf16.mxu0 %v874
    %1977 = vmatpush1.bf16.msra.mxu0 %v873
    %1978 = vmatprep.subr.bf16.mxu0 %v878
    %1979 = vmatpush1.bf16.msra.mxu0 %v877
    %1980 = vmatprep.subr.bf16.mxu0 %v882
    %1981 = vmatpush1.bf16.msra.mxu0 %v881
    %1982 = vmatprep.subr.bf16.mxu0 %v886
    %1983 = vmatpush1.bf16.msra.mxu0 %v885
    %1984 = vmatprep.subr.bf16.mxu0 %v890
    %1985 = vmatpush1.bf16.msra.mxu0 %v889
    %1986 = vmatprep.subr.bf16.mxu0 0
    %1987 = vmatpush1.bf16.msra.mxu0 0
    %1988 = vmatprep.subr.bf16.mxu0 0
    %1989 = vmatpush1.bf16.msra.mxu0 0
    %1990 = vmatprep.subr.bf16.mxu0 0
    %1991 = vmatpush1.bf16.msra.mxu0 0
    %1992 = vmatprep.subr.bf16.mxu0 0
    %1993 = vmatpush1.bf16.msra.mxu0 0
    %1994 = vmatprep.subr.bf16.mxu0 0
    %1995 = vmatpush1.bf16.msra.mxu0 0
    %1996 = vmatprep.subr.bf16.mxu0 0
    %1997 = vmatpush1.bf16.msra.mxu0 0
    %1998 = vmatprep.subr.bf16.mxu0 0
    %1999 = vmatpush1.bf16.msra.mxu0 0
    %2000 = vmatprep.subr.bf16.mxu0 0
    %2001 = vmatpush1.bf16.msra.mxu0 0
    %2002 = vmatprep.mubr.bf16.mxu0 0
    %2003 = vmatmul.mubr.bf16.gmra.mrb[0].mxu0 %v1845
    %v2004 = vpop.f32.mrb[0].mxu0
    %v2005 = vadd.f32 %v1923, %v2004
    %v2006 = vpop.f32.mrb[0].mxu0
    %v2007 = vadd.f32 %v1925, %v2006
    %v2008 = vpop.f32.mrb[0].mxu0
    %v2009 = vpop.f32.mrb[0].mxu0
    %2010 = vdwg.mxu0
    %v2011 = vadd.f32 %v1964, %v1010
    %v2012 = vadd.f32 %v1966, %v1014
    %v2013 = vadd.f32 %v2005, %v1018
    %v2014 = vadd.f32 %v2007, %v1022
    %v2015 = vxor.u32 %v2011, 2147483648
    %v2016 = vxor.u32 %v2012, 2147483648
    %v2017 = vxor.u32 %v2013, 2147483648
    %v2018 = vmul.f32 %v2015, 1.442695
    %v2019 = vpow.pop %v2018
    %v2020 = vmul.f32 %v2016, 1.442695
    %v2021 = vpow.pop %v2020
    %v2022 = vmul.f32 %v2017, 1.442695
    %v2023 = vpow.pop %v2022
    %v2024 = vadd.f32 %v2019, 1.0
    %v2025 = vadd.f32 %v2021, 1.0
    %v2026 = vadd.f32 %v2023, 1.0
    %v2027 = vrcp.pop %v2024
    %v2028 = vmul.f32 1.0, %v2027
    %v2029 = vrcp.pop %v2025
    %v2030 = vmul.f32 1.0, %v2029
    %v2031 = vrcp.pop %v2026
    %v2032 = vmul.f32 1.0, %v2031
    %v2033 = vtanh.pop %v2014
    %v2034 = vmul.f32 %v2030, %v1708
    %v2035 = vmul.f32 %v2028, %v2033
    %v2036 = vadd.f32 %v2034, %v2035
    %v2037 = vtanh.pop %v2036
    %v2038 = vmul.f32 %v2032, %v2037
    %s2039 = scalar_lea.vmem [#allocation2], 4
    %v2040 = vld [vmem:[%s2039] ss:$8 sm:$0xf]
    %2041 = vmatprep.subr.bf16.mxu0 %v261
    %2042 = vmatpush1.bf16.msra.mxu0 %v260
    %2043 = vmatprep.subr.bf16.mxu0 %v265
    %2044 = vmatpush1.bf16.msra.mxu0 %v264
    %2045 = vmatprep.subr.bf16.mxu0 %v269
    %2046 = vmatpush1.bf16.msra.mxu0 %v268
    %2047 = vmatprep.subr.bf16.mxu0 %v273
    %2048 = vmatpush1.bf16.msra.mxu0 %v272
    %2049 = vmatprep.subr.bf16.mxu0 %v277
    %2050 = vmatpush1.bf16.msra.mxu0 %v276
    %2051 = vmatprep.subr.bf16.mxu0 %v281
    %2052 = vmatpush1.bf16.msra.mxu0 %v280
    %2053 = vmatprep.subr.bf16.mxu0 %v285
    %2054 = vmatpush1.bf16.msra.mxu0 %v284
    %2055 = vmatprep.subr.bf16.mxu0 %v289
    %2056 = vmatpush1.bf16.msra.mxu0 %v288
    %2057 = vmatprep.subr.bf16.mxu0 0
    %2058 = vmatpush1.bf16.msra.mxu0 0
    %2059 = vmatprep.subr.bf16.mxu0 0
    %2060 = vmatpush1.bf16.msra.mxu0 0
    %2061 = vmatprep.subr.bf16.mxu0 0
    %2062 = vmatpush1.bf16.msra.mxu0 0
    %2063 = vmatprep.subr.bf16.mxu0 0
    %2064 = vmatpush1.bf16.msra.mxu0 0
    %2065 = vmatprep.subr.bf16.mxu0 0
    %2066 = vmatpush1.bf16.msra.mxu0 0
    %2067 = vmatprep.subr.bf16.mxu0 0
    %2068 = vmatpush1.bf16.msra.mxu0 0
    %2069 = vmatprep.subr.bf16.mxu0 0
    %2070 = vmatpush1.bf16.msra.mxu0 0
    %2071 = vmatprep.subr.bf16.mxu0 0
    %2072 = vmatpush1.bf16.msra.mxu0 0
    %2073 = vmatprep.mubr.bf16.mxu0 0
    %2074 = vmatmul.mubr.bf16.gmra.mrb[0].mxu0 %v1845
    %v2075 = vpop.f32.mrb[0].mxu0
    %v2076 = vadd.f32 0.0, %v2075
    %v2077 = vpop.f32.mrb[0].mxu0
    %v2078 = vadd.f32 0.0, %v2077
    %v2079 = vpop.f32.mrb[0].mxu0
    %v2080 = vpop.f32.mrb[0].mxu0
    %2081 = vdwg.mxu0
    %2082 = vmatprep.subr.bf16.mxu0 %v263
    %2083 = vmatpush1.bf16.msra.mxu0 %v262
    %2084 = vmatprep.subr.bf16.mxu0 %v267
    %2085 = vmatpush1.bf16.msra.mxu0 %v266
    %2086 = vmatprep.subr.bf16.mxu0 %v271
    %2087 = vmatpush1.bf16.msra.mxu0 %v270
    %2088 = vmatprep.subr.bf16.mxu0 %v275
    %2089 = vmatpush1.bf16.msra.mxu0 %v274
    %2090 = vmatprep.subr.bf16.mxu0 %v279
    %2091 = vmatpush1.bf16.msra.mxu0 %v278
    %2092 = vmatprep.subr.bf16.mxu0 %v283
    %2093 = vmatpush1.bf16.msra.mxu0 %v282
    %2094 = vmatprep.subr.bf16.mxu0 %v287
    %2095 = vmatpush1.bf16.msra.mxu0 %v286
    %2096 = vmatprep.subr.bf16.mxu0 %v291
    %2097 = vmatpush1.bf16.msra.mxu0 %v290
    %2098 = vmatprep.subr.bf16.mxu0 0
    %2099 = vmatpush1.bf16.msra.mxu0 0
    %2100 = vmatprep.subr.bf16.mxu0 0
    %2101 = vmatpush1.bf16.msra.mxu0 0
    %2102 = vmatprep.subr.bf16.mxu0 0
    %2103 = vmatpush1.bf16.msra.mxu0 0
    %2104 = vmatprep.subr.bf16.mxu0 0
    %2105 = vmatpush1.bf16.msra.mxu0 0
    %2106 = vmatprep.subr.bf16.mxu0 0
    %2107 = vmatpush1.bf16.msra.mxu0 0
    %2108 = vmatprep.subr.bf16.mxu0 0
    %2109 = vmatpush1.bf16.msra.mxu0 0
    %2110 = vmatprep.subr.bf16.mxu0 0
    %2111 = vmatpush1.bf16.msra.mxu0 0
    %2112 = vmatprep.subr.bf16.mxu0 0
    %2113 = vmatpush1.bf16.msra.mxu0 0
    %2114 = vmatprep.mubr.bf16.mxu0 0
    %2115 = vmatmul.mubr.bf16.gmra.mrb[0].mxu0 %v1845
    %v2116 = vpop.f32.mrb[0].mxu0
    %v2117 = vadd.f32 0.0, %v2116
    %v2118 = vpop.f32.mrb[0].mxu0
    %v2119 = vadd.f32 0.0, %v2118
    %v2120 = vpop.f32.mrb[0].mxu0
    %v2121 = vpop.f32.mrb[0].mxu0
    %2122 = vdwg.mxu0
    %v2127 = vcombine.low %v2076, %v2078
    %v2128 = vcombine.low %v2117, %v2119
    %v2130 = vunpack.c.l.s4 1966171168
    %v2131 = vunpack.c.0.s8 %v2130
    %v2132 = vlaneseq
    %v2133 = vshrl.u32 %v2132, 7
    %v2134 = vsub.s32 %v2131, %v2133
    %v2135 = vrot.slane %v2127, %v2134
    %v2137 = vunpack.c.l.s4 1966171168
    %v2138 = vunpack.c.0.s8 %v2137
    %v2139 = vlaneseq
    %v2140 = vshrl.u32 %v2139, 7
    %v2141 = vsub.s32 %v2138, %v2140
    %v2142 = vrot.slane %v2128, %v2141
    %v2143 = vcombine.low %v2135, %v2142
    %v2145 = vunpack.c.l.s4 1966171168
    %v2146 = vunpack.c.0.s8 %v2145
    %v2147 = vlaneseq
    %v2148 = vshrl.u32 %v2147, 7
    %v2149 = vsub.s32 %v2146, %v2148
    %v2150 = vrot.slane %v2143, %v2149
    %v2152 = vadd.f32 %v2040, %v2150
    %v2153 = vxor.u32 %v2152, 2147483648
    %v2154 = vmul.f32 %v2153, 1.442695
    %v2155 = vpow.pop %v2154
    %v2156 = vadd.f32 %v2155, 1.0
    %v2157 = vrcp.pop %v2156
    %v2158 = vmul.f32 1.0, %v2157
    %v2160 = vrot.slane %v2152, 3
    %v2162 = vtanh.pop %v2160
    %v2164 = vrot.slane %v2158, 1
    %v2166 = vmul.f32 %v2164, %v1840
    %v2167 = vmul.f32 %v2158, %v2162
    %v2168 = vadd.f32 %v2166, %v2167
    %v2169 = vtanh.pop %v2168
    %v2170 = vrot.slane %v2158, 2
    %v2172 = vmul.f32 %v2170, %v2169
    %v2173 = vpack.c.bf16 %v2172, %v2172
    %v2174 = vpack.c.bf16 %v2038, %v2038
    %2175 = vmatprep.subr.bf16.mxu0 %v618
    %2176 = vmatpush1.bf16.msra.mxu0 %v617
    %2177 = vmatprep.subr.bf16.mxu0 %v622
    %2178 = vmatpush1.bf16.msra.mxu0 %v621
    %2179 = vmatprep.subr.bf16.mxu0 %v626
    %2180 = vmatpush1.bf16.msra.mxu0 %v625
    %2181 = vmatprep.subr.bf16.mxu0 %v630
    %2182 = vmatpush1.bf16.msra.mxu0 %v629
    %2183 = vmatprep.subr.bf16.mxu0 %v634
    %2184 = vmatpush1.bf16.msra.mxu0 %v633
    %2185 = vmatprep.subr.bf16.mxu0 %v638
    %2186 = vmatpush1.bf16.msra.mxu0 %v637
    %2187 = vmatprep.subr.bf16.mxu0 %v642
    %2188 = vmatpush1.bf16.msra.mxu0 %v641
    %2189 = vmatprep.subr.bf16.mxu0 %v646
    %2190 = vmatpush1.bf16.msra.mxu0 %v645
    %2191 = vmatprep.subr.bf16.mxu0 0
    %2192 = vmatpush1.bf16.msra.mxu0 0
    %2193 = vmatprep.subr.bf16.mxu0 0
    %2194 = vmatpush1.bf16.msra.mxu0 0
    %2195 = vmatprep.subr.bf16.mxu0 0
    %2196 = vmatpush1.bf16.msra.mxu0 0
    %2197 = vmatprep.subr.bf16.mxu0 0
    %2198 = vmatpush1.bf16.msra.mxu0 0
    %2199 = vmatprep.subr.bf16.mxu0 0
    %2200 = vmatpush1.bf16.msra.mxu0 0
    %2201 = vmatprep.subr.bf16.mxu0 0
    %2202 = vmatpush1.bf16.msra.mxu0 0
    %2203 = vmatprep.subr.bf16.mxu0 0
    %2204 = vmatpush1.bf16.msra.mxu0 0
    %2205 = vmatprep.subr.bf16.mxu0 0
    %2206 = vmatpush1.bf16.msra.mxu0 0
    %2207 = vmatprep.mubr.bf16.mxu0 0
    %2208 = vmatmul.mubr.bf16.gmra.mrb[0].mxu0 %v2174
    %v2209 = vpop.f32.mrb[0].mxu0
    %v2210 = vadd.f32 0.0, %v2209
    %v2211 = vpop.f32.mrb[0].mxu0
    %v2212 = vadd.f32 0.0, %v2211
    %v2213 = vpop.f32.mrb[0].mxu0
    %v2214 = vpop.f32.mrb[0].mxu0
    %2215 = vdwg.mxu0
    %2216 = vmatprep.subr.bf16.mxu0 %v620
    %2217 = vmatpush1.bf16.msra.mxu0 %v619
    %2218 = vmatprep.subr.bf16.mxu0 %v624
    %2219 = vmatpush1.bf16.msra.mxu0 %v623
    %2220 = vmatprep.subr.bf16.mxu0 %v628
    %2221 = vmatpush1.bf16.msra.mxu0 %v627
    %2222 = vmatprep.subr.bf16.mxu0 %v632
    %2223 = vmatpush1.bf16.msra.mxu0 %v631
    %2224 = vmatprep.subr.bf16.mxu0 %v636
    %2225 = vmatpush1.bf16.msra.mxu0 %v635
    %2226 = vmatprep.subr.bf16.mxu0 %v640
    %2227 = vmatpush1.bf16.msra.mxu0 %v639
    %2228 = vmatprep.subr.bf16.mxu0 %v644
    %2229 = vmatpush1.bf16.msra.mxu0 %v643
    %2230 = vmatprep.subr.bf16.mxu0 %v648
    %2231 = vmatpush1.bf16.msra.mxu0 %v647
    %2232 = vmatprep.subr.bf16.mxu0 0
    %2233 = vmatpush1.bf16.msra.mxu0 0
    %2234 = vmatprep.subr.bf16.mxu0 0
    %2235 = vmatpush1.bf16.msra.mxu0 0
    %2236 = vmatprep.subr.bf16.mxu0 0
    %2237 = vmatpush1.bf16.msra.mxu0 0
    %2238 = vmatprep.subr.bf16.mxu0 0
    %2239 = vmatpush1.bf16.msra.mxu0 0
    %2240 = vmatprep.subr.bf16.mxu0 0
    %2241 = vmatpush1.bf16.msra.mxu0 0
    %2242 = vmatprep.subr.bf16.mxu0 0
    %2243 = vmatpush1.bf16.msra.mxu0 0
    %2244 = vmatprep.subr.bf16.mxu0 0
    %2245 = vmatpush1.bf16.msra.mxu0 0
    %2246 = vmatprep.subr.bf16.mxu0 0
    %2247 = vmatpush1.bf16.msra.mxu0 0
    %2248 = vmatprep.mubr.bf16.mxu0 0
    %2249 = vmatmul.mubr.bf16.gmra.mrb[0].mxu0 %v2174
    %v2250 = vpop.f32.mrb[0].mxu0
    %v2251 = vadd.f32 0.0, %v2250
    %v2252 = vpop.f32.mrb[0].mxu0
    %v2253 = vadd.f32 0.0, %v2252
    %v2254 = vpop.f32.mrb[0].mxu0
    %v2255 = vpop.f32.mrb[0].mxu0
    %2256 = vdwg.mxu0
    %2257 = vmatprep.subr.bf16.mxu0 %v860
    %2258 = vmatpush1.bf16.msra.mxu0 %v859
    %2259 = vmatprep.subr.bf16.mxu0 %v864
    %2260 = vmatpush1.bf16.msra.mxu0 %v863
    %2261 = vmatprep.subr.bf16.mxu0 %v868
    %2262 = vmatpush1.bf16.msra.mxu0 %v867
    %2263 = vmatprep.subr.bf16.mxu0 %v872
    %2264 = vmatpush1.bf16.msra.mxu0 %v871
    %2265 = vmatprep.subr.bf16.mxu0 %v876
    %2266 = vmatpush1.bf16.msra.mxu0 %v875
    %2267 = vmatprep.subr.bf16.mxu0 %v880
    %2268 = vmatpush1.bf16.msra.mxu0 %v879
    %2269 = vmatprep.subr.bf16.mxu0 %v884
    %2270 = vmatpush1.bf16.msra.mxu0 %v883
    %2271 = vmatprep.subr.bf16.mxu0 %v888
    %2272 = vmatpush1.bf16.msra.mxu0 %v887
    %2273 = vmatprep.subr.bf16.mxu0 0
    %2274 = vmatpush1.bf16.msra.mxu0 0
    %2275 = vmatprep.subr.bf16.mxu0 0
    %2276 = vmatpush1.bf16.msra.mxu0 0
    %2277 = vmatprep.subr.bf16.mxu0 0
    %2278 = vmatpush1.bf16.msra.mxu0 0
    %2279 = vmatprep.subr.bf16.mxu0 0
    %2280 = vmatpush1.bf16.msra.mxu0 0
    %2281 = vmatprep.subr.bf16.mxu0 0
    %2282 = vmatpush1.bf16.msra.mxu0 0
    %2283 = vmatprep.subr.bf16.mxu0 0
    %2284 = vmatpush1.bf16.msra.mxu0 0
    %2285 = vmatprep.subr.bf16.mxu0 0
    %2286 = vmatpush1.bf16.msra.mxu0 0
    %2287 = vmatprep.subr.bf16.mxu0 0
    %2288 = vmatpush1.bf16.msra.mxu0 0
    %2289 = vmatprep.mubr.bf16.mxu0 0
    %2290 = vmatmul.mubr.bf16.gmra.mrb[0].mxu0 %v2173
    %v2291 = vpop.f32.mrb[0].mxu0
    %v2292 = vadd.f32 %v2210, %v2291
    %v2293 = vpop.f32.mrb[0].mxu0
    %v2294 = vadd.f32 %v2212, %v2293
    %v2295 = vpop.f32.mrb[0].mxu0
    %v2296 = vpop.f32.mrb[0].mxu0
    %2297 = vdwg.mxu0
    %2298 = vmatprep.subr.bf16.mxu0 %v862
    %2299 = vmatpush1.bf16.msra.mxu0 %v861
    %2300 = vmatprep.subr.bf16.mxu0 %v866
    %2301 = vmatpush1.bf16.msra.mxu0 %v865
    %2302 = vmatprep.subr.bf16.mxu0 %v870
    %2303 = vmatpush1.bf16.msra.mxu0 %v869
    %2304 = vmatprep.subr.bf16.mxu0 %v874
    %2305 = vmatpush1.bf16.msra.mxu0 %v873
    %2306 = vmatprep.subr.bf16.mxu0 %v878
    %2307 = vmatpush1.bf16.msra.mxu0 %v877
    %2308 = vmatprep.subr.bf16.mxu0 %v882
    %2309 = vmatpush1.bf16.msra.mxu0 %v881
    %2310 = vmatprep.subr.bf16.mxu0 %v886
    %2311 = vmatpush1.bf16.msra.mxu0 %v885
    %2312 = vmatprep.subr.bf16.mxu0 %v890
    %2313 = vmatpush1.bf16.msra.mxu0 %v889
    %2314 = vmatprep.subr.bf16.mxu0 0
    %2315 = vmatpush1.bf16.msra.mxu0 0
    %2316 = vmatprep.subr.bf16.mxu0 0
    %2317 = vmatpush1.bf16.msra.mxu0 0
    %2318 = vmatprep.subr.bf16.mxu0 0
    %2319 = vmatpush1.bf16.msra.mxu0 0
    %2320 = vmatprep.subr.bf16.mxu0 0
    %2321 = vmatpush1.bf16.msra.mxu0 0
    %2322 = vmatprep.subr.bf16.mxu0 0
    %2323 = vmatpush1.bf16.msra.mxu0 0
    %2324 = vmatprep.subr.bf16.mxu0 0
    %2325 = vmatpush1.bf16.msra.mxu0 0
    %2326 = vmatprep.subr.bf16.mxu0 0
    %2327 = vmatpush1.bf16.msra.mxu0 0
    %2328 = vmatprep.subr.bf16.mxu0 0
    %2329 = vmatpush1.bf16.msra.mxu0 0
    %2330 = vmatprep.mubr.bf16.mxu0 0
    %2331 = vmatmul.mubr.bf16.gmra.mrb[0].mxu0 %v2173
    %v2332 = vpop.f32.mrb[0].mxu0
    %v2333 = vadd.f32 %v2251, %v2332
    %v2334 = vpop.f32.mrb[0].mxu0
    %v2335 = vadd.f32 %v2253, %v2334
    %v2336 = vpop.f32.mrb[0].mxu0
    %v2337 = vpop.f32.mrb[0].mxu0
    %2338 = vdwg.mxu0
    %v2339 = vadd.f32 %v2292, %v1010
    %v2340 = vadd.f32 %v2294, %v1014
    %v2341 = vadd.f32 %v2333, %v1018
    %v2342 = vadd.f32 %v2335, %v1022
    %v2343 = vxor.u32 %v2339, 2147483648
    %v2344 = vxor.u32 %v2340, 2147483648
    %v2345 = vxor.u32 %v2341, 2147483648
    %v2346 = vmul.f32 %v2343, 1.442695
    %v2347 = vpow.pop %v2346
    %v2348 = vmul.f32 %v2344, 1.442695
    %v2349 = vpow.pop %v2348
    %v2350 = vmul.f32 %v2345, 1.442695
    %v2351 = vpow.pop %v2350
    %v2352 = vadd.f32 %v2347, 1.0
    %v2353 = vadd.f32 %v2349, 1.0
    %v2354 = vadd.f32 %v2351, 1.0
    %v2355 = vrcp.pop %v2352
    %v2356 = vmul.f32 1.0, %v2355
    %v2357 = vrcp.pop %v2353
    %v2358 = vmul.f32 1.0, %v2357
    %v2359 = vrcp.pop %v2354
    %v2360 = vmul.f32 1.0, %v2359
    %v2361 = vtanh.pop %v2342
    %v2362 = vmul.f32 %v2358, %v2036
    %v2363 = vmul.f32 %v2356, %v2361
    %v2364 = vadd.f32 %v2362, %v2363
    %v2365 = vtanh.pop %v2364
    %v2366 = vmul.f32 %v2360, %v2365
    %s2367 = scalar_lea.vmem [#allocation2], 5
    %v2368 = vld [vmem:[%s2367] ss:$8 sm:$0xf]
    %2369 = vmatprep.subr.bf16.mxu0 %v261
    %2370 = vmatpush1.bf16.msra.mxu0 %v260
    %2371 = vmatprep.subr.bf16.mxu0 %v265
    %2372 = vmatpush1.bf16.msra.mxu0 %v264
    %2373 = vmatprep.subr.bf16.mxu0 %v269
    %2374 = vmatpush1.bf16.msra.mxu0 %v268
    %2375 = vmatprep.subr.bf16.mxu0 %v273
    %2376 = vmatpush1.bf16.msra.mxu0 %v272
    %2377 = vmatprep.subr.bf16.mxu0 %v277
    %2378 = vmatpush1.bf16.msra.mxu0 %v276
    %2379 = vmatprep.subr.bf16.mxu0 %v281
    %2380 = vmatpush1.bf16.msra.mxu0 %v280
    %2381 = vmatprep.subr.bf16.mxu0 %v285
    %2382 = vmatpush1.bf16.msra.mxu0 %v284
    %2383 = vmatprep.subr.bf16.mxu0 %v289
    %2384 = vmatpush1.bf16.msra.mxu0 %v288
    %2385 = vmatprep.subr.bf16.mxu0 0
    %2386 = vmatpush1.bf16.msra.mxu0 0
    %2387 = vmatprep.subr.bf16.mxu0 0
    %2388 = vmatpush1.bf16.msra.mxu0 0
    %2389 = vmatprep.subr.bf16.mxu0 0
    %2390 = vmatpush1.bf16.msra.mxu0 0
    %2391 = vmatprep.subr.bf16.mxu0 0
    %2392 = vmatpush1.bf16.msra.mxu0 0
    %2393 = vmatprep.subr.bf16.mxu0 0
    %2394 = vmatpush1.bf16.msra.mxu0 0
    %2395 = vmatprep.subr.bf16.mxu0 0
    %2396 = vmatpush1.bf16.msra.mxu0 0
    %2397 = vmatprep.subr.bf16.mxu0 0
    %2398 = vmatpush1.bf16.msra.mxu0 0
    %2399 = vmatprep.subr.bf16.mxu0 0
    %2400 = vmatpush1.bf16.msra.mxu0 0
    %2401 = vmatprep.mubr.bf16.mxu0 0
    %2402 = vmatmul.mubr.bf16.gmra.mrb[0].mxu0 %v2173
    %v2403 = vpop.f32.mrb[0].mxu0
    %v2404 = vadd.f32 0.0, %v2403
    %v2405 = vpop.f32.mrb[0].mxu0
    %v2406 = vadd.f32 0.0, %v2405
    %v2407 = vpop.f32.mrb[0].mxu0
    %v2408 = vpop.f32.mrb[0].mxu0
    %2409 = vdwg.mxu0
    %2410 = vmatprep.subr.bf16.mxu0 %v263
    %2411 = vmatpush1.bf16.msra.mxu0 %v262
    %2412 = vmatprep.subr.bf16.mxu0 %v267
    %2413 = vmatpush1.bf16.msra.mxu0 %v266
    %2414 = vmatprep.subr.bf16.mxu0 %v271
    %2415 = vmatpush1.bf16.msra.mxu0 %v270
    %2416 = vmatprep.subr.bf16.mxu0 %v275
    %2417 = vmatpush1.bf16.msra.mxu0 %v274
    %2418 = vmatprep.subr.bf16.mxu0 %v279
    %2419 = vmatpush1.bf16.msra.mxu0 %v278
    %2420 = vmatprep.subr.bf16.mxu0 %v283
    %2421 = vmatpush1.bf16.msra.mxu0 %v282
    %2422 = vmatprep.subr.bf16.mxu0 %v287
    %2423 = vmatpush1.bf16.msra.mxu0 %v286
    %2424 = vmatprep.subr.bf16.mxu0 %v291
    %2425 = vmatpush1.bf16.msra.mxu0 %v290
    %2426 = vmatprep.subr.bf16.mxu0 0
    %2427 = vmatpush1.bf16.msra.mxu0 0
    %2428 = vmatprep.subr.bf16.mxu0 0
    %2429 = vmatpush1.bf16.msra.mxu0 0
    %2430 = vmatprep.subr.bf16.mxu0 0
    %2431 = vmatpush1.bf16.msra.mxu0 0
    %2432 = vmatprep.subr.bf16.mxu0 0
    %2433 = vmatpush1.bf16.msra.mxu0 0
    %2434 = vmatprep.subr.bf16.mxu0 0
    %2435 = vmatpush1.bf16.msra.mxu0 0
    %2436 = vmatprep.subr.bf16.mxu0 0
    %2437 = vmatpush1.bf16.msra.mxu0 0
    %2438 = vmatprep.subr.bf16.mxu0 0
    %2439 = vmatpush1.bf16.msra.mxu0 0
    %2440 = vmatprep.subr.bf16.mxu0 0
    %2441 = vmatpush1.bf16.msra.mxu0 0
    %2442 = vmatprep.mubr.bf16.mxu0 0
    %2443 = vmatmul.mubr.bf16.gmra.mrb[0].mxu0 %v2173
    %v2444 = vpop.f32.mrb[0].mxu0
    %v2445 = vadd.f32 0.0, %v2444
    %v2446 = vpop.f32.mrb[0].mxu0
    %v2447 = vadd.f32 0.0, %v2446
    %v2448 = vpop.f32.mrb[0].mxu0
    %v2449 = vpop.f32.mrb[0].mxu0
    %2450 = vdwg.mxu0
    %v2455 = vcombine.low %v2404, %v2406
    %v2456 = vcombine.low %v2445, %v2447
    %v2458 = vunpack.c.l.s4 1966171168
    %v2459 = vunpack.c.0.s8 %v2458
    %v2460 = vlaneseq
    %v2461 = vshrl.u32 %v2460, 7
    %v2462 = vsub.s32 %v2459, %v2461
    %v2463 = vrot.slane %v2455, %v2462
    %v2465 = vunpack.c.l.s4 1966171168
    %v2466 = vunpack.c.0.s8 %v2465
    %v2467 = vlaneseq
    %v2468 = vshrl.u32 %v2467, 7
    %v2469 = vsub.s32 %v2466, %v2468
    %v2470 = vrot.slane %v2456, %v2469
    %v2471 = vcombine.low %v2463, %v2470
    %v2473 = vunpack.c.l.s4 1966171168
    %v2474 = vunpack.c.0.s8 %v2473
    %v2475 = vlaneseq
    %v2476 = vshrl.u32 %v2475, 7
    %v2477 = vsub.s32 %v2474, %v2476
    %v2478 = vrot.slane %v2471, %v2477
    %v2480 = vadd.f32 %v2368, %v2478
    %v2481 = vxor.u32 %v2480, 2147483648
    %v2482 = vmul.f32 %v2481, 1.442695
    %v2483 = vpow.pop %v2482
    %v2484 = vadd.f32 %v2483, 1.0
    %v2485 = vrcp.pop %v2484
    %v2486 = vmul.f32 1.0, %v2485
    %v2488 = vrot.slane %v2480, 3
    %v2490 = vtanh.pop %v2488
    %v2492 = vrot.slane %v2486, 1
    %v2494 = vmul.f32 %v2492, %v2168
    %v2495 = vmul.f32 %v2486, %v2490
    %v2496 = vadd.f32 %v2494, %v2495
    %v2497 = vtanh.pop %v2496
    %v2498 = vrot.slane %v2486, 2
    %v2500 = vmul.f32 %v2498, %v2497
    %v2501 = vpack.c.bf16 %v2500, %v2500
    %v2502 = vpack.c.bf16 %v2366, %v2366
    %2503 = vmatprep.subr.bf16.mxu0 %v618
    %2504 = vmatpush1.bf16.msra.mxu0 %v617
    %2505 = vmatprep.subr.bf16.mxu0 %v622
    %2506 = vmatpush1.bf16.msra.mxu0 %v621
    %2507 = vmatprep.subr.bf16.mxu0 %v626
    %2508 = vmatpush1.bf16.msra.mxu0 %v625
    %2509 = vmatprep.subr.bf16.mxu0 %v630
    %2510 = vmatpush1.bf16.msra.mxu0 %v629
    %2511 = vmatprep.subr.bf16.mxu0 %v634
    %2512 = vmatpush1.bf16.msra.mxu0 %v633
    %2513 = vmatprep.subr.bf16.mxu0 %v638
    %2514 = vmatpush1.bf16.msra.mxu0 %v637
    %2515 = vmatprep.subr.bf16.mxu0 %v642
    %2516 = vmatpush1.bf16.msra.mxu0 %v641
    %2517 = vmatprep.subr.bf16.mxu0 %v646
    %2518 = vmatpush1.bf16.msra.mxu0 %v645
    %2519 = vmatprep.subr.bf16.mxu0 0
    %2520 = vmatpush1.bf16.msra.mxu0 0
    %2521 = vmatprep.subr.bf16.mxu0 0
    %2522 = vmatpush1.bf16.msra.mxu0 0
    %2523 = vmatprep.subr.bf16.mxu0 0
    %2524 = vmatpush1.bf16.msra.mxu0 0
    %2525 = vmatprep.subr.bf16.mxu0 0
    %2526 = vmatpush1.bf16.msra.mxu0 0
    %2527 = vmatprep.subr.bf16.mxu0 0
    %2528 = vmatpush1.bf16.msra.mxu0 0
    %2529 = vmatprep.subr.bf16.mxu0 0
    %2530 = vmatpush1.bf16.msra.mxu0 0
    %2531 = vmatprep.subr.bf16.mxu0 0
    %2532 = vmatpush1.bf16.msra.mxu0 0
    %2533 = vmatprep.subr.bf16.mxu0 0
    %2534 = vmatpush1.bf16.msra.mxu0 0
    %2535 = vmatprep.mubr.bf16.mxu0 0
    %2536 = vmatmul.mubr.bf16.gmra.mrb[0].mxu0 %v2502
    %v2537 = vpop.f32.mrb[0].mxu0
    %v2538 = vadd.f32 0.0, %v2537
    %v2539 = vpop.f32.mrb[0].mxu0
    %v2540 = vadd.f32 0.0, %v2539
    %v2541 = vpop.f32.mrb[0].mxu0
    %v2542 = vpop.f32.mrb[0].mxu0
    %2543 = vdwg.mxu0
    %2544 = vmatprep.subr.bf16.mxu0 %v620
    %2545 = vmatpush1.bf16.msra.mxu0 %v619
    %2546 = vmatprep.subr.bf16.mxu0 %v624
    %2547 = vmatpush1.bf16.msra.mxu0 %v623
    %2548 = vmatprep.subr.bf16.mxu0 %v628
    %2549 = vmatpush1.bf16.msra.mxu0 %v627
    %2550 = vmatprep.subr.bf16.mxu0 %v632
    %2551 = vmatpush1.bf16.msra.mxu0 %v631
    %2552 = vmatprep.subr.bf16.mxu0 %v636
    %2553 = vmatpush1.bf16.msra.mxu0 %v635
    %2554 = vmatprep.subr.bf16.mxu0 %v640
    %2555 = vmatpush1.bf16.msra.mxu0 %v639
    %2556 = vmatprep.subr.bf16.mxu0 %v644
    %2557 = vmatpush1.bf16.msra.mxu0 %v643
    %2558 = vmatprep.subr.bf16.mxu0 %v648
    %2559 = vmatpush1.bf16.msra.mxu0 %v647
    %2560 = vmatprep.subr.bf16.mxu0 0
    %2561 = vmatpush1.bf16.msra.mxu0 0
    %2562 = vmatprep.subr.bf16.mxu0 0
    %2563 = vmatpush1.bf16.msra.mxu0 0
    %2564 = vmatprep.subr.bf16.mxu0 0
    %2565 = vmatpush1.bf16.msra.mxu0 0
    %2566 = vmatprep.subr.bf16.mxu0 0
    %2567 = vmatpush1.bf16.msra.mxu0 0
    %2568 = vmatprep.subr.bf16.mxu0 0
    %2569 = vmatpush1.bf16.msra.mxu0 0
    %2570 = vmatprep.subr.bf16.mxu0 0
    %2571 = vmatpush1.bf16.msra.mxu0 0
    %2572 = vmatprep.subr.bf16.mxu0 0
    %2573 = vmatpush1.bf16.msra.mxu0 0
    %2574 = vmatprep.subr.bf16.mxu0 0
    %2575 = vmatpush1.bf16.msra.mxu0 0
    %2576 = vmatprep.mubr.bf16.mxu0 0
    %2577 = vmatmul.mubr.bf16.gmra.mrb[0].mxu0 %v2502
    %v2578 = vpop.f32.mrb[0].mxu0
    %v2579 = vadd.f32 0.0, %v2578
    %v2580 = vpop.f32.mrb[0].mxu0
    %v2581 = vadd.f32 0.0, %v2580
    %v2582 = vpop.f32.mrb[0].mxu0
    %v2583 = vpop.f32.mrb[0].mxu0
    %2584 = vdwg.mxu0
    %2585 = vmatprep.subr.bf16.mxu0 %v860
    %2586 = vmatpush1.bf16.msra.mxu0 %v859
    %2587 = vmatprep.subr.bf16.mxu0 %v864
    %2588 = vmatpush1.bf16.msra.mxu0 %v863
    %2589 = vmatprep.subr.bf16.mxu0 %v868
    %2590 = vmatpush1.bf16.msra.mxu0 %v867
    %2591 = vmatprep.subr.bf16.mxu0 %v872
    %2592 = vmatpush1.bf16.msra.mxu0 %v871
    %2593 = vmatprep.subr.bf16.mxu0 %v876
    %2594 = vmatpush1.bf16.msra.mxu0 %v875
    %2595 = vmatprep.subr.bf16.mxu0 %v880
    %2596 = vmatpush1.bf16.msra.mxu0 %v879
    %2597 = vmatprep.subr.bf16.mxu0 %v884
    %2598 = vmatpush1.bf16.msra.mxu0 %v883
    %2599 = vmatprep.subr.bf16.mxu0 %v888
    %2600 = vmatpush1.bf16.msra.mxu0 %v887
    %2601 = vmatprep.subr.bf16.mxu0 0
    %2602 = vmatpush1.bf16.msra.mxu0 0
    %2603 = vmatprep.subr.bf16.mxu0 0
    %2604 = vmatpush1.bf16.msra.mxu0 0
    %2605 = vmatprep.subr.bf16.mxu0 0
    %2606 = vmatpush1.bf16.msra.mxu0 0
    %2607 = vmatprep.subr.bf16.mxu0 0
    %2608 = vmatpush1.bf16.msra.mxu0 0
    %2609 = vmatprep.subr.bf16.mxu0 0
    %2610 = vmatpush1.bf16.msra.mxu0 0
    %2611 = vmatprep.subr.bf16.mxu0 0
    %2612 = vmatpush1.bf16.msra.mxu0 0
    %2613 = vmatprep.subr.bf16.mxu0 0
    %2614 = vmatpush1.bf16.msra.mxu0 0
    %2615 = vmatprep.subr.bf16.mxu0 0
    %2616 = vmatpush1.bf16.msra.mxu0 0
    %2617 = vmatprep.mubr.bf16.mxu0 0
    %2618 = vmatmul.mubr.bf16.gmra.mrb[0].mxu0 %v2501
    %v2619 = vpop.f32.mrb[0].mxu0
    %v2620 = vadd.f32 %v2538, %v2619
    %v2621 = vpop.f32.mrb[0].mxu0
    %v2622 = vadd.f32 %v2540, %v2621
    %v2623 = vpop.f32.mrb[0].mxu0
    %v2624 = vpop.f32.mrb[0].mxu0
    %2625 = vdwg.mxu0
    %2626 = vmatprep.subr.bf16.mxu0 %v862
    %2627 = vmatpush1.bf16.msra.mxu0 %v861
    %2628 = vmatprep.subr.bf16.mxu0 %v866
    %2629 = vmatpush1.bf16.msra.mxu0 %v865
    %2630 = vmatprep.subr.bf16.mxu0 %v870
    %2631 = vmatpush1.bf16.msra.mxu0 %v869
    %2632 = vmatprep.subr.bf16.mxu0 %v874
    %2633 = vmatpush1.bf16.msra.mxu0 %v873
    %2634 = vmatprep.subr.bf16.mxu0 %v878
    %2635 = vmatpush1.bf16.msra.mxu0 %v877
    %2636 = vmatprep.subr.bf16.mxu0 %v882
    %2637 = vmatpush1.bf16.msra.mxu0 %v881
    %2638 = vmatprep.subr.bf16.mxu0 %v886
    %2639 = vmatpush1.bf16.msra.mxu0 %v885
    %2640 = vmatprep.subr.bf16.mxu0 %v890
    %2641 = vmatpush1.bf16.msra.mxu0 %v889
    %2642 = vmatprep.subr.bf16.mxu0 0
    %2643 = vmatpush1.bf16.msra.mxu0 0
    %2644 = vmatprep.subr.bf16.mxu0 0
    %2645 = vmatpush1.bf16.msra.mxu0 0
    %2646 = vmatprep.subr.bf16.mxu0 0
    %2647 = vmatpush1.bf16.msra.mxu0 0
    %2648 = vmatprep.subr.bf16.mxu0 0
    %2649 = vmatpush1.bf16.msra.mxu0 0
    %2650 = vmatprep.subr.bf16.mxu0 0
    %2651 = vmatpush1.bf16.msra.mxu0 0
    %2652 = vmatprep.subr.bf16.mxu0 0
    %2653 = vmatpush1.bf16.msra.mxu0 0
    %2654 = vmatprep.subr.bf16.mxu0 0
    %2655 = vmatpush1.bf16.msra.mxu0 0
    %2656 = vmatprep.subr.bf16.mxu0 0
    %2657 = vmatpush1.bf16.msra.mxu0 0
    %2658 = vmatprep.mubr.bf16.mxu0 0
    %2659 = vmatmul.mubr.bf16.gmra.mrb[0].mxu0 %v2501
    %v2660 = vpop.f32.mrb[0].mxu0
    %v2661 = vadd.f32 %v2579, %v2660
    %v2662 = vpop.f32.mrb[0].mxu0
    %v2663 = vadd.f32 %v2581, %v2662
    %v2664 = vpop.f32.mrb[0].mxu0
    %v2665 = vpop.f32.mrb[0].mxu0
    %2666 = vdwg.mxu0
    %v2667 = vadd.f32 %v2620, %v1010
    %v2668 = vadd.f32 %v2622, %v1014
    %v2669 = vadd.f32 %v2661, %v1018
    %v2670 = vadd.f32 %v2663, %v1022
    %v2671 = vxor.u32 %v2667, 2147483648
    %v2672 = vxor.u32 %v2668, 2147483648
    %v2673 = vxor.u32 %v2669, 2147483648
    %v2674 = vmul.f32 %v2671, 1.442695
    %v2675 = vpow.pop %v2674
    %v2676 = vmul.f32 %v2672, 1.442695
    %v2677 = vpow.pop %v2676
    %v2678 = vmul.f32 %v2673, 1.442695
    %v2679 = vpow.pop %v2678
    %v2680 = vadd.f32 %v2675, 1.0
    %v2681 = vadd.f32 %v2677, 1.0
    %v2682 = vadd.f32 %v2679, 1.0
    %v2683 = vrcp.pop %v2680
    %v2684 = vmul.f32 1.0, %v2683
    %v2685 = vrcp.pop %v2681
    %v2686 = vmul.f32 1.0, %v2685
    %v2687 = vrcp.pop %v2682
    %v2688 = vmul.f32 1.0, %v2687
    %v2689 = vtanh.pop %v2670
    %v2690 = vmul.f32 %v2686, %v2364
    %v2691 = vmul.f32 %v2684, %v2689
    %v2692 = vadd.f32 %v2690, %v2691
    %v2693 = vtanh.pop %v2692
    %v2694 = vmul.f32 %v2688, %v2693
    %s2695 = scalar_lea.vmem [#allocation2], 6
    %v2696 = vld [vmem:[%s2695] ss:$8 sm:$0xf]
    %2697 = vmatprep.subr.bf16.mxu0 %v261
    %2698 = vmatpush1.bf16.msra.mxu0 %v260
    %2699 = vmatprep.subr.bf16.mxu0 %v265
    %2700 = vmatpush1.bf16.msra.mxu0 %v264
    %2701 = vmatprep.subr.bf16.mxu0 %v269
    %2702 = vmatpush1.bf16.msra.mxu0 %v268
    %2703 = vmatprep.subr.bf16.mxu0 %v273
    %2704 = vmatpush1.bf16.msra.mxu0 %v272
    %2705 = vmatprep.subr.bf16.mxu0 %v277
    %2706 = vmatpush1.bf16.msra.mxu0 %v276
    %2707 = vmatprep.subr.bf16.mxu0 %v281
    %2708 = vmatpush1.bf16.msra.mxu0 %v280
    %2709 = vmatprep.subr.bf16.mxu0 %v285
    %2710 = vmatpush1.bf16.msra.mxu0 %v284
    %2711 = vmatprep.subr.bf16.mxu0 %v289
    %2712 = vmatpush1.bf16.msra.mxu0 %v288
    %2713 = vmatprep.subr.bf16.mxu0 0
    %2714 = vmatpush1.bf16.msra.mxu0 0
    %2715 = vmatprep.subr.bf16.mxu0 0
    %2716 = vmatpush1.bf16.msra.mxu0 0
    %2717 = vmatprep.subr.bf16.mxu0 0
    %2718 = vmatpush1.bf16.msra.mxu0 0
    %2719 = vmatprep.subr.bf16.mxu0 0
    %2720 = vmatpush1.bf16.msra.mxu0 0
    %2721 = vmatprep.subr.bf16.mxu0 0
    %2722 = vmatpush1.bf16.msra.mxu0 0
    %2723 = vmatprep.subr.bf16.mxu0 0
    %2724 = vmatpush1.bf16.msra.mxu0 0
    %2725 = vmatprep.subr.bf16.mxu0 0
    %2726 = vmatpush1.bf16.msra.mxu0 0
    %2727 = vmatprep.subr.bf16.mxu0 0
    %2728 = vmatpush1.bf16.msra.mxu0 0
    %2729 = vmatprep.mubr.bf16.mxu0 0
    %2730 = vmatmul.mubr.bf16.gmra.mrb[0].mxu0 %v2501
    %v2731 = vpop.f32.mrb[0].mxu0
    %v2732 = vadd.f32 0.0, %v2731
    %v2733 = vpop.f32.mrb[0].mxu0
    %v2734 = vadd.f32 0.0, %v2733
    %v2735 = vpop.f32.mrb[0].mxu0
    %v2736 = vpop.f32.mrb[0].mxu0
    %2737 = vdwg.mxu0
    %2738 = vmatprep.subr.bf16.mxu0 %v263
    %2739 = vmatpush1.bf16.msra.mxu0 %v262
    %2740 = vmatprep.subr.bf16.mxu0 %v267
    %2741 = vmatpush1.bf16.msra.mxu0 %v266
    %2742 = vmatprep.subr.bf16.mxu0 %v271
    %2743 = vmatpush1.bf16.msra.mxu0 %v270
    %2744 = vmatprep.subr.bf16.mxu0 %v275
    %2745 = vmatpush1.bf16.msra.mxu0 %v274
    %2746 = vmatprep.subr.bf16.mxu0 %v279
    %2747 = vmatpush1.bf16.msra.mxu0 %v278
    %2748 = vmatprep.subr.bf16.mxu0 %v283
    %2749 = vmatpush1.bf16.msra.mxu0 %v282
    %2750 = vmatprep.subr.bf16.mxu0 %v287
    %2751 = vmatpush1.bf16.msra.mxu0 %v286
    %2752 = vmatprep.subr.bf16.mxu0 %v291
    %2753 = vmatpush1.bf16.msra.mxu0 %v290
    %2754 = vmatprep.subr.bf16.mxu0 0
    %2755 = vmatpush1.bf16.msra.mxu0 0
    %2756 = vmatprep.subr.bf16.mxu0 0
    %2757 = vmatpush1.bf16.msra.mxu0 0
    %2758 = vmatprep.subr.bf16.mxu0 0
    %2759 = vmatpush1.bf16.msra.mxu0 0
    %2760 = vmatprep.subr.bf16.mxu0 0
    %2761 = vmatpush1.bf16.msra.mxu0 0
    %2762 = vmatprep.subr.bf16.mxu0 0
    %2763 = vmatpush1.bf16.msra.mxu0 0
    %2764 = vmatprep.subr.bf16.mxu0 0
    %2765 = vmatpush1.bf16.msra.mxu0 0
    %2766 = vmatprep.subr.bf16.mxu0 0
    %2767 = vmatpush1.bf16.msra.mxu0 0
    %2768 = vmatprep.subr.bf16.mxu0 0
    %2769 = vmatpush1.bf16.msra.mxu0 0
    %2770 = vmatprep.mubr.bf16.mxu0 0
    %2771 = vmatmul.mubr.bf16.gmra.mrb[0].mxu0 %v2501
    %v2772 = vpop.f32.mrb[0].mxu0
    %v2773 = vadd.f32 0.0, %v2772
    %v2774 = vpop.f32.mrb[0].mxu0
    %v2775 = vadd.f32 0.0, %v2774
    %v2776 = vpop.f32.mrb[0].mxu0
    %v2777 = vpop.f32.mrb[0].mxu0
    %2778 = vdwg.mxu0
    %v2783 = vcombine.low %v2732, %v2734
    %v2784 = vcombine.low %v2773, %v2775
    %v2786 = vunpack.c.l.s4 1966171168
    %v2787 = vunpack.c.0.s8 %v2786
    %v2788 = vlaneseq
    %v2789 = vshrl.u32 %v2788, 7
    %v2790 = vsub.s32 %v2787, %v2789
    %v2791 = vrot.slane %v2783, %v2790
    %v2793 = vunpack.c.l.s4 1966171168
    %v2794 = vunpack.c.0.s8 %v2793
    %v2795 = vlaneseq
    %v2796 = vshrl.u32 %v2795, 7
    %v2797 = vsub.s32 %v2794, %v2796
    %v2798 = vrot.slane %v2784, %v2797
    %v2799 = vcombine.low %v2791, %v2798
    %v2801 = vunpack.c.l.s4 1966171168
    %v2802 = vunpack.c.0.s8 %v2801
    %v2803 = vlaneseq
    %v2804 = vshrl.u32 %v2803, 7
    %v2805 = vsub.s32 %v2802, %v2804
    %v2806 = vrot.slane %v2799, %v2805
    %v2808 = vadd.f32 %v2696, %v2806
    %v2809 = vxor.u32 %v2808, 2147483648
    %v2810 = vmul.f32 %v2809, 1.442695
    %v2811 = vpow.pop %v2810
    %v2812 = vadd.f32 %v2811, 1.0
    %v2813 = vrcp.pop %v2812
    %v2814 = vmul.f32 1.0, %v2813
    %v2816 = vrot.slane %v2808, 3
    %v2818 = vtanh.pop %v2816
    %v2820 = vrot.slane %v2814, 1
    %v2822 = vmul.f32 %v2820, %v2496
    %v2823 = vmul.f32 %v2814, %v2818
    %v2824 = vadd.f32 %v2822, %v2823
    %v2825 = vtanh.pop %v2824
    %v2826 = vrot.slane %v2814, 2
    %v2828 = vmul.f32 %v2826, %v2825
    %v2829 = vpack.c.bf16 %v2828, %v2828
    %v2830 = vpack.c.bf16 %v2694, %v2694
    %2831 = vmatprep.subr.bf16.mxu0 %v618
    %2832 = vmatpush1.bf16.msra.mxu0 %v617
    %2833 = vmatprep.subr.bf16.mxu0 %v622
    %2834 = vmatpush1.bf16.msra.mxu0 %v621
    %2835 = vmatprep.subr.bf16.mxu0 %v626
    %2836 = vmatpush1.bf16.msra.mxu0 %v625
    %2837 = vmatprep.subr.bf16.mxu0 %v630
    %2838 = vmatpush1.bf16.msra.mxu0 %v629
    %2839 = vmatprep.subr.bf16.mxu0 %v634
    %2840 = vmatpush1.bf16.msra.mxu0 %v633
    %2841 = vmatprep.subr.bf16.mxu0 %v638
    %2842 = vmatpush1.bf16.msra.mxu0 %v637
    %2843 = vmatprep.subr.bf16.mxu0 %v642
    %2844 = vmatpush1.bf16.msra.mxu0 %v641
    %2845 = vmatprep.subr.bf16.mxu0 %v646
    %2846 = vmatpush1.bf16.msra.mxu0 %v645
    %2847 = vmatprep.subr.bf16.mxu0 0
    %2848 = vmatpush1.bf16.msra.mxu0 0
    %2849 = vmatprep.subr.bf16.mxu0 0
    %2850 = vmatpush1.bf16.msra.mxu0 0
    %2851 = vmatprep.subr.bf16.mxu0 0
    %2852 = vmatpush1.bf16.msra.mxu0 0
    %2853 = vmatprep.subr.bf16.mxu0 0
    %2854 = vmatpush1.bf16.msra.mxu0 0
    %2855 = vmatprep.subr.bf16.mxu0 0
    %2856 = vmatpush1.bf16.msra.mxu0 0
    %2857 = vmatprep.subr.bf16.mxu0 0
    %2858 = vmatpush1.bf16.msra.mxu0 0
    %2859 = vmatprep.subr.bf16.mxu0 0
    %2860 = vmatpush1.bf16.msra.mxu0 0
    %2861 = vmatprep.subr.bf16.mxu0 0
    %2862 = vmatpush1.bf16.msra.mxu0 0
    %2863 = vmatprep.mubr.bf16.mxu0 0
    %2864 = vmatmul.mubr.bf16.gmra.mrb[0].mxu0 %v2830
    %v2865 = vpop.f32.mrb[0].mxu0
    %v2866 = vadd.f32 0.0, %v2865
    %v2867 = vpop.f32.mrb[0].mxu0
    %v2868 = vadd.f32 0.0, %v2867
    %v2869 = vpop.f32.mrb[0].mxu0
    %v2870 = vpop.f32.mrb[0].mxu0
    %2871 = vdwg.mxu0
    %2872 = vmatprep.subr.bf16.mxu0 %v620
    %2873 = vmatpush1.bf16.msra.mxu0 %v619
    %2874 = vmatprep.subr.bf16.mxu0 %v624
    %2875 = vmatpush1.bf16.msra.mxu0 %v623
    %2876 = vmatprep.subr.bf16.mxu0 %v628
    %2877 = vmatpush1.bf16.msra.mxu0 %v627
    %2878 = vmatprep.subr.bf16.mxu0 %v632
    %2879 = vmatpush1.bf16.msra.mxu0 %v631
    %2880 = vmatprep.subr.bf16.mxu0 %v636
    %2881 = vmatpush1.bf16.msra.mxu0 %v635
    %2882 = vmatprep.subr.bf16.mxu0 %v640
    %2883 = vmatpush1.bf16.msra.mxu0 %v639
    %2884 = vmatprep.subr.bf16.mxu0 %v644
    %2885 = vmatpush1.bf16.msra.mxu0 %v643
    %2886 = vmatprep.subr.bf16.mxu0 %v648
    %2887 = vmatpush1.bf16.msra.mxu0 %v647
    %2888 = vmatprep.subr.bf16.mxu0 0
    %2889 = vmatpush1.bf16.msra.mxu0 0
    %2890 = vmatprep.subr.bf16.mxu0 0
    %2891 = vmatpush1.bf16.msra.mxu0 0
    %2892 = vmatprep.subr.bf16.mxu0 0
    %2893 = vmatpush1.bf16.msra.mxu0 0
    %2894 = vmatprep.subr.bf16.mxu0 0
    %2895 = vmatpush1.bf16.msra.mxu0 0
    %2896 = vmatprep.subr.bf16.mxu0 0
    %2897 = vmatpush1.bf16.msra.mxu0 0
    %2898 = vmatprep.subr.bf16.mxu0 0
    %2899 = vmatpush1.bf16.msra.mxu0 0
    %2900 = vmatprep.subr.bf16.mxu0 0
    %2901 = vmatpush1.bf16.msra.mxu0 0
    %2902 = vmatprep.subr.bf16.mxu0 0
    %2903 = vmatpush1.bf16.msra.mxu0 0
    %2904 = vmatprep.mubr.bf16.mxu0 0
    %2905 = vmatmul.mubr.bf16.gmra.mrb[0].mxu0 %v2830
    %v2906 = vpop.f32.mrb[0].mxu0
    %v2907 = vadd.f32 0.0, %v2906
    %v2908 = vpop.f32.mrb[0].mxu0
    %v2909 = vadd.f32 0.0, %v2908
    %v2910 = vpop.f32.mrb[0].mxu0
    %v2911 = vpop.f32.mrb[0].mxu0
    %2912 = vdwg.mxu0
    %2913 = vmatprep.subr.bf16.mxu0 %v860
    %2914 = vmatpush1.bf16.msra.mxu0 %v859
    %2915 = vmatprep.subr.bf16.mxu0 %v864
    %2916 = vmatpush1.bf16.msra.mxu0 %v863
    %2917 = vmatprep.subr.bf16.mxu0 %v868
    %2918 = vmatpush1.bf16.msra.mxu0 %v867
    %2919 = vmatprep.subr.bf16.mxu0 %v872
    %2920 = vmatpush1.bf16.msra.mxu0 %v871
    %2921 = vmatprep.subr.bf16.mxu0 %v876
    %2922 = vmatpush1.bf16.msra.mxu0 %v875
    %2923 = vmatprep.subr.bf16.mxu0 %v880
    %2924 = vmatpush1.bf16.msra.mxu0 %v879
    %2925 = vmatprep.subr.bf16.mxu0 %v884
    %2926 = vmatpush1.bf16.msra.mxu0 %v883
    %2927 = vmatprep.subr.bf16.mxu0 %v888
    %2928 = vmatpush1.bf16.msra.mxu0 %v887
    %2929 = vmatprep.subr.bf16.mxu0 0
    %2930 = vmatpush1.bf16.msra.mxu0 0
    %2931 = vmatprep.subr.bf16.mxu0 0
    %2932 = vmatpush1.bf16.msra.mxu0 0
    %2933 = vmatprep.subr.bf16.mxu0 0
    %2934 = vmatpush1.bf16.msra.mxu0 0
    %2935 = vmatprep.subr.bf16.mxu0 0
    %2936 = vmatpush1.bf16.msra.mxu0 0
    %2937 = vmatprep.subr.bf16.mxu0 0
    %2938 = vmatpush1.bf16.msra.mxu0 0
    %2939 = vmatprep.subr.bf16.mxu0 0
    %2940 = vmatpush1.bf16.msra.mxu0 0
    %2941 = vmatprep.subr.bf16.mxu0 0
    %2942 = vmatpush1.bf16.msra.mxu0 0
    %2943 = vmatprep.subr.bf16.mxu0 0
    %2944 = vmatpush1.bf16.msra.mxu0 0
    %2945 = vmatprep.mubr.bf16.mxu0 0
    %2946 = vmatmul.mubr.bf16.gmra.mrb[0].mxu0 %v2829
    %v2947 = vpop.f32.mrb[0].mxu0
    %v2948 = vadd.f32 %v2866, %v2947
    %v2949 = vpop.f32.mrb[0].mxu0
    %v2950 = vadd.f32 %v2868, %v2949
    %v2951 = vpop.f32.mrb[0].mxu0
    %v2952 = vpop.f32.mrb[0].mxu0
    %2953 = vdwg.mxu0
    %2954 = vmatprep.subr.bf16.mxu0 %v862
    %2955 = vmatpush1.bf16.msra.mxu0 %v861
    %2956 = vmatprep.subr.bf16.mxu0 %v866
    %2957 = vmatpush1.bf16.msra.mxu0 %v865
    %2958 = vmatprep.subr.bf16.mxu0 %v870
    %2959 = vmatpush1.bf16.msra.mxu0 %v869
    %2960 = vmatprep.subr.bf16.mxu0 %v874
    %2961 = vmatpush1.bf16.msra.mxu0 %v873
    %2962 = vmatprep.subr.bf16.mxu0 %v878
    %2963 = vmatpush1.bf16.msra.mxu0 %v877
    %2964 = vmatprep.subr.bf16.mxu0 %v882
    %2965 = vmatpush1.bf16.msra.mxu0 %v881
    %2966 = vmatprep.subr.bf16.mxu0 %v886
    %2967 = vmatpush1.bf16.msra.mxu0 %v885
    %2968 = vmatprep.subr.bf16.mxu0 %v890
    %2969 = vmatpush1.bf16.msra.mxu0 %v889
    %2970 = vmatprep.subr.bf16.mxu0 0
    %2971 = vmatpush1.bf16.msra.mxu0 0
    %2972 = vmatprep.subr.bf16.mxu0 0
    %2973 = vmatpush1.bf16.msra.mxu0 0
    %2974 = vmatprep.subr.bf16.mxu0 0
    %2975 = vmatpush1.bf16.msra.mxu0 0
    %2976 = vmatprep.subr.bf16.mxu0 0
    %2977 = vmatpush1.bf16.msra.mxu0 0
    %2978 = vmatprep.subr.bf16.mxu0 0
    %2979 = vmatpush1.bf16.msra.mxu0 0
    %2980 = vmatprep.subr.bf16.mxu0 0
    %2981 = vmatpush1.bf16.msra.mxu0 0
    %2982 = vmatprep.subr.bf16.mxu0 0
    %2983 = vmatpush1.bf16.msra.mxu0 0
    %2984 = vmatprep.subr.bf16.mxu0 0
    %2985 = vmatpush1.bf16.msra.mxu0 0
    %2986 = vmatprep.mubr.bf16.mxu0 0
    %2987 = vmatmul.mubr.bf16.gmra.mrb[0].mxu0 %v2829
    %v2988 = vpop.f32.mrb[0].mxu0
    %v2989 = vadd.f32 %v2907, %v2988
    %v2990 = vpop.f32.mrb[0].mxu0
    %v2991 = vadd.f32 %v2909, %v2990
    %v2992 = vpop.f32.mrb[0].mxu0
    %v2993 = vpop.f32.mrb[0].mxu0
    %2994 = vdwg.mxu0
    %v2995 = vadd.f32 %v2948, %v1010
    %v2996 = vadd.f32 %v2950, %v1014
    %v2997 = vadd.f32 %v2989, %v1018
    %v2998 = vadd.f32 %v2991, %v1022
    %v2999 = vxor.u32 %v2995, 2147483648
    %v3000 = vxor.u32 %v2996, 2147483648
    %v3001 = vxor.u32 %v2997, 2147483648
    %v3002 = vmul.f32 %v2999, 1.442695
    %v3003 = vpow.pop %v3002
    %v3004 = vmul.f32 %v3000, 1.442695
    %v3005 = vpow.pop %v3004
    %v3006 = vmul.f32 %v3001, 1.442695
    %v3007 = vpow.pop %v3006
    %v3008 = vadd.f32 %v3003, 1.0
    %v3009 = vadd.f32 %v3005, 1.0
    %v3010 = vadd.f32 %v3007, 1.0
    %v3011 = vrcp.pop %v3008
    %v3012 = vmul.f32 1.0, %v3011
    %v3013 = vrcp.pop %v3009
    %v3014 = vmul.f32 1.0, %v3013
    %v3015 = vrcp.pop %v3010
    %v3016 = vmul.f32 1.0, %v3015
    %v3017 = vtanh.pop %v2998
    %v3018 = vmul.f32 %v3014, %v2692
    %v3019 = vmul.f32 %v3012, %v3017
    %v3020 = vadd.f32 %v3018, %v3019
    %v3021 = vtanh.pop %v3020
    %v3022 = vmul.f32 %v3016, %v3021
    %s3023 = scalar_lea.vmem [#allocation2], 7
    %v3024 = vld [vmem:[%s3023] ss:$8 sm:$0xf]
    %3025 = vmatprep.subr.bf16.mxu0 %v261
    %3026 = vmatpush1.bf16.msra.mxu0 %v260
    %3027 = vmatprep.subr.bf16.mxu0 %v265
    %3028 = vmatpush1.bf16.msra.mxu0 %v264
    %3029 = vmatprep.subr.bf16.mxu0 %v269
    %3030 = vmatpush1.bf16.msra.mxu0 %v268
    %3031 = vmatprep.subr.bf16.mxu0 %v273
    %3032 = vmatpush1.bf16.msra.mxu0 %v272
    %3033 = vmatprep.subr.bf16.mxu0 %v277
    %3034 = vmatpush1.bf16.msra.mxu0 %v276
    %3035 = vmatprep.subr.bf16.mxu0 %v281
    %3036 = vmatpush1.bf16.msra.mxu0 %v280
    %3037 = vmatprep.subr.bf16.mxu0 %v285
    %3038 = vmatpush1.bf16.msra.mxu0 %v284
    %3039 = vmatprep.subr.bf16.mxu0 %v289
    %3040 = vmatpush1.bf16.msra.mxu0 %v288
    %3041 = vmatprep.subr.bf16.mxu0 0
    %3042 = vmatpush1.bf16.msra.mxu0 0
    %3043 = vmatprep.subr.bf16.mxu0 0
    %3044 = vmatpush1.bf16.msra.mxu0 0
    %3045 = vmatprep.subr.bf16.mxu0 0
    %3046 = vmatpush1.bf16.msra.mxu0 0
    %3047 = vmatprep.subr.bf16.mxu0 0
    %3048 = vmatpush1.bf16.msra.mxu0 0
    %3049 = vmatprep.subr.bf16.mxu0 0
    %3050 = vmatpush1.bf16.msra.mxu0 0
    %3051 = vmatprep.subr.bf16.mxu0 0
    %3052 = vmatpush1.bf16.msra.mxu0 0
    %3053 = vmatprep.subr.bf16.mxu0 0
    %3054 = vmatpush1.bf16.msra.mxu0 0
    %3055 = vmatprep.subr.bf16.mxu0 0
    %3056 = vmatpush1.bf16.msra.mxu0 0
    %3057 = vmatprep.mubr.bf16.mxu0 0
    %3058 = vmatmul.mubr.bf16.gmra.mrb[0].mxu0 %v2829
    %v3059 = vpop.f32.mrb[0].mxu0
    %v3060 = vadd.f32 0.0, %v3059
    %v3061 = vpop.f32.mrb[0].mxu0
    %v3062 = vadd.f32 0.0, %v3061
    %v3063 = vpop.f32.mrb[0].mxu0
    %v3064 = vpop.f32.mrb[0].mxu0
    %3065 = vdwg.mxu0
    %3066 = vmatprep.subr.bf16.mxu0 %v263
    %3067 = vmatpush1.bf16.msra.mxu0 %v262
    %3068 = vmatprep.subr.bf16.mxu0 %v267
    %3069 = vmatpush1.bf16.msra.mxu0 %v266
    %3070 = vmatprep.subr.bf16.mxu0 %v271
    %3071 = vmatpush1.bf16.msra.mxu0 %v270
    %3072 = vmatprep.subr.bf16.mxu0 %v275
    %3073 = vmatpush1.bf16.msra.mxu0 %v274
    %3074 = vmatprep.subr.bf16.mxu0 %v279
    %3075 = vmatpush1.bf16.msra.mxu0 %v278
    %3076 = vmatprep.subr.bf16.mxu0 %v283
    %3077 = vmatpush1.bf16.msra.mxu0 %v282
    %3078 = vmatprep.subr.bf16.mxu0 %v287
    %3079 = vmatpush1.bf16.msra.mxu0 %v286
    %3080 = vmatprep.subr.bf16.mxu0 %v291
    %3081 = vmatpush1.bf16.msra.mxu0 %v290
    %3082 = vmatprep.subr.bf16.mxu0 0
    %3083 = vmatpush1.bf16.msra.mxu0 0
    %3084 = vmatprep.subr.bf16.mxu0 0
    %3085 = vmatpush1.bf16.msra.mxu0 0
    %3086 = vmatprep.subr.bf16.mxu0 0
    %3087 = vmatpush1.bf16.msra.mxu0 0
    %3088 = vmatprep.subr.bf16.mxu0 0
    %3089 = vmatpush1.bf16.msra.mxu0 0
    %3090 = vmatprep.subr.bf16.mxu0 0
    %3091 = vmatpush1.bf16.msra.mxu0 0
    %3092 = vmatprep.subr.bf16.mxu0 0
    %3093 = vmatpush1.bf16.msra.mxu0 0
    %3094 = vmatprep.subr.bf16.mxu0 0
    %3095 = vmatpush1.bf16.msra.mxu0 0
    %3096 = vmatprep.subr.bf16.mxu0 0
    %3097 = vmatpush1.bf16.msra.mxu0 0
    %3098 = vmatprep.mubr.bf16.mxu0 0
    %3099 = vmatmul.mubr.bf16.gmra.mrb[0].mxu0 %v2829
    %v3100 = vpop.f32.mrb[0].mxu0
    %v3101 = vadd.f32 0.0, %v3100
    %v3102 = vpop.f32.mrb[0].mxu0
    %v3103 = vadd.f32 0.0, %v3102
    %v3104 = vpop.f32.mrb[0].mxu0
    %v3105 = vpop.f32.mrb[0].mxu0
    %3106 = vdwg.mxu0
    %v3111 = vcombine.low %v3060, %v3062
    %v3112 = vcombine.low %v3101, %v3103
    %v3114 = vunpack.c.l.s4 1966171168
    %v3115 = vunpack.c.0.s8 %v3114
    %v3116 = vlaneseq
    %v3117 = vshrl.u32 %v3116, 7
    %v3118 = vsub.s32 %v3115, %v3117
    %v3119 = vrot.slane %v3111, %v3118
    %v3121 = vunpack.c.l.s4 1966171168
    %v3122 = vunpack.c.0.s8 %v3121
    %v3123 = vlaneseq
    %v3124 = vshrl.u32 %v3123, 7
    %v3125 = vsub.s32 %v3122, %v3124
    %v3126 = vrot.slane %v3112, %v3125
    %v3127 = vcombine.low %v3119, %v3126
    %v3129 = vunpack.c.l.s4 1966171168
    %v3130 = vunpack.c.0.s8 %v3129
    %v3131 = vlaneseq
    %v3132 = vshrl.u32 %v3131, 7
    %v3133 = vsub.s32 %v3130, %v3132
    %v3134 = vrot.slane %v3127, %v3133
    %v3136 = vadd.f32 %v3024, %v3134
    %v3137 = vxor.u32 %v3136, 2147483648
    %v3138 = vmul.f32 %v3137, 1.442695
    %v3139 = vpow.pop %v3138
    %v3140 = vadd.f32 %v3139, 1.0
    %v3141 = vrcp.pop %v3140
    %v3142 = vmul.f32 1.0, %v3141
    %v3144 = vrot.slane %v3136, 3
    %v3146 = vtanh.pop %v3144
    %v3148 = vrot.slane %v3142, 1
    %v3150 = vmul.f32 %v3148, %v2824
    %v3151 = vmul.f32 %v3142, %v3146
    %v3152 = vadd.f32 %v3150, %v3151
    %v3153 = vtanh.pop %v3152
    %v3154 = vrot.slane %v3142, 2
    %v3156 = vmul.f32 %v3154, %v3153
    %v3157 = vpack.c.bf16 %v3156, %v3156
    %v3158 = vpack.c.bf16 %v3022, %v3022
    %3159 = vmatprep.subr.bf16.mxu0 %v618
    %3160 = vmatpush1.bf16.msra.mxu0 %v617
    %3161 = vmatprep.subr.bf16.mxu0 %v622
    %3162 = vmatpush1.bf16.msra.mxu0 %v621
    %3163 = vmatprep.subr.bf16.mxu0 %v626
    %3164 = vmatpush1.bf16.msra.mxu0 %v625
    %3165 = vmatprep.subr.bf16.mxu0 %v630
    %3166 = vmatpush1.bf16.msra.mxu0 %v629
    %3167 = vmatprep.subr.bf16.mxu0 %v634
    %3168 = vmatpush1.bf16.msra.mxu0 %v633
    %3169 = vmatprep.subr.bf16.mxu0 %v638
    %3170 = vmatpush1.bf16.msra.mxu0 %v637
    %3171 = vmatprep.subr.bf16.mxu0 %v642
    %3172 = vmatpush1.bf16.msra.mxu0 %v641
    %3173 = vmatprep.subr.bf16.mxu0 %v646
    %3174 = vmatpush1.bf16.msra.mxu0 %v645
    %3175 = vmatprep.subr.bf16.mxu0 0
    %3176 = vmatpush1.bf16.msra.mxu0 0
    %3177 = vmatprep.subr.bf16.mxu0 0
    %3178 = vmatpush1.bf16.msra.mxu0 0
    %3179 = vmatprep.subr.bf16.mxu0 0
    %3180 = vmatpush1.bf16.msra.mxu0 0
    %3181 = vmatprep.subr.bf16.mxu0 0
    %3182 = vmatpush1.bf16.msra.mxu0 0
    %3183 = vmatprep.subr.bf16.mxu0 0
    %3184 = vmatpush1.bf16.msra.mxu0 0
    %3185 = vmatprep.subr.bf16.mxu0 0
    %3186 = vmatpush1.bf16.msra.mxu0 0
    %3187 = vmatprep.subr.bf16.mxu0 0
    %3188 = vmatpush1.bf16.msra.mxu0 0
    %3189 = vmatprep.subr.bf16.mxu0 0
    %3190 = vmatpush1.bf16.msra.mxu0 0
    %3191 = vmatprep.mubr.bf16.mxu0 0
    %3192 = vmatmul.mubr.bf16.gmra.mrb[0].mxu0 %v3158
    %v3193 = vpop.f32.mrb[0].mxu0
    %v3194 = vadd.f32 0.0, %v3193
    %v3195 = vpop.f32.mrb[0].mxu0
    %v3196 = vadd.f32 0.0, %v3195
    %v3197 = vpop.f32.mrb[0].mxu0
    %v3198 = vpop.f32.mrb[0].mxu0
    %3199 = vdwg.mxu0
    %3200 = vmatprep.subr.bf16.mxu0 %v620
    %3201 = vmatpush1.bf16.msra.mxu0 %v619
    %3202 = vmatprep.subr.bf16.mxu0 %v624
    %3203 = vmatpush1.bf16.msra.mxu0 %v623
    %3204 = vmatprep.subr.bf16.mxu0 %v628
    %3205 = vmatpush1.bf16.msra.mxu0 %v627
    %3206 = vmatprep.subr.bf16.mxu0 %v632
    %3207 = vmatpush1.bf16.msra.mxu0 %v631
    %3208 = vmatprep.subr.bf16.mxu0 %v636
    %3209 = vmatpush1.bf16.msra.mxu0 %v635
    %3210 = vmatprep.subr.bf16.mxu0 %v640
    %3211 = vmatpush1.bf16.msra.mxu0 %v639
    %3212 = vmatprep.subr.bf16.mxu0 %v644
    %3213 = vmatpush1.bf16.msra.mxu0 %v643
    %3214 = vmatprep.subr.bf16.mxu0 %v648
    %3215 = vmatpush1.bf16.msra.mxu0 %v647
    %3216 = vmatprep.subr.bf16.mxu0 0
    %3217 = vmatpush1.bf16.msra.mxu0 0
    %3218 = vmatprep.subr.bf16.mxu0 0
    %3219 = vmatpush1.bf16.msra.mxu0 0
    %3220 = vmatprep.subr.bf16.mxu0 0
    %3221 = vmatpush1.bf16.msra.mxu0 0
    %3222 = vmatprep.subr.bf16.mxu0 0
    %3223 = vmatpush1.bf16.msra.mxu0 0
    %3224 = vmatprep.subr.bf16.mxu0 0
    %3225 = vmatpush1.bf16.msra.mxu0 0
    %3226 = vmatprep.subr.bf16.mxu0 0
    %3227 = vmatpush1.bf16.msra.mxu0 0
    %3228 = vmatprep.subr.bf16.mxu0 0
    %3229 = vmatpush1.bf16.msra.mxu0 0
    %3230 = vmatprep.subr.bf16.mxu0 0
    %3231 = vmatpush1.bf16.msra.mxu0 0
    %3232 = vmatprep.mubr.bf16.mxu0 0
    %3233 = vmatmul.mubr.bf16.gmra.mrb[0].mxu0 %v3158
    %v3234 = vpop.f32.mrb[0].mxu0
    %v3235 = vadd.f32 0.0, %v3234
    %v3236 = vpop.f32.mrb[0].mxu0
    %v3237 = vadd.f32 0.0, %v3236
    %v3238 = vpop.f32.mrb[0].mxu0
    %v3239 = vpop.f32.mrb[0].mxu0
    %3240 = vdwg.mxu0
    %3241 = vmatprep.subr.bf16.mxu0 %v860
    %3242 = vmatpush1.bf16.msra.mxu0 %v859
    %3243 = vmatprep.subr.bf16.mxu0 %v864
    %3244 = vmatpush1.bf16.msra.mxu0 %v863
    %3245 = vmatprep.subr.bf16.mxu0 %v868
    %3246 = vmatpush1.bf16.msra.mxu0 %v867
    %3247 = vmatprep.subr.bf16.mxu0 %v872
    %3248 = vmatpush1.bf16.msra.mxu0 %v871
    %3249 = vmatprep.subr.bf16.mxu0 %v876
    %3250 = vmatpush1.bf16.msra.mxu0 %v875
    %3251 = vmatprep.subr.bf16.mxu0 %v880
    %3252 = vmatpush1.bf16.msra.mxu0 %v879
    %3253 = vmatprep.subr.bf16.mxu0 %v884
    %3254 = vmatpush1.bf16.msra.mxu0 %v883
    %3255 = vmatprep.subr.bf16.mxu0 %v888
    %3256 = vmatpush1.bf16.msra.mxu0 %v887
    %3257 = vmatprep.subr.bf16.mxu0 0
    %3258 = vmatpush1.bf16.msra.mxu0 0
    %3259 = vmatprep.subr.bf16.mxu0 0
    %3260 = vmatpush1.bf16.msra.mxu0 0
    %3261 = vmatprep.subr.bf16.mxu0 0
    %3262 = vmatpush1.bf16.msra.mxu0 0
    %3263 = vmatprep.subr.bf16.mxu0 0
    %3264 = vmatpush1.bf16.msra.mxu0 0
    %3265 = vmatprep.subr.bf16.mxu0 0
    %3266 = vmatpush1.bf16.msra.mxu0 0
    %3267 = vmatprep.subr.bf16.mxu0 0
    %3268 = vmatpush1.bf16.msra.mxu0 0
    %3269 = vmatprep.subr.bf16.mxu0 0
    %3270 = vmatpush1.bf16.msra.mxu0 0
    %3271 = vmatprep.subr.bf16.mxu0 0
    %3272 = vmatpush1.bf16.msra.mxu0 0
    %3273 = vmatprep.mubr.bf16.mxu0 0
    %3274 = vmatmul.mubr.bf16.gmra.mrb[0].mxu0 %v3157
    %v3275 = vpop.f32.mrb[0].mxu0
    %v3276 = vadd.f32 %v3194, %v3275
    %v3277 = vpop.f32.mrb[0].mxu0
    %v3278 = vadd.f32 %v3196, %v3277
    %v3279 = vpop.f32.mrb[0].mxu0
    %v3280 = vpop.f32.mrb[0].mxu0
    %3281 = vdwg.mxu0
    %3282 = vmatprep.subr.bf16.mxu0 %v862
    %3283 = vmatpush1.bf16.msra.mxu0 %v861
    %3284 = vmatprep.subr.bf16.mxu0 %v866
    %3285 = vmatpush1.bf16.msra.mxu0 %v865
    %3286 = vmatprep.subr.bf16.mxu0 %v870
    %3287 = vmatpush1.bf16.msra.mxu0 %v869
    %3288 = vmatprep.subr.bf16.mxu0 %v874
    %3289 = vmatpush1.bf16.msra.mxu0 %v873
    %3290 = vmatprep.subr.bf16.mxu0 %v878
    %3291 = vmatpush1.bf16.msra.mxu0 %v877
    %3292 = vmatprep.subr.bf16.mxu0 %v882
    %3293 = vmatpush1.bf16.msra.mxu0 %v881
    %3294 = vmatprep.subr.bf16.mxu0 %v886
    %3295 = vmatpush1.bf16.msra.mxu0 %v885
    %3296 = vmatprep.subr.bf16.mxu0 %v890
    %3297 = vmatpush1.bf16.msra.mxu0 %v889
    %3298 = vmatprep.subr.bf16.mxu0 0
    %3299 = vmatpush1.bf16.msra.mxu0 0
    %3300 = vmatprep.subr.bf16.mxu0 0
    %3301 = vmatpush1.bf16.msra.mxu0 0
    %3302 = vmatprep.subr.bf16.mxu0 0
    %3303 = vmatpush1.bf16.msra.mxu0 0
    %3304 = vmatprep.subr.bf16.mxu0 0
    %3305 = vmatpush1.bf16.msra.mxu0 0
    %3306 = vmatprep.subr.bf16.mxu0 0
    %3307 = vmatpush1.bf16.msra.mxu0 0
    %3308 = vmatprep.subr.bf16.mxu0 0
    %3309 = vmatpush1.bf16.msra.mxu0 0
    %3310 = vmatprep.subr.bf16.mxu0 0
    %3311 = vmatpush1.bf16.msra.mxu0 0
    %3312 = vmatprep.subr.bf16.mxu0 0
    %3313 = vmatpush1.bf16.msra.mxu0 0
    %3314 = vmatprep.mubr.bf16.mxu0 0
    %3315 = vmatmul.mubr.bf16.gmra.mrb[0].mxu0 %v3157
    %v3316 = vpop.f32.mrb[0].mxu0
    %v3317 = vadd.f32 %v3235, %v3316
    %v3318 = vpop.f32.mrb[0].mxu0
    %v3319 = vadd.f32 %v3237, %v3318
    %v3320 = vpop.f32.mrb[0].mxu0
    %v3321 = vpop.f32.mrb[0].mxu0
    %3322 = vdwg.mxu0
    %v3323 = vadd.f32 %v3276, %v1010
    %v3324 = vadd.f32 %v3278, %v1014
    %v3325 = vadd.f32 %v3317, %v1018
    %v3326 = vadd.f32 %v3319, %v1022
    %v3327 = vxor.u32 %v3323, 2147483648
    %v3328 = vxor.u32 %v3324, 2147483648
    %v3329 = vxor.u32 %v3325, 2147483648
    %v3330 = vmul.f32 %v3327, 1.442695
    %v3331 = vpow.pop %v3330
    %v3332 = vmul.f32 %v3328, 1.442695
    %v3333 = vpow.pop %v3332
    %v3334 = vmul.f32 %v3329, 1.442695
    %v3335 = vpow.pop %v3334
    %v3336 = vadd.f32 %v3331, 1.0
    %v3337 = vadd.f32 %v3333, 1.0
    %v3338 = vadd.f32 %v3335, 1.0
    %v3339 = vrcp.pop %v3336
    %v3340 = vmul.f32 1.0, %v3339
    %v3341 = vrcp.pop %v3337
    %v3342 = vmul.f32 1.0, %v3341
    %v3343 = vrcp.pop %v3338
    %v3344 = vmul.f32 1.0, %v3343
    %v3345 = vtanh.pop %v3326
    %v3346 = vmul.f32 %v3342, %v3020
    %v3347 = vmul.f32 %v3340, %v3345
    %v3348 = vadd.f32 %v3346, %v3347
    %v3349 = vtanh.pop %v3348
    %v3350 = vmul.f32 %v3344, %v3349
    %3351 = vst [vmem:[#allocation9] sm:$0x1] %v3350
    // Predicated region
    $region42: #{tpu_custom_call.1} parent=1 // pred_check
      _
    $region43: #{tpu_custom_call.1} parent=1 // pred_check_branch
      %3353 = sbr.rel (0) target = $region45
    $region44: #{tpu_custom_call.1} parent=1 // pred_region
      %s3355 = ssub.s32 16, 16
      %3356 = vsyncadd [#allocation5], %s3355
      %s3358 = sshll.u32 [#allocation9], 4
      %s3359 = int_to_ptr.vmem [resolvable:$true] %s3358
      %3361 = dma.vmem_to_hbm [thread:$0]  %s3359, 16, %s7, [#allocation5]
    $region45: #{tpu_custom_call.1} parent=1 // pred_fallthru
      _
    // Predicated region
    $region46: #{tpu_custom_call.1} parent=1 // pred_check
      _
    $region47: #{tpu_custom_call.1} parent=1 // pred_check_branch
      %3363 = sbr.rel (0) target = $region49
    $region48: #{tpu_custom_call.1} parent=1 // pred_region
      %3364 = dma.done [#allocation5], 16
    $region49: #{tpu_custom_call.1} parent=1 // pred_fallthru
      _
    %3365 = vsyncpa [#allocation4], 1
    %3366 = vsyncpa [#allocation7], 1
    %3367 = vsyncpa [#allocation5], 1

</llo_original>
